<compile_context>
chip_gen: v6e
topology: v6e:2x2x1
jax: 0.10.0
libtpu: 0.0.40
codegen_flags: <defaults>
</compile_context>

<pallas_src>
import functools
import numpy as np
import jax
import jax.numpy as jnp
from jax.experimental import pallas as pl
from jax.experimental.pallas import tpu as pltpu

_BN_EPS = 1e-5


# --------------------------------------------------------------------------
# Pallas kernels: fused (w^T @ patches^T) * scale + bias (+res) (+relu)
#   w_ref : [Cout, K]      (K = taps * Cin, folded contraction)
#   p_ref : [K, tm]        (tm = spatial tile, lane axis)
#   s_ref : [Cout, 1]      b_ref : [Cout, 1]      r_ref : [Cout, tm]
#   o_ref : [Cout, tm]     (lane-dense output)
# --------------------------------------------------------------------------
def _conv_bn_kernel(w_ref, p_ref, s_ref, b_ref, o_ref, *, relu):
    acc = jnp.dot(w_ref[...], p_ref[...], preferred_element_type=jnp.float32)
    y = acc * s_ref[...] + b_ref[...]
    if relu:
        y = jnp.maximum(y, 0.0)
    o_ref[...] = y.astype(o_ref.dtype)


def _conv_bn_res_kernel(w_ref, p_ref, s_ref, b_ref, r_ref, o_ref):
    acc = jnp.dot(w_ref[...], p_ref[...], preferred_element_type=jnp.float32)
    y = acc * s_ref[...] + b_ref[...] + r_ref[...]
    o_ref[...] = jnp.maximum(y, 0.0).astype(o_ref.dtype)


def _pick_tile(m_pad):
    # m_pad is always a multiple of 128 here; cap at 512 so the 1024-row
    # layers still expose >=2 parallel grid steps (v7x megacore).
    for t in (512, 256, 128):
        if m_pad % t == 0:
            return t
    return m_pad


def _fused_conv_bn(patches_t, w_t, scale, bias, residual_t=None, relu=True):
    """patches_t: [K, M]; w_t: [Cout, K]; scale/bias: [Cout];
    residual_t: optional [Cout, M].  Returns [Cout, M] float32."""
    K, M = patches_t.shape
    cout = w_t.shape[0]

    m_pad = ((M + 127) // 128) * 128
    if m_pad != M:
        patches_t = jnp.pad(patches_t, ((0, 0), (0, m_pad - M)))
        if residual_t is not None:
            residual_t = jnp.pad(residual_t, ((0, 0), (0, m_pad - M)))
    tm = _pick_tile(m_pad)
    grid = (m_pad // tm,)

    # bf16 matmul operands; f32 accumulation + epilogue.
    patches_t = patches_t.astype(jnp.bfloat16)
    w_t = w_t.astype(jnp.bfloat16)
    scale2 = scale.reshape(cout, 1).astype(jnp.float32)
    bias2 = bias.reshape(cout, 1).astype(jnp.float32)

    in_specs = [
        pl.BlockSpec((cout, K), lambda i: (0, 0)),   # weights: grid-invariant
        pl.BlockSpec((K, tm), lambda i: (0, i)),     # patches tile
        pl.BlockSpec((cout, 1), lambda i: (0, 0)),   # scale
        pl.BlockSpec((cout, 1), lambda i: (0, 0)),   # bias
    ]
    args = [w_t, patches_t, scale2, bias2]
    if residual_t is None:
        kernel = functools.partial(_conv_bn_kernel, relu=relu)
    else:
        kernel = _conv_bn_res_kernel
        in_specs.append(pl.BlockSpec((cout, tm), lambda i: (0, i)))
        args.append(residual_t.astype(jnp.float32))

    out = pl.pallas_call(
        kernel,
        out_shape=jax.ShapeDtypeStruct((cout, m_pad), jnp.float32),
        grid_spec=pltpu.PrefetchScalarGridSpec(
            num_scalar_prefetch=0,
            grid=grid,
            in_specs=in_specs,
            out_specs=pl.BlockSpec((cout, tm), lambda i: (0, i)),
        ),
        compiler_params=pltpu.CompilerParams(
            dimension_semantics=("parallel",)),
    )(*args)
    return out[:, :M]


# --------------------------------------------------------------------------
# Conv wrappers (im2col gather / reshapes are plain-JAX glue)
# --------------------------------------------------------------------------
def _out_size(n, stride):
    return (n - 1) // stride + 1  # kernel=3, padding=1


def conv3x3x3_bn(x, w, scale, bias, stride=1, relu=True, residual=None):
    # x: [N, D, H, W, Cin]; w: [27, Cin, Cout]
    n, d, h, wd, cin = x.shape
    do, ho, wo = _out_size(d, stride), _out_size(h, stride), _out_size(wd, stride)
    cout = w.shape[-1]
    m = n * do * ho * wo
    xp = jnp.pad(x, ((0, 0), (1, 1), (1, 1), (1, 1), (0, 0)))
    taps = []
    for kd in range(3):
        for kh in range(3):
            for kw in range(3):
                sl = xp[:,
                        kd:kd + (do - 1) * stride + 1:stride,
                        kh:kh + (ho - 1) * stride + 1:stride,
                        kw:kw + (wo - 1) * stride + 1:stride, :]
                taps.append(sl)
    # [27, N, D', H', W', Cin] -> [27*Cin, M]  (tap-major, channel-minor:
    # contraction index matches w.reshape(27*Cin, Cout)).
    patches_t = (jnp.stack(taps, axis=0)
                 .transpose(0, 5, 1, 2, 3, 4)
                 .reshape(27 * cin, m))
    w_t = w.transpose(2, 0, 1).reshape(cout, 27 * cin)
    res_t = None if residual is None else residual.reshape(m, cout).T
    out_t = _fused_conv_bn(patches_t, w_t, scale, bias,
                           residual_t=res_t, relu=relu)
    return out_t.T.reshape(n, do, ho, wo, cout)


def conv1x1x1_bn(x, w, scale, bias, stride=1):
    # projection shortcut: 1x1x1 conv (no padding) + BN, no relu
    n, d, h, wd, cin = x.shape
    xs = x[:, ::stride, ::stride, ::stride, :]
    n, do, ho, wo, _ = xs.shape
    m = n * do * ho * wo
    cout = w.shape[-1]
    patches_t = xs.reshape(m, cin).T          # [Cin, M]
    w_t = w.reshape(cin, cout).T              # [Cout, Cin]
    out_t = _fused_conv_bn(patches_t, w_t, scale, bias,
                           residual_t=None, relu=False)
    return out_t.T.reshape(n, do, ho, wo, cout)


# --------------------------------------------------------------------------
# Deterministic parameter initialization (synthetic weights)
# --------------------------------------------------------------------------
def _conv_bn_params(key, ksize, cin, cout):
    k1, k2, k3 = jax.random.split(key, 3)
    taps = ksize ** 3
    w = jax.random.normal(k1, (taps, cin, cout), jnp.float32) / np.sqrt(taps * cin)
    gamma = 1.0 + 0.1 * jax.random.normal(k2, (cout,), jnp.float32)
    beta = 0.1 * jax.random.normal(k3, (cout,), jnp.float32)
    scale = gamma / jnp.sqrt(1.0 + _BN_EPS)   # running_var = 1, running_mean = 0
    bias = beta
    return dict(w=w, scale=scale, bias=bias)


def _block_params(key, cin, cout, stride):
    ks = jax.random.split(key, 3)
    p = dict(
        conv1=_conv_bn_params(ks[0], 3, cin, cout),
        conv2=_conv_bn_params(ks[1], 3, cout, cout),
        down=None,
    )
    if stride != 1 or cin != cout:
        p['down'] = _conv_bn_params(ks[2], 1, cin, cout)
    return p


def init_params(in_channels, seed=0):
    key = jax.random.PRNGKey(seed)
    ks = jax.random.split(key, 9)
    c = in_channels
    return dict(
        stem1=_conv_bn_params(ks[0], 3, 1, c // 2),
        stem2=_conv_bn_params(ks[1], 3, c // 2, c // 2),
        stem3=_conv_bn_params(ks[2], 3, c // 2, c),
        l1b1=_block_params(ks[3], c, c, 1),
        l1b2=_block_params(ks[4], c, c, 1),
        l2b1=_block_params(ks[5], c, 2 * c, 2),
        l2b2=_block_params(ks[6], 2 * c, 2 * c, 1),
        l3b1=_block_params(ks[7], 2 * c, 4 * c, 2),
        l3b2=_block_params(ks[8], 4 * c, 4 * c, 1),
    )


# --------------------------------------------------------------------------
# Forward pass (matches ResNet18_D_3D.forward)
# --------------------------------------------------------------------------
def basic_block(x, p, stride):
    if p['down'] is not None:
        d = p['down']
        identity = conv1x1x1_bn(x, d['w'], d['scale'], d['bias'], stride=stride)
    else:
        identity = x
    c1, c2 = p['conv1'], p['conv2']
    out = conv3x3x3_bn(x, c1['w'], c1['scale'], c1['bias'],
                       stride=stride, relu=True)
    out = conv3x3x3_bn(out, c2['w'], c2['scale'], c2['bias'],
                       stride=1, relu=True, residual=identity)
    return out


def resnet18_d_3d(x, params):
    s1, s2, s3 = params['stem1'], params['stem2'], params['stem3']
    h = conv3x3x3_bn(x, s1['w'], s1['scale'], s1['bias'], stride=2, relu=True)
    h = conv3x3x3_bn(h, s2['w'], s2['scale'], s2['bias'], stride=1, relu=True)
    h = conv3x3x3_bn(h, s3['w'], s3['scale'], s3['bias'], stride=1, relu=True)
    x1 = basic_block(h, params['l1b1'], 1)
    x1 = basic_block(x1, params['l1b2'], 1)
    x2 = basic_block(x1, params['l2b1'], 2)
    x2 = basic_block(x2, params['l2b2'], 1)
    x3 = basic_block(x2, params['l3b1'], 2)
    x3 = basic_block(x3, params['l3b2'], 1)
    return x1, x2, x3


if __name__ == "__main__":
    C = 4                       # in_channels of ResNet18_D_3D
    N, D, H, W = 2, 16, 16, 16  # input is single-channel volume
    x = jax.random.normal(jax.random.PRNGKey(0), (N, D, H, W, 1), jnp.float32)
    params = init_params(C, seed=0)

    fwd = jax.jit(lambda inp: resnet18_d_3d(inp, params))
    x1, x2, x3 = fwd(x)
    jax.block_until_ready((x1, x2, x3))

    assert x1.shape == (N, 8, 8, 8, C), x1.shape
    assert x2.shape == (N, 4, 4, 4, 2 * C), x2.shape
    assert x3.shape == (N, 2, 2, 2, 4 * C), x3.shape
    assert bool(jnp.all(jnp.isfinite(x1)))
    assert bool(jnp.all(jnp.isfinite(x2)))
    assert bool(jnp.all(jnp.isfinite(x3)))
    print("KERNEL_OK")
</pallas_src>

<mosaic_0001>
module attributes {stable_mosaic.version = 11 : i64} {
  func.func @_conv_bn_kernel(%arg0: i32, %arg1: memref<2x27xbf16, #tpu.memory_space<vmem>>, %arg2: memref<27x512xbf16, #tpu.memory_space<vmem>>, %arg3: memref<2x1xf32, #tpu.memory_space<vmem>>, %arg4: memref<2x1xf32, #tpu.memory_space<vmem>>, %arg5: memref<2x512xf32, #tpu.memory_space<vmem>>) attributes {dimension_semantics = [#tpu.dimension_semantics<parallel>], iteration_bounds = array<i64: 2>, scalar_prefetch = 0 : i64, scratch_operands = 0 : i64, tpu.core_type = #tpu.core_type<tc>, window_params = [{pipeline_mode = #tpu.pipeline_mode<synchronous>, transform_indices = @transform_0, window_bounds = array<i64: 2, 27>}, {transform_indices = @transform_1, window_bounds = array<i64: 27, 512>}, {pipeline_mode = #tpu.pipeline_mode<synchronous>, transform_indices = @transform_2, window_bounds = array<i64: 2, 1>}, {pipeline_mode = #tpu.pipeline_mode<synchronous>, transform_indices = @transform_3, window_bounds = array<i64: 2, 1>}, {transform_indices = @transform_4, window_bounds = array<i64: 2, 512>}]} {
    %c0 = arith.constant 0 : index
    %c0_0 = arith.constant 0 : index
    %0 = vector.load %arg1[%c0, %c0_0] : memref<2x27xbf16, #tpu.memory_space<vmem>>, vector<2x27xbf16>
    %c0_1 = arith.constant 0 : index
    %c0_2 = arith.constant 0 : index
    %1 = vector.load %arg2[%c0_1, %c0_2] : memref<27x512xbf16, #tpu.memory_space<vmem>>, vector<27x512xbf16>
    %cst = arith.constant dense<0.000000e+00> : vector<2x512xf32>
    %2 = tpu.matmul %0, %1, %cst {dimension_numbers = #tpu.dot_dimension_numbers<[1], [0], [0], [1], [0, 0, 1, 1], [], []>} : vector<2x27xbf16>, vector<27x512xbf16>, vector<2x512xf32> -> vector<2x512xf32>
    %c0_3 = arith.constant 0 : index
    %c0_4 = arith.constant 0 : index
    %3 = vector.load %arg3[%c0_3, %c0_4] : memref<2x1xf32, #tpu.memory_space<vmem>>, vector<2x1xf32>
    %4 = vector.broadcast %3 : vector<2x1xf32> to vector<2x512xf32>
    %5 = arith.mulf %2, %4 : vector<2x512xf32>
    %c0_5 = arith.constant 0 : index
    %c0_6 = arith.constant 0 : index
    %6 = vector.load %arg4[%c0_5, %c0_6] : memref<2x1xf32, #tpu.memory_space<vmem>>, vector<2x1xf32>
    %7 = vector.broadcast %6 : vector<2x1xf32> to vector<2x512xf32>
    %8 = arith.addf %5, %7 : vector<2x512xf32>
    %cst_7 = arith.constant 0.000000e+00 : f32
    %9 = vector.broadcast %cst_7 : f32 to vector<2x512xf32>
    %10 = arith.maximumf %8, %9 : vector<2x512xf32>
    %c0_8 = arith.constant 0 : index
    %c0_9 = arith.constant 0 : index
    %11 = vector.load %arg5[%c0_8, %c0_9] : memref<2x512xf32, #tpu.memory_space<vmem>>, vector<2x512xf32>
    tpu.vector_store %arg5[%c0_8, %c0_9], %10 {strides = array<i32>} : memref<2x512xf32, #tpu.memory_space<vmem>>, vector<2x512xf32>,
    return
  }
  func.func @transform_0(%arg0: i32) -> (i32, i32) {
    %c0_i32 = arith.constant 0 : i32
    %c0_i32_0 = arith.constant 0 : i32
    %c0_i32_1 = arith.constant 0 : i32
    return %c0_i32, %c0_i32_0 : i32, i32
  }
  func.func @transform_1(%arg0: i32) -> (i32, i32) {
    %c0_i32 = arith.constant 0 : i32
    %c0_i32_0 = arith.constant 0 : i32
    return %c0_i32, %arg0 : i32, i32
  }
  func.func @transform_2(%arg0: i32) -> (i32, i32) {
    %c0_i32 = arith.constant 0 : i32
    %c0_i32_0 = arith.constant 0 : i32
    %c0_i32_1 = arith.constant 0 : i32
    return %c0_i32, %c0_i32_0 : i32, i32
  }
  func.func @transform_3(%arg0: i32) -> (i32, i32) {
    %c0_i32 = arith.constant 0 : i32
    %c0_i32_0 = arith.constant 0 : i32
    %c0_i32_1 = arith.constant 0 : i32
    return %c0_i32, %c0_i32_0 : i32, i32
  }
  func.func @transform_4(%arg0: i32) -> (i32, i32) {
    %c0_i32 = arith.constant 0 : i32
    %c0_i32_0 = arith.constant 0 : i32
    return %c0_i32, %arg0 : i32, i32
  }
}

module attributes {stable_mosaic.version = 11 : i64} {
  func.func @_conv_bn_kernel(%arg0: i32, %arg1: memref<2x54xbf16, #tpu.memory_space<vmem>>, %arg2: memref<54x512xbf16, #tpu.memory_space<vmem>>, %arg3: memref<2x1xf32, #tpu.memory_space<vmem>>, %arg4: memref<2x1xf32, #tpu.memory_space<vmem>>, %arg5: memref<2x512xf32, #tpu.memory_space<vmem>>) attributes {dimension_semantics = [#tpu.dimension_semantics<parallel>], iteration_bounds = array<i64: 2>, scalar_prefetch = 0 : i64, scratch_operands = 0 : i64, tpu.core_type = #tpu.core_type<tc>, window_params = [{pipeline_mode = #tpu.pipeline_mode<synchronous>, transform_indices = @transform_0, window_bounds = array<i64: 2, 54>}, {transform_indices = @transform_1, window_bounds = array<i64: 54, 512>}, {pipeline_mode = #tpu.pipeline_mode<synchronous>, transform_indices = @transform_2, window_bounds = array<i64: 2, 1>}, {pipeline_mode = #tpu.pipeline_mode<synchronous>, transform_indices = @transform_3, window_bounds = array<i64: 2, 1>}, {transform_indices = @transform_4, window_bounds = array<i64: 2, 512>}]} {
    %c0 = arith.constant 0 : index
    %c0_0 = arith.constant 0 : index
    %0 = vector.load %arg1[%c0, %c0_0] : memref<2x54xbf16, #tpu.memory_space<vmem>>, vector<2x54xbf16>
    %c0_1 = arith.constant 0 : index
    %c0_2 = arith.constant 0 : index
    %1 = vector.load %arg2[%c0_1, %c0_2] : memref<54x512xbf16, #tpu.memory_space<vmem>>, vector<54x512xbf16>
    %cst = arith.constant dense<0.000000e+00> : vector<2x512xf32>
    %2 = tpu.matmul %0, %1, %cst {dimension_numbers = #tpu.dot_dimension_numbers<[1], [0], [0], [1], [0, 0, 1, 1], [], []>} : vector<2x54xbf16>, vector<54x512xbf16>, vector<2x512xf32> -> vector<2x512xf32>
    %c0_3 = arith.constant 0 : index
    %c0_4 = arith.constant 0 : index
    %3 = vector.load %arg3[%c0_3, %c0_4] : memref<2x1xf32, #tpu.memory_space<vmem>>, vector<2x1xf32>
    %4 = vector.broadcast %3 : vector<2x1xf32> to vector<2x512xf32>
    %5 = arith.mulf %2, %4 : vector<2x512xf32>
    %c0_5 = arith.constant 0 : index
    %c0_6 = arith.constant 0 : index
    %6 = vector.load %arg4[%c0_5, %c0_6] : memref<2x1xf32, #tpu.memory_space<vmem>>, vector<2x1xf32>
    %7 = vector.broadcast %6 : vector<2x1xf32> to vector<2x512xf32>
    %8 = arith.addf %5, %7 : vector<2x512xf32>
    %cst_7 = arith.constant 0.000000e+00 : f32
    %9 = vector.broadcast %cst_7 : f32 to vector<2x512xf32>
    %10 = arith.maximumf %8, %9 : vector<2x512xf32>
    %c0_8 = arith.constant 0 : index
    %c0_9 = arith.constant 0 : index
    %11 = vector.load %arg5[%c0_8, %c0_9] : memref<2x512xf32, #tpu.memory_space<vmem>>, vector<2x512xf32>
    tpu.vector_store %arg5[%c0_8, %c0_9], %10 {strides = array<i32>} : memref<2x512xf32, #tpu.memory_space<vmem>>, vector<2x512xf32>,
    return
  }
  func.func @transform_0(%arg0: i32) -> (i32, i32) {
    %c0_i32 = arith.constant 0 : i32
    %c0_i32_0 = arith.constant 0 : i32
    %c0_i32_1 = arith.constant 0 : i32
    return %c0_i32, %c0_i32_0 : i32, i32
  }
  func.func @transform_1(%arg0: i32) -> (i32, i32) {
    %c0_i32 = arith.constant 0 : i32
    %c0_i32_0 = arith.constant 0 : i32
    return %c0_i32, %arg0 : i32, i32
  }
  func.func @transform_2(%arg0: i32) -> (i32, i32) {
    %c0_i32 = arith.constant 0 : i32
    %c0_i32_0 = arith.constant 0 : i32
    %c0_i32_1 = arith.constant 0 : i32
    return %c0_i32, %c0_i32_0 : i32, i32
  }
  func.func @transform_3(%arg0: i32) -> (i32, i32) {
    %c0_i32 = arith.constant 0 : i32
    %c0_i32_0 = arith.constant 0 : i32
    %c0_i32_1 = arith.constant 0 : i32
    return %c0_i32, %c0_i32_0 : i32, i32
  }
  func.func @transform_4(%arg0: i32) -> (i32, i32) {
    %c0_i32 = arith.constant 0 : i32
    %c0_i32_0 = arith.constant 0 : i32
    return %c0_i32, %arg0 : i32, i32
  }
}

module attributes {stable_mosaic.version = 11 : i64} {
  func.func @_conv_bn_kernel(%arg0: i32, %arg1: memref<4x54xbf16, #tpu.memory_space<vmem>>, %arg2: memref<54x512xbf16, #tpu.memory_space<vmem>>, %arg3: memref<4x1xf32, #tpu.memory_space<vmem>>, %arg4: memref<4x1xf32, #tpu.memory_space<vmem>>, %arg5: memref<4x512xf32, #tpu.memory_space<vmem>>) attributes {dimension_semantics = [#tpu.dimension_semantics<parallel>], iteration_bounds = array<i64: 2>, scalar_prefetch = 0 : i64, scratch_operands = 0 : i64, tpu.core_type = #tpu.core_type<tc>, window_params = [{pipeline_mode = #tpu.pipeline_mode<synchronous>, transform_indices = @transform_0, window_bounds = array<i64: 4, 54>}, {transform_indices = @transform_1, window_bounds = array<i64: 54, 512>}, {pipeline_mode = #tpu.pipeline_mode<synchronous>, transform_indices = @transform_2, window_bounds = array<i64: 4, 1>}, {pipeline_mode = #tpu.pipeline_mode<synchronous>, transform_indices = @transform_3, window_bounds = array<i64: 4, 1>}, {transform_indices = @transform_4, window_bounds = array<i64: 4, 512>}]} {
    %c0 = arith.constant 0 : index
    %c0_0 = arith.constant 0 : index
    %0 = vector.load %arg1[%c0, %c0_0] : memref<4x54xbf16, #tpu.memory_space<vmem>>, vector<4x54xbf16>
    %c0_1 = arith.constant 0 : index
    %c0_2 = arith.constant 0 : index
    %1 = vector.load %arg2[%c0_1, %c0_2] : memref<54x512xbf16, #tpu.memory_space<vmem>>, vector<54x512xbf16>
    %cst = arith.constant dense<0.000000e+00> : vector<4x512xf32>
    %2 = tpu.matmul %0, %1, %cst {dimension_numbers = #tpu.dot_dimension_numbers<[1], [0], [0], [1], [0, 0, 1, 1], [], []>} : vector<4x54xbf16>, vector<54x512xbf16>, vector<4x512xf32> -> vector<4x512xf32>
    %c0_3 = arith.constant 0 : index
    %c0_4 = arith.constant 0 : index
    %3 = vector.load %arg3[%c0_3, %c0_4] : memref<4x1xf32, #tpu.memory_space<vmem>>, vector<4x1xf32>
    %4 = vector.broadcast %3 : vector<4x1xf32> to vector<4x512xf32>
    %5 = arith.mulf %2, %4 : vector<4x512xf32>
    %c0_5 = arith.constant 0 : index
    %c0_6 = arith.constant 0 : index
    %6 = vector.load %arg4[%c0_5, %c0_6] : memref<4x1xf32, #tpu.memory_space<vmem>>, vector<4x1xf32>
    %7 = vector.broadcast %6 : vector<4x1xf32> to vector<4x512xf32>
    %8 = arith.addf %5, %7 : vector<4x512xf32>
    %cst_7 = arith.constant 0.000000e+00 : f32
    %9 = vector.broadcast %cst_7 : f32 to vector<4x512xf32>
    %10 = arith.maximumf %8, %9 : vector<4x512xf32>
    %c0_8 = arith.constant 0 : index
    %c0_9 = arith.constant 0 : index
    %11 = vector.load %arg5[%c0_8, %c0_9] : memref<4x512xf32, #tpu.memory_space<vmem>>, vector<4x512xf32>
    tpu.vector_store %arg5[%c0_8, %c0_9], %10 {strides = array<i32>} : memref<4x512xf32, #tpu.memory_space<vmem>>, vector<4x512xf32>,
    return
  }
  func.func @transform_0(%arg0: i32) -> (i32, i32) {
    %c0_i32 = arith.constant 0 : i32
    %c0_i32_0 = arith.constant 0 : i32
    %c0_i32_1 = arith.constant 0 : i32
    return %c0_i32, %c0_i32_0 : i32, i32
  }
  func.func @transform_1(%arg0: i32) -> (i32, i32) {
    %c0_i32 = arith.constant 0 : i32
    %c0_i32_0 = arith.constant 0 : i32
    return %c0_i32, %arg0 : i32, i32
  }
  func.func @transform_2(%arg0: i32) -> (i32, i32) {
    %c0_i32 = arith.constant 0 : i32
    %c0_i32_0 = arith.constant 0 : i32
    %c0_i32_1 = arith.constant 0 : i32
    return %c0_i32, %c0_i32_0 : i32, i32
  }
  func.func @transform_3(%arg0: i32) -> (i32, i32) {
    %c0_i32 = arith.constant 0 : i32
    %c0_i32_0 = arith.constant 0 : i32
    %c0_i32_1 = arith.constant 0 : i32
    return %c0_i32, %c0_i32_0 : i32, i32
  }
  func.func @transform_4(%arg0: i32) -> (i32, i32) {
    %c0_i32 = arith.constant 0 : i32
    %c0_i32_0 = arith.constant 0 : i32
    return %c0_i32, %arg0 : i32, i32
  }
}

module attributes {stable_mosaic.version = 11 : i64} {
  func.func @_conv_bn_kernel(%arg0: i32, %arg1: memref<4x108xbf16, #tpu.memory_space<vmem>>, %arg2: memref<108x512xbf16, #tpu.memory_space<vmem>>, %arg3: memref<4x1xf32, #tpu.memory_space<vmem>>, %arg4: memref<4x1xf32, #tpu.memory_space<vmem>>, %arg5: memref<4x512xf32, #tpu.memory_space<vmem>>) attributes {dimension_semantics = [#tpu.dimension_semantics<parallel>], iteration_bounds = array<i64: 2>, scalar_prefetch = 0 : i64, scratch_operands = 0 : i64, tpu.core_type = #tpu.core_type<tc>, window_params = [{pipeline_mode = #tpu.pipeline_mode<synchronous>, transform_indices = @transform_0, window_bounds = array<i64: 4, 108>}, {transform_indices = @transform_1, window_bounds = array<i64: 108, 512>}, {pipeline_mode = #tpu.pipeline_mode<synchronous>, transform_indices = @transform_2, window_bounds = array<i64: 4, 1>}, {pipeline_mode = #tpu.pipeline_mode<synchronous>, transform_indices = @transform_3, window_bounds = array<i64: 4, 1>}, {transform_indices = @transform_4, window_bounds = array<i64: 4, 512>}]} {
    %c0 = arith.constant 0 : index
    %c0_0 = arith.constant 0 : index
    %0 = vector.load %arg1[%c0, %c0_0] : memref<4x108xbf16, #tpu.memory_space<vmem>>, vector<4x108xbf16>
    %c0_1 = arith.constant 0 : index
    %c0_2 = arith.constant 0 : index
    %1 = vector.load %arg2[%c0_1, %c0_2] : memref<108x512xbf16, #tpu.memory_space<vmem>>, vector<108x512xbf16>
    %cst = arith.constant dense<0.000000e+00> : vector<4x512xf32>
    %2 = tpu.matmul %0, %1, %cst {dimension_numbers = #tpu.dot_dimension_numbers<[1], [0], [0], [1], [0, 0, 1, 1], [], []>} : vector<4x108xbf16>, vector<108x512xbf16>, vector<4x512xf32> -> vector<4x512xf32>
    %c0_3 = arith.constant 0 : index
    %c0_4 = arith.constant 0 : index
    %3 = vector.load %arg3[%c0_3, %c0_4] : memref<4x1xf32, #tpu.memory_space<vmem>>, vector<4x1xf32>
    %4 = vector.broadcast %3 : vector<4x1xf32> to vector<4x512xf32>
    %5 = arith.mulf %2, %4 : vector<4x512xf32>
    %c0_5 = arith.constant 0 : index
    %c0_6 = arith.constant 0 : index
    %6 = vector.load %arg4[%c0_5, %c0_6] : memref<4x1xf32, #tpu.memory_space<vmem>>, vector<4x1xf32>
    %7 = vector.broadcast %6 : vector<4x1xf32> to vector<4x512xf32>
    %8 = arith.addf %5, %7 : vector<4x512xf32>
    %cst_7 = arith.constant 0.000000e+00 : f32
    %9 = vector.broadcast %cst_7 : f32 to vector<4x512xf32>
    %10 = arith.maximumf %8, %9 : vector<4x512xf32>
    %c0_8 = arith.constant 0 : index
    %c0_9 = arith.constant 0 : index
    %11 = vector.load %arg5[%c0_8, %c0_9] : memref<4x512xf32, #tpu.memory_space<vmem>>, vector<4x512xf32>
    tpu.vector_store %arg5[%c0_8, %c0_9], %10 {strides = array<i32>} : memref<4x512xf32, #tpu.memory_space<vmem>>, vector<4x512xf32>,
    return
  }
  func.func @transform_0(%arg0: i32) -> (i32, i32) {
    %c0_i32 = arith.constant 0 : i32
    %c0_i32_0 = arith.constant 0 : i32
    %c0_i32_1 = arith.constant 0 : i32
    return %c0_i32, %c0_i32_0 : i32, i32
  }
  func.func @transform_1(%arg0: i32) -> (i32, i32) {
    %c0_i32 = arith.constant 0 : i32
    %c0_i32_0 = arith.constant 0 : i32
    return %c0_i32, %arg0 : i32, i32
  }
  func.func @transform_2(%arg0: i32) -> (i32, i32) {
    %c0_i32 = arith.constant 0 : i32
    %c0_i32_0 = arith.constant 0 : i32
    %c0_i32_1 = arith.constant 0 : i32
    return %c0_i32, %c0_i32_0 : i32, i32
  }
  func.func @transform_3(%arg0: i32) -> (i32, i32) {
    %c0_i32 = arith.constant 0 : i32
    %c0_i32_0 = arith.constant 0 : i32
    %c0_i32_1 = arith.constant 0 : i32
    return %c0_i32, %c0_i32_0 : i32, i32
  }
  func.func @transform_4(%arg0: i32) -> (i32, i32) {
    %c0_i32 = arith.constant 0 : i32
    %c0_i32_0 = arith.constant 0 : i32
    return %c0_i32, %arg0 : i32, i32
  }
}

module attributes {stable_mosaic.version = 11 : i64} {
  func.func @_conv_bn_res_kernel(%arg0: i32, %arg1: memref<4x108xbf16, #tpu.memory_space<vmem>>, %arg2: memref<108x512xbf16, #tpu.memory_space<vmem>>, %arg3: memref<4x1xf32, #tpu.memory_space<vmem>>, %arg4: memref<4x1xf32, #tpu.memory_space<vmem>>, %arg5: memref<4x512xf32, #tpu.memory_space<vmem>>, %arg6: memref<4x512xf32, #tpu.memory_space<vmem>>) attributes {dimension_semantics = [#tpu.dimension_semantics<parallel>], iteration_bounds = array<i64: 2>, scalar_prefetch = 0 : i64, scratch_operands = 0 : i64, tpu.core_type = #tpu.core_type<tc>, window_params = [{pipeline_mode = #tpu.pipeline_mode<synchronous>, transform_indices = @transform_0, window_bounds = array<i64: 4, 108>}, {transform_indices = @transform_1, window_bounds = array<i64: 108, 512>}, {pipeline_mode = #tpu.pipeline_mode<synchronous>, transform_indices = @transform_2, window_bounds = array<i64: 4, 1>}, {pipeline_mode = #tpu.pipeline_mode<synchronous>, transform_indices = @transform_3, window_bounds = array<i64: 4, 1>}, {transform_indices = @transform_4, window_bounds = array<i64: 4, 512>}, {transform_indices = @transform_5, window_bounds = array<i64: 4, 512>}]} {
    %c0 = arith.constant 0 : index
    %c0_0 = arith.constant 0 : index
    %0 = vector.load %arg1[%c0, %c0_0] : memref<4x108xbf16, #tpu.memory_space<vmem>>, vector<4x108xbf16>
    %c0_1 = arith.constant 0 : index
    %c0_2 = arith.constant 0 : index
    %1 = vector.load %arg2[%c0_1, %c0_2] : memref<108x512xbf16, #tpu.memory_space<vmem>>, vector<108x512xbf16>
    %cst = arith.constant dense<0.000000e+00> : vector<4x512xf32>
    %2 = tpu.matmul %0, %1, %cst {dimension_numbers = #tpu.dot_dimension_numbers<[1], [0], [0], [1], [0, 0, 1, 1], [], []>} : vector<4x108xbf16>, vector<108x512xbf16>, vector<4x512xf32> -> vector<4x512xf32>
    %c0_3 = arith.constant 0 : index
    %c0_4 = arith.constant 0 : index
    %3 = vector.load %arg3[%c0_3, %c0_4] : memref<4x1xf32, #tpu.memory_space<vmem>>, vector<4x1xf32>
    %4 = vector.broadcast %3 : vector<4x1xf32> to vector<4x512xf32>
    %5 = arith.mulf %2, %4 : vector<4x512xf32>
    %c0_5 = arith.constant 0 : index
    %c0_6 = arith.constant 0 : index
    %6 = vector.load %arg4[%c0_5, %c0_6] : memref<4x1xf32, #tpu.memory_space<vmem>>, vector<4x1xf32>
    %7 = vector.broadcast %6 : vector<4x1xf32> to vector<4x512xf32>
    %8 = arith.addf %5, %7 : vector<4x512xf32>
    %c0_7 = arith.constant 0 : index
    %c0_8 = arith.constant 0 : index
    %9 = vector.load %arg5[%c0_7, %c0_8] : memref<4x512xf32, #tpu.memory_space<vmem>>, vector<4x512xf32>
    %10 = arith.addf %8, %9 : vector<4x512xf32>
    %cst_9 = arith.constant 0.000000e+00 : f32
    %11 = vector.broadcast %cst_9 : f32 to vector<4x512xf32>
    %12 = arith.maximumf %10, %11 : vector<4x512xf32>
    %c0_10 = arith.constant 0 : index
    %c0_11 = arith.constant 0 : index
    %13 = vector.load %arg6[%c0_10, %c0_11] : memref<4x512xf32, #tpu.memory_space<vmem>>, vector<4x512xf32>
    tpu.vector_store %arg6[%c0_10, %c0_11], %12 {strides = array<i32>} : memref<4x512xf32, #tpu.memory_space<vmem>>, vector<4x512xf32>,
    return
  }
  func.func @transform_0(%arg0: i32) -> (i32, i32) {
    %c0_i32 = arith.constant 0 : i32
    %c0_i32_0 = arith.constant 0 : i32
    %c0_i32_1 = arith.constant 0 : i32
    return %c0_i32, %c0_i32_0 : i32, i32
  }
  func.func @transform_1(%arg0: i32) -> (i32, i32) {
    %c0_i32 = arith.constant 0 : i32
    %c0_i32_0 = arith.constant 0 : i32
    return %c0_i32, %arg0 : i32, i32
  }
  func.func @transform_2(%arg0: i32) -> (i32, i32) {
    %c0_i32 = arith.constant 0 : i32
    %c0_i32_0 = arith.constant 0 : i32
    %c0_i32_1 = arith.constant 0 : i32
    return %c0_i32, %c0_i32_0 : i32, i32
  }
  func.func @transform_3(%arg0: i32) -> (i32, i32) {
    %c0_i32 = arith.constant 0 : i32
    %c0_i32_0 = arith.constant 0 : i32
    %c0_i32_1 = arith.constant 0 : i32
    return %c0_i32, %c0_i32_0 : i32, i32
  }
  func.func @transform_4(%arg0: i32) -> (i32, i32) {
    %c0_i32 = arith.constant 0 : i32
    %c0_i32_0 = arith.constant 0 : i32
    return %c0_i32, %arg0 : i32, i32
  }
  func.func @transform_5(%arg0: i32) -> (i32, i32) {
    %c0_i32 = arith.constant 0 : i32
    %c0_i32_0 = arith.constant 0 : i32
    return %c0_i32, %arg0 : i32, i32
  }
}

module attributes {stable_mosaic.version = 11 : i64} {
  func.func @_conv_bn_kernel(%arg0: i32, %arg1: memref<8x4xbf16, #tpu.memory_space<vmem>>, %arg2: memref<4x128xbf16, #tpu.memory_space<vmem>>, %arg3: memref<8x1xf32, #tpu.memory_space<vmem>>, %arg4: memref<8x1xf32, #tpu.memory_space<vmem>>, %arg5: memref<8x128xf32, #tpu.memory_space<vmem>>) attributes {dimension_semantics = [#tpu.dimension_semantics<parallel>], iteration_bounds = array<i64: 1>, scalar_prefetch = 0 : i64, scratch_operands = 0 : i64, tpu.core_type = #tpu.core_type<tc>, window_params = [{pipeline_mode = #tpu.pipeline_mode<synchronous>, transform_indices = @transform_0, window_bounds = array<i64: 8, 4>}, {transform_indices = @transform_1, window_bounds = array<i64: 4, 128>}, {pipeline_mode = #tpu.pipeline_mode<synchronous>, transform_indices = @transform_2, window_bounds = array<i64: 8, 1>}, {pipeline_mode = #tpu.pipeline_mode<synchronous>, transform_indices = @transform_3, window_bounds = array<i64: 8, 1>}, {transform_indices = @transform_4, window_bounds = array<i64: 8, 128>}]} {
    %c0 = arith.constant 0 : index
    %c0_0 = arith.constant 0 : index
    %0 = vector.load %arg1[%c0, %c0_0] : memref<8x4xbf16, #tpu.memory_space<vmem>>, vector<8x4xbf16>
    %c0_1 = arith.constant 0 : index
    %c0_2 = arith.constant 0 : index
    %1 = vector.load %arg2[%c0_1, %c0_2] : memref<4x128xbf16, #tpu.memory_space<vmem>>, vector<4x128xbf16>
    %cst = arith.constant dense<0.000000e+00> : vector<8x128xf32>
    %2 = tpu.matmul %0, %1, %cst {dimension_numbers = #tpu.dot_dimension_numbers<[1], [0], [0], [1], [0, 0, 1, 1], [], []>} : vector<8x4xbf16>, vector<4x128xbf16>, vector<8x128xf32> -> vector<8x128xf32>
    %c0_3 = arith.constant 0 : index
    %c0_4 = arith.constant 0 : index
    %3 = vector.load %arg3[%c0_3, %c0_4] : memref<8x1xf32, #tpu.memory_space<vmem>>, vector<8x1xf32>
    %4 = vector.broadcast %3 : vector<8x1xf32> to vector<8x128xf32>
    %5 = arith.mulf %2, %4 : vector<8x128xf32>
    %c0_5 = arith.constant 0 : index
    %c0_6 = arith.constant 0 : index
    %6 = vector.load %arg4[%c0_5, %c0_6] : memref<8x1xf32, #tpu.memory_space<vmem>>, vector<8x1xf32>
    %7 = vector.broadcast %6 : vector<8x1xf32> to vector<8x128xf32>
    %8 = arith.addf %5, %7 : vector<8x128xf32>
    %c0_7 = arith.constant 0 : index
    %c0_8 = arith.constant 0 : index
    %9 = vector.load %arg5[%c0_7, %c0_8] : memref<8x128xf32, #tpu.memory_space<vmem>>, vector<8x128xf32>
    tpu.vector_store %arg5[%c0_7, %c0_8], %8 {strides = array<i32>} : memref<8x128xf32, #tpu.memory_space<vmem>>, vector<8x128xf32>,
    return
  }
  func.func @transform_0(%arg0: i32) -> (i32, i32) {
    %c0_i32 = arith.constant 0 : i32
    %c0_i32_0 = arith.constant 0 : i32
    %c0_i32_1 = arith.constant 0 : i32
    return %c0_i32, %c0_i32_0 : i32, i32
  }
  func.func @transform_1(%arg0: i32) -> (i32, i32) {
    %c0_i32 = arith.constant 0 : i32
    %c0_i32_0 = arith.constant 0 : i32
    return %c0_i32, %arg0 : i32, i32
  }
  func.func @transform_2(%arg0: i32) -> (i32, i32) {
    %c0_i32 = arith.constant 0 : i32
    %c0_i32_0 = arith.constant 0 : i32
    %c0_i32_1 = arith.constant 0 : i32
    return %c0_i32, %c0_i32_0 : i32, i32
  }
  func.func @transform_3(%arg0: i32) -> (i32, i32) {
    %c0_i32 = arith.constant 0 : i32
    %c0_i32_0 = arith.constant 0 : i32
    %c0_i32_1 = arith.constant 0 : i32
    return %c0_i32, %c0_i32_0 : i32, i32
  }
  func.func @transform_4(%arg0: i32) -> (i32, i32) {
    %c0_i32 = arith.constant 0 : i32
    %c0_i32_0 = arith.constant 0 : i32
    return %c0_i32, %arg0 : i32, i32
  }
}

module attributes {stable_mosaic.version = 11 : i64} {
  func.func @_conv_bn_kernel(%arg0: i32, %arg1: memref<8x108xbf16, #tpu.memory_space<vmem>>, %arg2: memref<108x128xbf16, #tpu.memory_space<vmem>>, %arg3: memref<8x1xf32, #tpu.memory_space<vmem>>, %arg4: memref<8x1xf32, #tpu.memory_space<vmem>>, %arg5: memref<8x128xf32, #tpu.memory_space<vmem>>) attributes {dimension_semantics = [#tpu.dimension_semantics<parallel>], iteration_bounds = array<i64: 1>, scalar_prefetch = 0 : i64, scratch_operands = 0 : i64, tpu.core_type = #tpu.core_type<tc>, window_params = [{pipeline_mode = #tpu.pipeline_mode<synchronous>, transform_indices = @transform_0, window_bounds = array<i64: 8, 108>}, {transform_indices = @transform_1, window_bounds = array<i64: 108, 128>}, {pipeline_mode = #tpu.pipeline_mode<synchronous>, transform_indices = @transform_2, window_bounds = array<i64: 8, 1>}, {pipeline_mode = #tpu.pipeline_mode<synchronous>, transform_indices = @transform_3, window_bounds = array<i64: 8, 1>}, {transform_indices = @transform_4, window_bounds = array<i64: 8, 128>}]} {
    %c0 = arith.constant 0 : index
    %c0_0 = arith.constant 0 : index
    %0 = vector.load %arg1[%c0, %c0_0] : memref<8x108xbf16, #tpu.memory_space<vmem>>, vector<8x108xbf16>
    %c0_1 = arith.constant 0 : index
    %c0_2 = arith.constant 0 : index
    %1 = vector.load %arg2[%c0_1, %c0_2] : memref<108x128xbf16, #tpu.memory_space<vmem>>, vector<108x128xbf16>
    %cst = arith.constant dense<0.000000e+00> : vector<8x128xf32>
    %2 = tpu.matmul %0, %1, %cst {dimension_numbers = #tpu.dot_dimension_numbers<[1], [0], [0], [1], [0, 0, 1, 1], [], []>} : vector<8x108xbf16>, vector<108x128xbf16>, vector<8x128xf32> -> vector<8x128xf32>
    %c0_3 = arith.constant 0 : index
    %c0_4 = arith.constant 0 : index
    %3 = vector.load %arg3[%c0_3, %c0_4] : memref<8x1xf32, #tpu.memory_space<vmem>>, vector<8x1xf32>
    %4 = vector.broadcast %3 : vector<8x1xf32> to vector<8x128xf32>
    %5 = arith.mulf %2, %4 : vector<8x128xf32>
    %c0_5 = arith.constant 0 : index
    %c0_6 = arith.constant 0 : index
    %6 = vector.load %arg4[%c0_5, %c0_6] : memref<8x1xf32, #tpu.memory_space<vmem>>, vector<8x1xf32>
    %7 = vector.broadcast %6 : vector<8x1xf32> to vector<8x128xf32>
    %8 = arith.addf %5, %7 : vector<8x128xf32>
    %cst_7 = arith.constant 0.000000e+00 : f32
    %9 = vector.broadcast %cst_7 : f32 to vector<8x128xf32>
    %10 = arith.maximumf %8, %9 : vector<8x128xf32>
    %c0_8 = arith.constant 0 : index
    %c0_9 = arith.constant 0 : index
    %11 = vector.load %arg5[%c0_8, %c0_9] : memref<8x128xf32, #tpu.memory_space<vmem>>, vector<8x128xf32>
    tpu.vector_store %arg5[%c0_8, %c0_9], %10 {strides = array<i32>} : memref<8x128xf32, #tpu.memory_space<vmem>>, vector<8x128xf32>,
    return
  }
  func.func @transform_0(%arg0: i32) -> (i32, i32) {
    %c0_i32 = arith.constant 0 : i32
    %c0_i32_0 = arith.constant 0 : i32
    %c0_i32_1 = arith.constant 0 : i32
    return %c0_i32, %c0_i32_0 : i32, i32
  }
  func.func @transform_1(%arg0: i32) -> (i32, i32) {
    %c0_i32 = arith.constant 0 : i32
    %c0_i32_0 = arith.constant 0 : i32
    return %c0_i32, %arg0 : i32, i32
  }
  func.func @transform_2(%arg0: i32) -> (i32, i32) {
    %c0_i32 = arith.constant 0 : i32
    %c0_i32_0 = arith.constant 0 : i32
    %c0_i32_1 = arith.constant 0 : i32
    return %c0_i32, %c0_i32_0 : i32, i32
  }
  func.func @transform_3(%arg0: i32) -> (i32, i32) {
    %c0_i32 = arith.constant 0 : i32
    %c0_i32_0 = arith.constant 0 : i32
    %c0_i32_1 = arith.constant 0 : i32
    return %c0_i32, %c0_i32_0 : i32, i32
  }
  func.func @transform_4(%arg0: i32) -> (i32, i32) {
    %c0_i32 = arith.constant 0 : i32
    %c0_i32_0 = arith.constant 0 : i32
    return %c0_i32, %arg0 : i32, i32
  }
}

module attributes {stable_mosaic.version = 11 : i64} {
  func.func @_conv_bn_res_kernel(%arg0: i32, %arg1: memref<8x216xbf16, #tpu.memory_space<vmem>>, %arg2: memref<216x128xbf16, #tpu.memory_space<vmem>>, %arg3: memref<8x1xf32, #tpu.memory_space<vmem>>, %arg4: memref<8x1xf32, #tpu.memory_space<vmem>>, %arg5: memref<8x128xf32, #tpu.memory_space<vmem>>, %arg6: memref<8x128xf32, #tpu.memory_space<vmem>>) attributes {dimension_semantics = [#tpu.dimension_semantics<parallel>], iteration_bounds = array<i64: 1>, scalar_prefetch = 0 : i64, scratch_operands = 0 : i64, tpu.core_type = #tpu.core_type<tc>, window_params = [{pipeline_mode = #tpu.pipeline_mode<synchronous>, transform_indices = @transform_0, window_bounds = array<i64: 8, 216>}, {transform_indices = @transform_1, window_bounds = array<i64: 216, 128>}, {pipeline_mode = #tpu.pipeline_mode<synchronous>, transform_indices = @transform_2, window_bounds = array<i64: 8, 1>}, {pipeline_mode = #tpu.pipeline_mode<synchronous>, transform_indices = @transform_3, window_bounds = array<i64: 8, 1>}, {transform_indices = @transform_4, window_bounds = array<i64: 8, 128>}, {transform_indices = @transform_5, window_bounds = array<i64: 8, 128>}]} {
    %c0 = arith.constant 0 : index
    %c0_0 = arith.constant 0 : index
    %0 = vector.load %arg1[%c0, %c0_0] : memref<8x216xbf16, #tpu.memory_space<vmem>>, vector<8x216xbf16>
    %c0_1 = arith.constant 0 : index
    %c0_2 = arith.constant 0 : index
    %1 = vector.load %arg2[%c0_1, %c0_2] : memref<216x128xbf16, #tpu.memory_space<vmem>>, vector<216x128xbf16>
    %cst = arith.constant dense<0.000000e+00> : vector<8x128xf32>
    %2 = tpu.matmul %0, %1, %cst {dimension_numbers = #tpu.dot_dimension_numbers<[1], [0], [0], [1], [0, 0, 1, 1], [], []>} : vector<8x216xbf16>, vector<216x128xbf16>, vector<8x128xf32> -> vector<8x128xf32>
    %c0_3 = arith.constant 0 : index
    %c0_4 = arith.constant 0 : index
    %3 = vector.load %arg3[%c0_3, %c0_4] : memref<8x1xf32, #tpu.memory_space<vmem>>, vector<8x1xf32>
    %4 = vector.broadcast %3 : vector<8x1xf32> to vector<8x128xf32>
    %5 = arith.mulf %2, %4 : vector<8x128xf32>
    %c0_5 = arith.constant 0 : index
    %c0_6 = arith.constant 0 : index
    %6 = vector.load %arg4[%c0_5, %c0_6] : memref<8x1xf32, #tpu.memory_space<vmem>>, vector<8x1xf32>
    %7 = vector.broadcast %6 : vector<8x1xf32> to vector<8x128xf32>
    %8 = arith.addf %5, %7 : vector<8x128xf32>
    %c0_7 = arith.constant 0 : index
    %c0_8 = arith.constant 0 : index
    %9 = vector.load %arg5[%c0_7, %c0_8] : memref<8x128xf32, #tpu.memory_space<vmem>>, vector<8x128xf32>
    %10 = arith.addf %8, %9 : vector<8x128xf32>
    %cst_9 = arith.constant 0.000000e+00 : f32
    %11 = vector.broadcast %cst_9 : f32 to vector<8x128xf32>
    %12 = arith.maximumf %10, %11 : vector<8x128xf32>
    %c0_10 = arith.constant 0 : index
    %c0_11 = arith.constant 0 : index
    %13 = vector.load %arg6[%c0_10, %c0_11] : memref<8x128xf32, #tpu.memory_space<vmem>>, vector<8x128xf32>
    tpu.vector_store %arg6[%c0_10, %c0_11], %12 {strides = array<i32>} : memref<8x128xf32, #tpu.memory_space<vmem>>, vector<8x128xf32>,
    return
  }
  func.func @transform_0(%arg0: i32) -> (i32, i32) {
    %c0_i32 = arith.constant 0 : i32
    %c0_i32_0 = arith.constant 0 : i32
    %c0_i32_1 = arith.constant 0 : i32
    return %c0_i32, %c0_i32_0 : i32, i32
  }
  func.func @transform_1(%arg0: i32) -> (i32, i32) {
    %c0_i32 = arith.constant 0 : i32
    %c0_i32_0 = arith.constant 0 : i32
    return %c0_i32, %arg0 : i32, i32
  }
  func.func @transform_2(%arg0: i32) -> (i32, i32) {
    %c0_i32 = arith.constant 0 : i32
    %c0_i32_0 = arith.constant 0 : i32
    %c0_i32_1 = arith.constant 0 : i32
    return %c0_i32, %c0_i32_0 : i32, i32
  }
  func.func @transform_3(%arg0: i32) -> (i32, i32) {
    %c0_i32 = arith.constant 0 : i32
    %c0_i32_0 = arith.constant 0 : i32
    %c0_i32_1 = arith.constant 0 : i32
    return %c0_i32, %c0_i32_0 : i32, i32
  }
  func.func @transform_4(%arg0: i32) -> (i32, i32) {
    %c0_i32 = arith.constant 0 : i32
    %c0_i32_0 = arith.constant 0 : i32
    return %c0_i32, %arg0 : i32, i32
  }
  func.func @transform_5(%arg0: i32) -> (i32, i32) {
    %c0_i32 = arith.constant 0 : i32
    %c0_i32_0 = arith.constant 0 : i32
    return %c0_i32, %arg0 : i32, i32
  }
}

module attributes {stable_mosaic.version = 11 : i64} {
  func.func @_conv_bn_kernel(%arg0: i32, %arg1: memref<8x216xbf16, #tpu.memory_space<vmem>>, %arg2: memref<216x128xbf16, #tpu.memory_space<vmem>>, %arg3: memref<8x1xf32, #tpu.memory_space<vmem>>, %arg4: memref<8x1xf32, #tpu.memory_space<vmem>>, %arg5: memref<8x128xf32, #tpu.memory_space<vmem>>) attributes {dimension_semantics = [#tpu.dimension_semantics<parallel>], iteration_bounds = array<i64: 1>, scalar_prefetch = 0 : i64, scratch_operands = 0 : i64, tpu.core_type = #tpu.core_type<tc>, window_params = [{pipeline_mode = #tpu.pipeline_mode<synchronous>, transform_indices = @transform_0, window_bounds = array<i64: 8, 216>}, {transform_indices = @transform_1, window_bounds = array<i64: 216, 128>}, {pipeline_mode = #tpu.pipeline_mode<synchronous>, transform_indices = @transform_2, window_bounds = array<i64: 8, 1>}, {pipeline_mode = #tpu.pipeline_mode<synchronous>, transform_indices = @transform_3, window_bounds = array<i64: 8, 1>}, {transform_indices = @transform_4, window_bounds = array<i64: 8, 128>}]} {
    %c0 = arith.constant 0 : index
    %c0_0 = arith.constant 0 : index
    %0 = vector.load %arg1[%c0, %c0_0] : memref<8x216xbf16, #tpu.memory_space<vmem>>, vector<8x216xbf16>
    %c0_1 = arith.constant 0 : index
    %c0_2 = arith.constant 0 : index
    %1 = vector.load %arg2[%c0_1, %c0_2] : memref<216x128xbf16, #tpu.memory_space<vmem>>, vector<216x128xbf16>
    %cst = arith.constant dense<0.000000e+00> : vector<8x128xf32>
    %2 = tpu.matmul %0, %1, %cst {dimension_numbers = #tpu.dot_dimension_numbers<[1], [0], [0], [1], [0, 0, 1, 1], [], []>} : vector<8x216xbf16>, vector<216x128xbf16>, vector<8x128xf32> -> vector<8x128xf32>
    %c0_3 = arith.constant 0 : index
    %c0_4 = arith.constant 0 : index
    %3 = vector.load %arg3[%c0_3, %c0_4] : memref<8x1xf32, #tpu.memory_space<vmem>>, vector<8x1xf32>
    %4 = vector.broadcast %3 : vector<8x1xf32> to vector<8x128xf32>
    %5 = arith.mulf %2, %4 : vector<8x128xf32>
    %c0_5 = arith.constant 0 : index
    %c0_6 = arith.constant 0 : index
    %6 = vector.load %arg4[%c0_5, %c0_6] : memref<8x1xf32, #tpu.memory_space<vmem>>, vector<8x1xf32>
    %7 = vector.broadcast %6 : vector<8x1xf32> to vector<8x128xf32>
    %8 = arith.addf %5, %7 : vector<8x128xf32>
    %cst_7 = arith.constant 0.000000e+00 : f32
    %9 = vector.broadcast %cst_7 : f32 to vector<8x128xf32>
    %10 = arith.maximumf %8, %9 : vector<8x128xf32>
    %c0_8 = arith.constant 0 : index
    %c0_9 = arith.constant 0 : index
    %11 = vector.load %arg5[%c0_8, %c0_9] : memref<8x128xf32, #tpu.memory_space<vmem>>, vector<8x128xf32>
    tpu.vector_store %arg5[%c0_8, %c0_9], %10 {strides = array<i32>} : memref<8x128xf32, #tpu.memory_space<vmem>>, vector<8x128xf32>,
    return
  }
  func.func @transform_0(%arg0: i32) -> (i32, i32) {
    %c0_i32 = arith.constant 0 : i32
    %c0_i32_0 = arith.constant 0 : i32
    %c0_i32_1 = arith.constant 0 : i32
    return %c0_i32, %c0_i32_0 : i32, i32
  }
  func.func @transform_1(%arg0: i32) -> (i32, i32) {
    %c0_i32 = arith.constant 0 : i32
    %c0_i32_0 = arith.constant 0 : i32
    return %c0_i32, %arg0 : i32, i32
  }
  func.func @transform_2(%arg0: i32) -> (i32, i32) {
    %c0_i32 = arith.constant 0 : i32
    %c0_i32_0 = arith.constant 0 : i32
    %c0_i32_1 = arith.constant 0 : i32
    return %c0_i32, %c0_i32_0 : i32, i32
  }
  func.func @transform_3(%arg0: i32) -> (i32, i32) {
    %c0_i32 = arith.constant 0 : i32
    %c0_i32_0 = arith.constant 0 : i32
    %c0_i32_1 = arith.constant 0 : i32
    return %c0_i32, %c0_i32_0 : i32, i32
  }
  func.func @transform_4(%arg0: i32) -> (i32, i32) {
    %c0_i32 = arith.constant 0 : i32
    %c0_i32_0 = arith.constant 0 : i32
    return %c0_i32, %arg0 : i32, i32
  }
}

module attributes {stable_mosaic.version = 11 : i64} {
  func.func @_conv_bn_kernel(%arg0: i32, %arg1: memref<16x8xbf16, #tpu.memory_space<vmem>>, %arg2: memref<8x128xbf16, #tpu.memory_space<vmem>>, %arg3: memref<16x1xf32, #tpu.memory_space<vmem>>, %arg4: memref<16x1xf32, #tpu.memory_space<vmem>>, %arg5: memref<16x128xf32, #tpu.memory_space<vmem>>) attributes {dimension_semantics = [#tpu.dimension_semantics<parallel>], iteration_bounds = array<i64: 1>, scalar_prefetch = 0 : i64, scratch_operands = 0 : i64, tpu.core_type = #tpu.core_type<tc>, window_params = [{pipeline_mode = #tpu.pipeline_mode<synchronous>, transform_indices = @transform_0, window_bounds = array<i64: 16, 8>}, {transform_indices = @transform_1, window_bounds = array<i64: 8, 128>}, {pipeline_mode = #tpu.pipeline_mode<synchronous>, transform_indices = @transform_2, window_bounds = array<i64: 16, 1>}, {pipeline_mode = #tpu.pipeline_mode<synchronous>, transform_indices = @transform_3, window_bounds = array<i64: 16, 1>}, {transform_indices = @transform_4, window_bounds = array<i64: 16, 128>}]} {
    %c0 = arith.constant 0 : index
    %c0_0 = arith.constant 0 : index
    %0 = vector.load %arg1[%c0, %c0_0] : memref<16x8xbf16, #tpu.memory_space<vmem>>, vector<16x8xbf16>
    %c0_1 = arith.constant 0 : index
    %c0_2 = arith.constant 0 : index
    %1 = vector.load %arg2[%c0_1, %c0_2] : memref<8x128xbf16, #tpu.memory_space<vmem>>, vector<8x128xbf16>
    %cst = arith.constant dense<0.000000e+00> : vector<16x128xf32>
    %2 = tpu.matmul %0, %1, %cst {dimension_numbers = #tpu.dot_dimension_numbers<[1], [0], [0], [1], [0, 0, 1, 1], [], []>} : vector<16x8xbf16>, vector<8x128xbf16>, vector<16x128xf32> -> vector<16x128xf32>
    %c0_3 = arith.constant 0 : index
    %c0_4 = arith.constant 0 : index
    %3 = vector.load %arg3[%c0_3, %c0_4] : memref<16x1xf32, #tpu.memory_space<vmem>>, vector<16x1xf32>
    %4 = vector.broadcast %3 : vector<16x1xf32> to vector<16x128xf32>
    %5 = arith.mulf %2, %4 : vector<16x128xf32>
    %c0_5 = arith.constant 0 : index
    %c0_6 = arith.constant 0 : index
    %6 = vector.load %arg4[%c0_5, %c0_6] : memref<16x1xf32, #tpu.memory_space<vmem>>, vector<16x1xf32>
    %7 = vector.broadcast %6 : vector<16x1xf32> to vector<16x128xf32>
    %8 = arith.addf %5, %7 : vector<16x128xf32>
    %c0_7 = arith.constant 0 : index
    %c0_8 = arith.constant 0 : index
    %9 = vector.load %arg5[%c0_7, %c0_8] : memref<16x128xf32, #tpu.memory_space<vmem>>, vector<16x128xf32>
    tpu.vector_store %arg5[%c0_7, %c0_8], %8 {strides = array<i32>} : memref<16x128xf32, #tpu.memory_space<vmem>>, vector<16x128xf32>,
    return
  }
  func.func @transform_0(%arg0: i32) -> (i32, i32) {
    %c0_i32 = arith.constant 0 : i32
    %c0_i32_0 = arith.constant 0 : i32
    %c0_i32_1 = arith.constant 0 : i32
    return %c0_i32, %c0_i32_0 : i32, i32
  }
  func.func @transform_1(%arg0: i32) -> (i32, i32) {
    %c0_i32 = arith.constant 0 : i32
    %c0_i32_0 = arith.constant 0 : i32
    return %c0_i32, %arg0 : i32, i32
  }
  func.func @transform_2(%arg0: i32) -> (i32, i32) {
    %c0_i32 = arith.constant 0 : i32
    %c0_i32_0 = arith.constant 0 : i32
    %c0_i32_1 = arith.constant 0 : i32
    return %c0_i32, %c0_i32_0 : i32, i32
  }
  func.func @transform_3(%arg0: i32) -> (i32, i32) {
    %c0_i32 = arith.constant 0 : i32
    %c0_i32_0 = arith.constant 0 : i32
    %c0_i32_1 = arith.constant 0 : i32
    return %c0_i32, %c0_i32_0 : i32, i32
  }
  func.func @transform_4(%arg0: i32) -> (i32, i32) {
    %c0_i32 = arith.constant 0 : i32
    %c0_i32_0 = arith.constant 0 : i32
    return %c0_i32, %arg0 : i32, i32
  }
}

module attributes {stable_mosaic.version = 11 : i64} {
  func.func @_conv_bn_kernel(%arg0: i32, %arg1: memref<16x216xbf16, #tpu.memory_space<vmem>>, %arg2: memref<216x128xbf16, #tpu.memory_space<vmem>>, %arg3: memref<16x1xf32, #tpu.memory_space<vmem>>, %arg4: memref<16x1xf32, #tpu.memory_space<vmem>>, %arg5: memref<16x128xf32, #tpu.memory_space<vmem>>) attributes {dimension_semantics = [#tpu.dimension_semantics<parallel>], iteration_bounds = array<i64: 1>, scalar_prefetch = 0 : i64, scratch_operands = 0 : i64, tpu.core_type = #tpu.core_type<tc>, window_params = [{pipeline_mode = #tpu.pipeline_mode<synchronous>, transform_indices = @transform_0, window_bounds = array<i64: 16, 216>}, {transform_indices = @transform_1, window_bounds = array<i64: 216, 128>}, {pipeline_mode = #tpu.pipeline_mode<synchronous>, transform_indices = @transform_2, window_bounds = array<i64: 16, 1>}, {pipeline_mode = #tpu.pipeline_mode<synchronous>, transform_indices = @transform_3, window_bounds = array<i64: 16, 1>}, {transform_indices = @transform_4, window_bounds = array<i64: 16, 128>}]} {
    %c0 = arith.constant 0 : index
    %c0_0 = arith.constant 0 : index
    %0 = vector.load %arg1[%c0, %c0_0] : memref<16x216xbf16, #tpu.memory_space<vmem>>, vector<16x216xbf16>
    %c0_1 = arith.constant 0 : index
    %c0_2 = arith.constant 0 : index
    %1 = vector.load %arg2[%c0_1, %c0_2] : memref<216x128xbf16, #tpu.memory_space<vmem>>, vector<216x128xbf16>
    %cst = arith.constant dense<0.000000e+00> : vector<16x128xf32>
    %2 = tpu.matmul %0, %1, %cst {dimension_numbers = #tpu.dot_dimension_numbers<[1], [0], [0], [1], [0, 0, 1, 1], [], []>} : vector<16x216xbf16>, vector<216x128xbf16>, vector<16x128xf32> -> vector<16x128xf32>
    %c0_3 = arith.constant 0 : index
    %c0_4 = arith.constant 0 : index
    %3 = vector.load %arg3[%c0_3, %c0_4] : memref<16x1xf32, #tpu.memory_space<vmem>>, vector<16x1xf32>
    %4 = vector.broadcast %3 : vector<16x1xf32> to vector<16x128xf32>
    %5 = arith.mulf %2, %4 : vector<16x128xf32>
    %c0_5 = arith.constant 0 : index
    %c0_6 = arith.constant 0 : index
    %6 = vector.load %arg4[%c0_5, %c0_6] : memref<16x1xf32, #tpu.memory_space<vmem>>, vector<16x1xf32>
    %7 = vector.broadcast %6 : vector<16x1xf32> to vector<16x128xf32>
    %8 = arith.addf %5, %7 : vector<16x128xf32>
    %cst_7 = arith.constant 0.000000e+00 : f32
    %9 = vector.broadcast %cst_7 : f32 to vector<16x128xf32>
    %10 = arith.maximumf %8, %9 : vector<16x128xf32>
    %c0_8 = arith.constant 0 : index
    %c0_9 = arith.constant 0 : index
    %11 = vector.load %arg5[%c0_8, %c0_9] : memref<16x128xf32, #tpu.memory_space<vmem>>, vector<16x128xf32>
    tpu.vector_store %arg5[%c0_8, %c0_9], %10 {strides = array<i32>} : memref<16x128xf32, #tpu.memory_space<vmem>>, vector<16x128xf32>,
    return
  }
  func.func @transform_0(%arg0: i32) -> (i32, i32) {
    %c0_i32 = arith.constant 0 : i32
    %c0_i32_0 = arith.constant 0 : i32
    %c0_i32_1 = arith.constant 0 : i32
    return %c0_i32, %c0_i32_0 : i32, i32
  }
  func.func @transform_1(%arg0: i32) -> (i32, i32) {
    %c0_i32 = arith.constant 0 : i32
    %c0_i32_0 = arith.constant 0 : i32
    return %c0_i32, %arg0 : i32, i32
  }
  func.func @transform_2(%arg0: i32) -> (i32, i32) {
    %c0_i32 = arith.constant 0 : i32
    %c0_i32_0 = arith.constant 0 : i32
    %c0_i32_1 = arith.constant 0 : i32
    return %c0_i32, %c0_i32_0 : i32, i32
  }
  func.func @transform_3(%arg0: i32) -> (i32, i32) {
    %c0_i32 = arith.constant 0 : i32
    %c0_i32_0 = arith.constant 0 : i32
    %c0_i32_1 = arith.constant 0 : i32
    return %c0_i32, %c0_i32_0 : i32, i32
  }
  func.func @transform_4(%arg0: i32) -> (i32, i32) {
    %c0_i32 = arith.constant 0 : i32
    %c0_i32_0 = arith.constant 0 : i32
    return %c0_i32, %arg0 : i32, i32
  }
}

module attributes {stable_mosaic.version = 11 : i64} {
  func.func @_conv_bn_res_kernel(%arg0: i32, %arg1: memref<16x432xbf16, #tpu.memory_space<vmem>>, %arg2: memref<432x128xbf16, #tpu.memory_space<vmem>>, %arg3: memref<16x1xf32, #tpu.memory_space<vmem>>, %arg4: memref<16x1xf32, #tpu.memory_space<vmem>>, %arg5: memref<16x128xf32, #tpu.memory_space<vmem>>, %arg6: memref<16x128xf32, #tpu.memory_space<vmem>>) attributes {dimension_semantics = [#tpu.dimension_semantics<parallel>], iteration_bounds = array<i64: 1>, scalar_prefetch = 0 : i64, scratch_operands = 0 : i64, tpu.core_type = #tpu.core_type<tc>, window_params = [{pipeline_mode = #tpu.pipeline_mode<synchronous>, transform_indices = @transform_0, window_bounds = array<i64: 16, 432>}, {transform_indices = @transform_1, window_bounds = array<i64: 432, 128>}, {pipeline_mode = #tpu.pipeline_mode<synchronous>, transform_indices = @transform_2, window_bounds = array<i64: 16, 1>}, {pipeline_mode = #tpu.pipeline_mode<synchronous>, transform_indices = @transform_3, window_bounds = array<i64: 16, 1>}, {transform_indices = @transform_4, window_bounds = array<i64: 16, 128>}, {transform_indices = @transform_5, window_bounds = array<i64: 16, 128>}]} {
    %c0 = arith.constant 0 : index
    %c0_0 = arith.constant 0 : index
    %0 = vector.load %arg1[%c0, %c0_0] : memref<16x432xbf16, #tpu.memory_space<vmem>>, vector<16x432xbf16>
    %c0_1 = arith.constant 0 : index
    %c0_2 = arith.constant 0 : index
    %1 = vector.load %arg2[%c0_1, %c0_2] : memref<432x128xbf16, #tpu.memory_space<vmem>>, vector<432x128xbf16>
    %cst = arith.constant dense<0.000000e+00> : vector<16x128xf32>
    %2 = tpu.matmul %0, %1, %cst {dimension_numbers = #tpu.dot_dimension_numbers<[1], [0], [0], [1], [0, 0, 1, 1], [], []>} : vector<16x432xbf16>, vector<432x128xbf16>, vector<16x128xf32> -> vector<16x128xf32>
    %c0_3 = arith.constant 0 : index
    %c0_4 = arith.constant 0 : index
    %3 = vector.load %arg3[%c0_3, %c0_4] : memref<16x1xf32, #tpu.memory_space<vmem>>, vector<16x1xf32>
    %4 = vector.broadcast %3 : vector<16x1xf32> to vector<16x128xf32>
    %5 = arith.mulf %2, %4 : vector<16x128xf32>
    %c0_5 = arith.constant 0 : index
    %c0_6 = arith.constant 0 : index
    %6 = vector.load %arg4[%c0_5, %c0_6] : memref<16x1xf32, #tpu.memory_space<vmem>>, vector<16x1xf32>
    %7 = vector.broadcast %6 : vector<16x1xf32> to vector<16x128xf32>
    %8 = arith.addf %5, %7 : vector<16x128xf32>
    %c0_7 = arith.constant 0 : index
    %c0_8 = arith.constant 0 : index
    %9 = vector.load %arg5[%c0_7, %c0_8] : memref<16x128xf32, #tpu.memory_space<vmem>>, vector<16x128xf32>
    %10 = arith.addf %8, %9 : vector<16x128xf32>
    %cst_9 = arith.constant 0.000000e+00 : f32
    %11 = vector.broadcast %cst_9 : f32 to vector<16x128xf32>
    %12 = arith.maximumf %10, %11 : vector<16x128xf32>
    %c0_10 = arith.constant 0 : index
    %c0_11 = arith.constant 0 : index
    %13 = vector.load %arg6[%c0_10, %c0_11] : memref<16x128xf32, #tpu.memory_space<vmem>>, vector<16x128xf32>
    tpu.vector_store %arg6[%c0_10, %c0_11], %12 {strides = array<i32>} : memref<16x128xf32, #tpu.memory_space<vmem>>, vector<16x128xf32>,
    return
  }
  func.func @transform_0(%arg0: i32) -> (i32, i32) {
    %c0_i32 = arith.constant 0 : i32
    %c0_i32_0 = arith.constant 0 : i32
    %c0_i32_1 = arith.constant 0 : i32
    return %c0_i32, %c0_i32_0 : i32, i32
  }
  func.func @transform_1(%arg0: i32) -> (i32, i32) {
    %c0_i32 = arith.constant 0 : i32
    %c0_i32_0 = arith.constant 0 : i32
    return %c0_i32, %arg0 : i32, i32
  }
  func.func @transform_2(%arg0: i32) -> (i32, i32) {
    %c0_i32 = arith.constant 0 : i32
    %c0_i32_0 = arith.constant 0 : i32
    %c0_i32_1 = arith.constant 0 : i32
    return %c0_i32, %c0_i32_0 : i32, i32
  }
  func.func @transform_3(%arg0: i32) -> (i32, i32) {
    %c0_i32 = arith.constant 0 : i32
    %c0_i32_0 = arith.constant 0 : i32
    %c0_i32_1 = arith.constant 0 : i32
    return %c0_i32, %c0_i32_0 : i32, i32
  }
  func.func @transform_4(%arg0: i32) -> (i32, i32) {
    %c0_i32 = arith.constant 0 : i32
    %c0_i32_0 = arith.constant 0 : i32
    return %c0_i32, %arg0 : i32, i32
  }
  func.func @transform_5(%arg0: i32) -> (i32, i32) {
    %c0_i32 = arith.constant 0 : i32
    %c0_i32_0 = arith.constant 0 : i32
    return %c0_i32, %arg0 : i32, i32
  }
}

module attributes {stable_mosaic.version = 11 : i64} {
  func.func @_conv_bn_kernel(%arg0: i32, %arg1: memref<16x432xbf16, #tpu.memory_space<vmem>>, %arg2: memref<432x128xbf16, #tpu.memory_space<vmem>>, %arg3: memref<16x1xf32, #tpu.memory_space<vmem>>, %arg4: memref<16x1xf32, #tpu.memory_space<vmem>>, %arg5: memref<16x128xf32, #tpu.memory_space<vmem>>) attributes {dimension_semantics = [#tpu.dimension_semantics<parallel>], iteration_bounds = array<i64: 1>, scalar_prefetch = 0 : i64, scratch_operands = 0 : i64, tpu.core_type = #tpu.core_type<tc>, window_params = [{pipeline_mode = #tpu.pipeline_mode<synchronous>, transform_indices = @transform_0, window_bounds = array<i64: 16, 432>}, {transform_indices = @transform_1, window_bounds = array<i64: 432, 128>}, {pipeline_mode = #tpu.pipeline_mode<synchronous>, transform_indices = @transform_2, window_bounds = array<i64: 16, 1>}, {pipeline_mode = #tpu.pipeline_mode<synchronous>, transform_indices = @transform_3, window_bounds = array<i64: 16, 1>}, {transform_indices = @transform_4, window_bounds = array<i64: 16, 128>}]} {
    %c0 = arith.constant 0 : index
    %c0_0 = arith.constant 0 : index
    %0 = vector.load %arg1[%c0, %c0_0] : memref<16x432xbf16, #tpu.memory_space<vmem>>, vector<16x432xbf16>
    %c0_1 = arith.constant 0 : index
    %c0_2 = arith.constant 0 : index
    %1 = vector.load %arg2[%c0_1, %c0_2] : memref<432x128xbf16, #tpu.memory_space<vmem>>, vector<432x128xbf16>
    %cst = arith.constant dense<0.000000e+00> : vector<16x128xf32>
    %2 = tpu.matmul %0, %1, %cst {dimension_numbers = #tpu.dot_dimension_numbers<[1], [0], [0], [1], [0, 0, 1, 1], [], []>} : vector<16x432xbf16>, vector<432x128xbf16>, vector<16x128xf32> -> vector<16x128xf32>
    %c0_3 = arith.constant 0 : index
    %c0_4 = arith.constant 0 : index
    %3 = vector.load %arg3[%c0_3, %c0_4] : memref<16x1xf32, #tpu.memory_space<vmem>>, vector<16x1xf32>
    %4 = vector.broadcast %3 : vector<16x1xf32> to vector<16x128xf32>
    %5 = arith.mulf %2, %4 : vector<16x128xf32>
    %c0_5 = arith.constant 0 : index
    %c0_6 = arith.constant 0 : index
    %6 = vector.load %arg4[%c0_5, %c0_6] : memref<16x1xf32, #tpu.memory_space<vmem>>, vector<16x1xf32>
    %7 = vector.broadcast %6 : vector<16x1xf32> to vector<16x128xf32>
    %8 = arith.addf %5, %7 : vector<16x128xf32>
    %cst_7 = arith.constant 0.000000e+00 : f32
    %9 = vector.broadcast %cst_7 : f32 to vector<16x128xf32>
    %10 = arith.maximumf %8, %9 : vector<16x128xf32>
    %c0_8 = arith.constant 0 : index
    %c0_9 = arith.constant 0 : index
    %11 = vector.load %arg5[%c0_8, %c0_9] : memref<16x128xf32, #tpu.memory_space<vmem>>, vector<16x128xf32>
    tpu.vector_store %arg5[%c0_8, %c0_9], %10 {strides = array<i32>} : memref<16x128xf32, #tpu.memory_space<vmem>>, vector<16x128xf32>,
    return
  }
  func.func @transform_0(%arg0: i32) -> (i32, i32) {
    %c0_i32 = arith.constant 0 : i32
    %c0_i32_0 = arith.constant 0 : i32
    %c0_i32_1 = arith.constant 0 : i32
    return %c0_i32, %c0_i32_0 : i32, i32
  }
  func.func @transform_1(%arg0: i32) -> (i32, i32) {
    %c0_i32 = arith.constant 0 : i32
    %c0_i32_0 = arith.constant 0 : i32
    return %c0_i32, %arg0 : i32, i32
  }
  func.func @transform_2(%arg0: i32) -> (i32, i32) {
    %c0_i32 = arith.constant 0 : i32
    %c0_i32_0 = arith.constant 0 : i32
    %c0_i32_1 = arith.constant 0 : i32
    return %c0_i32, %c0_i32_0 : i32, i32
  }
  func.func @transform_3(%arg0: i32) -> (i32, i32) {
    %c0_i32 = arith.constant 0 : i32
    %c0_i32_0 = arith.constant 0 : i32
    %c0_i32_1 = arith.constant 0 : i32
    return %c0_i32, %c0_i32_0 : i32, i32
  }
  func.func @transform_4(%arg0: i32) -> (i32, i32) {
    %c0_i32 = arith.constant 0 : i32
    %c0_i32_0 = arith.constant 0 : i32
    return %c0_i32, %arg0 : i32, i32
  }
}

</mosaic_0001>

<llo_original>
// kernel: _lambda_.17
$region0: #{_lambda_.17}
  #allocation0 [shape = 'u32[]', space=smem, size = 0x4, offset = 0x4, fixed_abs, tag = 'smem constant byte address 0x4 - core index']
  #allocation1 [shape = 'u32[144,128]{1,0:T(1,128)}', space=vmem, size = 0x12000, scoped, tag = 'internal scratch']
  %s0 = inlined_call_operand.vmem [shape: bf16[2,27], index: 0, kind: input, shape index: {}]
  %s1 = inlined_call_operand.vmem [shape: bf16[27,1024], index: 1, kind: input, shape index: {}]
  %s2 = inlined_call_operand.vmem [shape: f32[2,1], index: 2, kind: input, shape index: {}]
  %s3 = inlined_call_operand.vmem [shape: f32[2,1], index: 3, kind: input, shape index: {}]
  %s4 = inlined_call_operand.vmem [shape: f32[2,1024], index: 4, kind: output, shape index: {}]
  %s5 = sld [smem:[#allocation0]]
  $region72: #{_lambda_.17} parent=0
    _
  %s7 = ssub.s32 1, %s5
  %s8 = scalar_select 0, %s7, %s5
  $region1: #{_lambda_.17} parent=0
    #allocation2 [shape = 'u8[65536]{0}', space=vmem, size = 0x10000, scoped, tag = 'input window, operand 1']
    loop: start=0, step=1, limit=4
    $region2: #{_lambda_.17} parent=1 // loop_pre_header
      _
    $region3: #{_lambda_.17} parent=1 // loop_header
      %s10 = sphi 0, %s14
      %p11 = scmp.ge.s32.totalorder %s10, 4
      %s18 = sphi 0, %s18
      %s20 = sphi 0, %s18
      %s21 = sphi 0, %s20
      %s35 = sphi 0, %s21
      %s41 = sphi 0, %s43
      %s44 = sphi 0, %s41
      %s45 = sphi 0, %s44
      %s61 = sphi 0, %s45
      %s65 = sphi 0, %s65
      %s67 = sphi 0, %s65
      %s68 = sphi 0, %s67
      %s82 = sphi 0, %s68
      %s86 = sphi 0, %s86
      %s88 = sphi 0, %s86
      %s89 = sphi 0, %s88
      %s103 = sphi 0, %s89
      %s109 = sphi 0, %s111
      %s112 = sphi 0, %s109
      %s113 = sphi 0, %s112
      %s129 = sphi 0, %s113
    $region4: #{_lambda_.17} parent=1 // loop_header_branch
      %13 = sbr.rel (%p11) target = $region8
    $region5: #{_lambda_.17} parent=1 // loop_body
      %s15 = ssub.s32 %s10, 1
      %s16 = ssub.s32 %s10, 2
      %s17 = sadd.s32 %s10, 1
      %s19 = sadd.s32 %s18, 1
      %p22 = scmp.eq.s32.totalorder %s10, 1
      %p23 = scmp.ne.s32.totalorder %s18, %s20
      %p24 = scmp.eq.s32.totalorder %s10, 0
      %p25 = por %p23, %p24
      %p26 = scmp.ne.s32.totalorder %s18, %s20
      %p27 = scmp.eq.s32.totalorder %s15, 1
      %p28 = por %p26, %p27
      %p29 = scmp.ne.s32.totalorder %s20, %s21
      %p30 = scmp.eq.s32.totalorder %s15, 0
      %p31 = por %p29, %p30
      %p32 = scmp.ne.s32.totalorder %s20, %s21
      %p33 = scmp.eq.s32.totalorder %s16, 1
      %p34 = por %p32, %p33
      %p36 = scmp.ne.s32.totalorder %s21, %s35
      %p37 = scmp.eq.s32.totalorder %s16, 0
      %p38 = por %p36, %p37
      %s39 = ssub.s32 %s10, %s17
      %p40 = scmp.eq.s32.totalorder %s39, 0
      %s42 = sadd.s32 %s41, 1
      %s43 = scalar_select %p40, %s41, %s42
      %p46 = pneg %p40
      %p47 = scmp.eq.s32.totalorder %s10, 1
      %p48 = por %p46, %p47
      %p49 = scmp.ne.s32.totalorder %s41, %s44
      %p50 = scmp.eq.s32.totalorder %s10, 0
      %p51 = por %p49, %p50
      %p52 = scmp.ne.s32.totalorder %s41, %s44
      %p53 = scmp.eq.s32.totalorder %s15, 1
      %p54 = por %p52, %p53
      %p55 = scmp.ne.s32.totalorder %s44, %s45
      %p56 = scmp.eq.s32.totalorder %s15, 0
      %p57 = por %p55, %p56
      %p58 = scmp.ne.s32.totalorder %s44, %s45
      %p59 = scmp.eq.s32.totalorder %s16, 1
      %p60 = por %p58, %p59
      %p62 = scmp.ne.s32.totalorder %s45, %s61
      %p63 = scmp.eq.s32.totalorder %s16, 0
      %p64 = por %p62, %p63
      %s66 = sadd.s32 %s65, 1
      %p69 = scmp.eq.s32.totalorder %s10, 1
      %p70 = scmp.ne.s32.totalorder %s65, %s67
      %p71 = scmp.eq.s32.totalorder %s10, 0
      %p72 = por %p70, %p71
      %p73 = scmp.ne.s32.totalorder %s65, %s67
      %p74 = scmp.eq.s32.totalorder %s15, 1
      %p75 = por %p73, %p74
      %p76 = scmp.ne.s32.totalorder %s67, %s68
      %p77 = scmp.eq.s32.totalorder %s15, 0
      %p78 = por %p76, %p77
      %p79 = scmp.ne.s32.totalorder %s67, %s68
      %p80 = scmp.eq.s32.totalorder %s16, 1
      %p81 = por %p79, %p80
      %p83 = scmp.ne.s32.totalorder %s68, %s82
      %p84 = scmp.eq.s32.totalorder %s16, 0
      %p85 = por %p83, %p84
      %s87 = sadd.s32 %s86, 1
      %p90 = scmp.eq.s32.totalorder %s10, 1
      %p91 = scmp.ne.s32.totalorder %s86, %s88
      %p92 = scmp.eq.s32.totalorder %s10, 0
      %p93 = por %p91, %p92
      %p94 = scmp.ne.s32.totalorder %s86, %s88
      %p95 = scmp.eq.s32.totalorder %s15, 1
      %p96 = por %p94, %p95
      %p97 = scmp.ne.s32.totalorder %s88, %s89
      %p98 = scmp.eq.s32.totalorder %s15, 0
      %p99 = por %p97, %p98
      %p100 = scmp.ne.s32.totalorder %s88, %s89
      %p101 = scmp.eq.s32.totalorder %s16, 1
      %p102 = por %p100, %p101
      %p104 = scmp.ne.s32.totalorder %s89, %s103
      %p105 = scmp.eq.s32.totalorder %s16, 0
      %p106 = por %p104, %p105
      %s107 = ssub.s32 %s10, %s17
      %p108 = scmp.eq.s32.totalorder %s107, 0
      %s110 = sadd.s32 %s109, 1
      %s111 = scalar_select %p108, %s109, %s110
      %p114 = pneg %p108
      %p115 = scmp.eq.s32.totalorder %s10, 1
      %p116 = por %p114, %p115
      %p117 = scmp.ne.s32.totalorder %s109, %s112
      %p118 = scmp.eq.s32.totalorder %s10, 0
      %p119 = por %p117, %p118
      %p120 = scmp.ne.s32.totalorder %s109, %s112
      %p121 = scmp.eq.s32.totalorder %s15, 1
      %p122 = por %p120, %p121
      %p123 = scmp.ne.s32.totalorder %s112, %s113
      %p124 = scmp.eq.s32.totalorder %s15, 0
      %p125 = por %p123, %p124
      %p126 = scmp.ne.s32.totalorder %s112, %s113
      %p127 = scmp.eq.s32.totalorder %s16, 1
      %p128 = por %p126, %p127
      %p130 = scmp.ne.s32.totalorder %s113, %s129
      %p131 = scmp.eq.s32.totalorder %s16, 0
      %p132 = por %p130, %p131
      %p133 = scmp.le.s32.totalorder 1, %s10
      %p134 = scmp.lt.s32.totalorder %s10, 3
      %p135 = pnand %p133, %p134
      %p136 = pneg %p135
      // Predicated region
      $region9: #{_lambda_.17} parent=5 // pred_check
        _
      $region10: #{_lambda_.17} parent=5 // pred_check_branch
        %138 = sbr.rel (%p135) target = $region12
      $region11: #{_lambda_.17} parent=5 // pred_region
        %s139 = ssub.s32 %s10, 1
        // Predicated region
        $region13: #{_lambda_.17} parent=11 // pred_check
          %p140 = pneg %p31
        $region14: #{_lambda_.17} parent=11 // pred_check_branch
          %142 = sbr.rel (%p140) target = $region16
        $region15: #{_lambda_.17} parent=11 // pred_region
          _
        $region16: #{_lambda_.17} parent=11 // pred_fallthru
          _
        // Predicated region
        $region17: #{_lambda_.17} parent=11 // pred_check
          %p143 = pneg %p78
        $region18: #{_lambda_.17} parent=11 // pred_check_branch
          %145 = sbr.rel (%p143) target = $region20
        $region19: #{_lambda_.17} parent=11 // pred_region
          _
        $region20: #{_lambda_.17} parent=11 // pred_fallthru
          _
        // Predicated region
        $region21: #{_lambda_.17} parent=11 // pred_check
          %p146 = pneg %p99
        $region22: #{_lambda_.17} parent=11 // pred_check_branch
          %148 = sbr.rel (%p146) target = $region24
        $region23: #{_lambda_.17} parent=11 // pred_region
          _
        $region24: #{_lambda_.17} parent=11 // pred_fallthru
          _
      $region12: #{_lambda_.17} parent=5 // pred_fallthru
        _
      %p149 = scmp.lt.s32.totalorder %s10, 2
      // Predicated region
      $region25: #{_lambda_.17} parent=5 // pred_check
        %p150 = pneg %p149
      $region26: #{_lambda_.17} parent=5 // pred_check_branch
        %152 = sbr.rel (%p150) target = $region28
      $region27: #{_lambda_.17} parent=5 // pred_region
        // Predicated region
        $region29: #{_lambda_.17} parent=27 // pred_check
          %p153 = pneg %p51
        $region30: #{_lambda_.17} parent=27 // pred_check_branch
          %155 = sbr.rel (%p153) target = $region32
        $region31: #{_lambda_.17} parent=27 // pred_region
          %s156 = sand.u32 %s41, 1
          %s157 = sand.u32 %s41, 1
          %s158 = smul.addr %s157, 64
          %s159 = scalar_lea.vmem [#allocation2], %s158
          %s160 = smul.u32 4, %s10
          %s161 = smul.addr %s160, 4
          %s162 = scalar_lea.vmem %s1, %s161
          // Predicated region
          $region33: #{_lambda_.17} parent=31 // pred_check
            _
          $region34: #{_lambda_.17} parent=31 // pred_check_branch
            %164 = sbr.rel (0) target = $region36
          $region35: #{_lambda_.17} parent=31 // pred_region
            // Predicated region
            $region37: #{_lambda_.17} parent=35 // pred_check
              _
            $region38: #{_lambda_.17} parent=35 // pred_check_branch
              %166 = sbr.rel (0) target = $region40
            $region39: #{_lambda_.17} parent=35 // pred_region
              loop: start=0, step=1, limit=1
              $region41: #{_lambda_.17} parent=39 // loop_pre_header
                _
              $region42: #{_lambda_.17} parent=39 // loop_header
                %s168 = sphi 0, %s172
                %p169 = scmp.ge.s32.totalorder %s168, 1
                %s173 = sphi %s162, %s162
                %s174 = sphi %s159, %s159
              $region43: #{_lambda_.17} parent=39 // loop_header_branch
                %171 = sbr.rel (%p169) target = $region47
              $region44: #{_lambda_.17} parent=39 // loop_body
                %v175 = vld [vmem:[%s173] sm:$0xff]
                %176 = vst [vmem:[%s174] sm:$0xff] %v175
                %v177 = vld [vmem:[%s173 + $0x8] sm:$0xff]
                %178 = vst [vmem:[%s174 + $0x8] sm:$0xff] %v177
                %v179 = vld [vmem:[%s173 + $0x20] sm:$0xff]
                %180 = vst [vmem:[%s174 + $0x10] sm:$0xff] %v179
                %v181 = vld [vmem:[%s173 + $0x28] sm:$0xff]
                %182 = vst [vmem:[%s174 + $0x18] sm:$0xff] %v181
                %v183 = vld [vmem:[%s173 + $0x40] sm:$0xff]
                %184 = vst [vmem:[%s174 + $0x20] sm:$0xff] %v183
                %v185 = vld [vmem:[%s173 + $0x48] sm:$0xff]
                %186 = vst [vmem:[%s174 + $0x28] sm:$0xff] %v185
                %v187 = vld [vmem:[%s173 + $0x60] sm:$0xff]
                %188 = vst [vmem:[%s174 + $0x30] sm:$0xff] %v187
                %v189 = vld [vmem:[%s173 + $0x68] sm:$0xff]
                %190 = vst [vmem:[%s174 + $0x38] sm:$0xff] %v189
              $region45: #{_lambda_.17} parent=39 // loop_footer
                %s172 = sadd.s32 1, %s168
              $region46: #{_lambda_.17} parent=39 // loop_footer_branch
                %167 = sbr.rel target = $region42
              $region47: #{_lambda_.17} parent=39 // loop_exit
                _
            $region40: #{_lambda_.17} parent=35 // pred_fallthru
              _
            // Predicated region
            $region48: #{_lambda_.17} parent=35 // pred_check
              _
            $region49: #{_lambda_.17} parent=35 // pred_check_branch
              %192 = sbr.rel target = $region51
            $region50: #{_lambda_.17} parent=35 // pred_region
              _
            $region51: #{_lambda_.17} parent=35 // pred_fallthru
              _
          $region36: #{_lambda_.17} parent=31 // pred_fallthru
            _
          %193 = vnop
        $region32: #{_lambda_.17} parent=27 // pred_fallthru
          _
      $region28: #{_lambda_.17} parent=5 // pred_fallthru
        _
      %p194 = scmp.le.s32.totalorder 1, %s10
      %p195 = scmp.lt.s32.totalorder %s10, 3
      %p196 = pnand %p194, %p195
      %p197 = pneg %p196
      // Predicated region
      $region52: #{_lambda_.17} parent=5 // pred_check
        _
      $region53: #{_lambda_.17} parent=5 // pred_check_branch
        %199 = sbr.rel (%p196) target = $region55
      $region54: #{_lambda_.17} parent=5 // pred_region
        %s200 = ssub.s32 %s10, 1
        %s201 = sand.u32 %s44, 1
        %s202 = sand.u32 %s44, 1
        %s203 = smul.addr %s202, 64
        %s204 = scalar_lea.vmem [#allocation2], %s203
        // Predicated region
        $region56: #{_lambda_.17} parent=54 // pred_check
          %p205 = pneg %p57
        $region57: #{_lambda_.17} parent=54 // pred_check_branch
          %207 = sbr.rel (%p205) target = $region59
        $region58: #{_lambda_.17} parent=54 // pred_region
          _
        $region59: #{_lambda_.17} parent=54 // pred_fallthru
          _
        %p208 = pneg %p31
        %p209 = pneg %p28
        %s210 = sand.u32 %s44, 1
        %s211 = sand.u32 %s44, 1
        %s212 = smul.addr %s211, 64
        %s213 = scalar_lea.vmem [#allocation2], %s212
        %p214 = pneg %p57
        %p215 = pneg %p54
        %p216 = pneg %p78
        %p217 = pneg %p75
        %p218 = pneg %p99
        %p219 = pneg %p96
        %p220 = pneg %p125
        %p221 = pneg %p122
        %s222 = smul.u32 4, %s15
        %p223 = scmp.lt.s32.totalorder %s222, 7
        %s224 = scalar_select %p223, %s222, 7
        %s225 = smul.addr %s224, 2
        %s226 = scalar_lea.vmem %s4, %s225
        %s227 = smul.u32 4, %s15
        %s228 = smul.u32 4, %s15
        %p229 = scmp.lt.s32.totalorder %s228, 7
        %s230 = scalar_select %p229, %s228, 7
        %s231 = smul.addr %s230, 2
        %s232 = scalar_lea.vmem %s4, %s231
        %s233 = smul.u32 4, %s15
        %v235 = vld [vmem:[%s0] sm:$0x1]
        %v236 = vld [vmem:[%s204] sm:$0xff]
        %v237 = vld [vmem:[%s204 + $0x8] sm:$0xff]
        %v238 = vld [vmem:[%s204 + $0x10] sm:$0xff]
        %v239 = vld [vmem:[%s204 + $0x18] sm:$0xff]
        %v240 = vld [vmem:[%s204 + $0x20] sm:$0xff]
        %v241 = vld [vmem:[%s204 + $0x28] sm:$0xff]
        %v242 = vld [vmem:[%s204 + $0x30] sm:$0x33]
        %v243 = vld [vmem:[%s204 + $0x38] sm:$0x33]
        %v252 = vunpack.c.l.b16 %v236
        %v253 = vunpack.c.h.b16 %v236
        %v254 = vunpack.c.l.b16 %v237
        %v255 = vunpack.c.h.b16 %v237
        %v256 = vunpack.c.l.b16 %v238
        %v257 = vunpack.c.h.b16 %v238
        %v258 = vunpack.c.l.b16 %v239
        %v259 = vunpack.c.h.b16 %v239
        %v260 = vunpack.c.l.b16 %v240
        %v261 = vunpack.c.h.b16 %v240
        %v262 = vunpack.c.l.b16 %v241
        %v263 = vunpack.c.h.b16 %v241
        %v264 = vunpack.c.l.b16 %v242
        %v265 = vunpack.c.h.b16 %v242
        %v266 = vunpack.c.l.b16 %v243
        %v267 = vunpack.c.h.b16 %v243
        %v268 = vpack.c.b16 %v256, %v252
        %v269 = vpack.c.b16 %v257, %v253
        %v270 = vpack.c.b16 %v258, %v254
        %v271 = vpack.c.b16 %v259, %v255
        %v272 = vpack.c.b16 %v264, %v260
        %v273 = vpack.c.b16 %v265, %v261
        %v274 = vpack.c.b16 %v266, %v262
        %v275 = vpack.c.b16 %v267, %v263
        %vm280 = vcmask 220160
        %v282 = vsel %vm280, %v235, 0
        %vm284 = vcmask 1044480
        %vm285 = vcmask 1045504
        %v286 = vsel %vm284, 4294967295, 65535
        %v287 = vsel %vm285, %v286, 0
        %v289 = vand.u32 %v272, %v287
        %v292 = vand.u32 %v273, %v287
        %v295 = vand.u32 %v274, %v287
        %v298 = vand.u32 %v275, %v287
        %300 = vmatprep.subr.bf16.mxu0 0
        %301 = vmatpush1.bf16.msra.mxu0 0
        %302 = vmatprep.subr.bf16.mxu0 0
        %303 = vmatpush1.bf16.msra.mxu0 0
        %304 = vmatprep.subr.bf16.mxu0 0
        %305 = vmatpush1.bf16.msra.mxu0 0
        %306 = vmatprep.subr.bf16.mxu0 0
        %307 = vmatpush1.bf16.msra.mxu0 0
        %308 = vmatprep.subr.bf16.mxu0 0
        %309 = vmatpush1.bf16.msra.mxu0 0
        %310 = vmatprep.subr.bf16.mxu0 0
        %311 = vmatpush1.bf16.msra.mxu0 0
        %312 = vmatprep.subr.bf16.mxu0 %v292
        %313 = vmatpush1.bf16.msra.mxu0 %v289
        %314 = vmatprep.subr.bf16.mxu0 %v269
        %315 = vmatpush1.bf16.msra.mxu0 %v268
        %316 = vmatprep.subr.bf16.mxu0 0
        %317 = vmatpush2.bf16.msra.mxu0 0
        %318 = vmatprep.subr.bf16.mxu0 0
        %319 = vmatpush2.bf16.msra.mxu0 0
        %320 = vmatprep.subr.bf16.mxu0 0
        %321 = vmatpush2.bf16.msra.mxu0 0
        %322 = vmatprep.subr.bf16.mxu0 0
        %323 = vmatpush2.bf16.msra.mxu0 0
        %324 = vmatprep.subr.bf16.mxu0 0
        %325 = vmatpush2.bf16.msra.mxu0 0
        %326 = vmatprep.subr.bf16.mxu0 0
        %327 = vmatpush2.bf16.msra.mxu0 0
        %328 = vmatprep.subr.bf16.mxu0 0
        %329 = vmatpush2.bf16.msra.mxu0 0
        %330 = vmatprep.subr.bf16.mxu0 0
        %331 = vmatpush2.bf16.msra.mxu0 0
        %332 = vmatprep.mubr.bf16.mxu0 0
        %333 = vmatmul.mubr.bf16.gmra.mxu0 %v282
        %v334 = vpop.f32.mrf.mxu0
        %v335 = vadd.f32 0.0, %v334
        %v336 = vpop.f32.mrf.mxu0
        %v337 = vadd.f32 0.0, %v336
        %v338 = vpop.f32.mrf.mxu0
        %v339 = vpop.f32.mrf.mxu0
        %340 = vdwg.mxu0
        %341 = vmatprep.subr.bf16.mxu0 0
        %342 = vmatpush1.bf16.msra.mxu0 0
        %343 = vmatprep.subr.bf16.mxu0 0
        %344 = vmatpush1.bf16.msra.mxu0 0
        %345 = vmatprep.subr.bf16.mxu0 0
        %346 = vmatpush1.bf16.msra.mxu0 0
        %347 = vmatprep.subr.bf16.mxu0 0
        %348 = vmatpush1.bf16.msra.mxu0 0
        %349 = vmatprep.subr.bf16.mxu0 0
        %350 = vmatpush1.bf16.msra.mxu0 0
        %351 = vmatprep.subr.bf16.mxu0 0
        %352 = vmatpush1.bf16.msra.mxu0 0
        %353 = vmatprep.subr.bf16.mxu0 %v298
        %354 = vmatpush1.bf16.msra.mxu0 %v295
        %355 = vmatprep.subr.bf16.mxu0 %v271
        %356 = vmatpush1.bf16.msra.mxu0 %v270
        %357 = vmatprep.subr.bf16.mxu0 0
        %358 = vmatpush2.bf16.msra.mxu0 0
        %359 = vmatprep.subr.bf16.mxu0 0
        %360 = vmatpush2.bf16.msra.mxu0 0
        %361 = vmatprep.subr.bf16.mxu0 0
        %362 = vmatpush2.bf16.msra.mxu0 0
        %363 = vmatprep.subr.bf16.mxu0 0
        %364 = vmatpush2.bf16.msra.mxu0 0
        %365 = vmatprep.subr.bf16.mxu0 0
        %366 = vmatpush2.bf16.msra.mxu0 0
        %367 = vmatprep.subr.bf16.mxu0 0
        %368 = vmatpush2.bf16.msra.mxu0 0
        %369 = vmatprep.subr.bf16.mxu0 0
        %370 = vmatpush2.bf16.msra.mxu0 0
        %371 = vmatprep.subr.bf16.mxu0 0
        %372 = vmatpush2.bf16.msra.mxu0 0
        %373 = vmatprep.mubr.bf16.mxu0 0
        %374 = vmatmul.mubr.bf16.gmra.mxu0 %v282
        %v375 = vpop.f32.mrf.mxu0
        %v376 = vadd.f32 0.0, %v375
        %v377 = vpop.f32.mrf.mxu0
        %v378 = vadd.f32 0.0, %v377
        %v379 = vpop.f32.mrf.mxu0
        %v380 = vpop.f32.mrf.mxu0
        %381 = vdwg.mxu0
        %v382 = vld [vmem:[%s2] sm:$0x3]
        %384 = vset.pattern.permute.xlu0 0
        %385 = vperm.xlu0 %384, %v382
        %v386 = vpop.permute.xlu0 %385
        %v388 = vmul.f32 %v335, %v386
        %v389 = vmul.f32 %v337, %v386
        %v390 = vmul.f32 %v376, %v386
        %v391 = vmul.f32 %v378, %v386
        %v392 = vld [vmem:[%s3] sm:$0x3]
        %394 = vset.pattern.permute.xlu0 0
        %395 = vperm.xlu0 %394, %v392
        %v396 = vpop.permute.xlu0 %395
        %v398 = vadd.f32 %v388, %v396
        %v399 = vadd.f32 %v389, %v396
        %v400 = vadd.f32 %v390, %v396
        %v401 = vadd.f32 %v391, %v396
        %v402 = vmax.f32 %v398, 0.0
        %v403 = vmax.f32 %v399, 0.0
        %v404 = vmax.f32 %v400, 0.0
        %v405 = vmax.f32 %v401, 0.0
        %v410 = vcombine.low %v402, %v403
        %v411 = vcombine.low %v404, %v405
        %v413 = vunpack.c.l.s4 1983009808
        %v414 = vunpack.c.0.s8 %v413
        %v415 = vlaneseq
        %v416 = vshrl.u32 %v415, 7
        %v417 = vsub.s32 %v414, %v416
        %v418 = vrot.slane %v410, %v417
        %v420 = vunpack.c.l.s4 1983009808
        %v421 = vunpack.c.0.s8 %v420
        %v422 = vlaneseq
        %v423 = vshrl.u32 %v422, 7
        %v424 = vsub.s32 %v421, %v423
        %v425 = vrot.slane %v411, %v424
        %v426 = vcombine.low %v418, %v425
        %428 = vst [vmem:[%s232] sm:$0xff] %v426
        %s429 = smul.u32 4, %s15
        %p430 = scmp.lt.s32.totalorder %s429, 7
        %s431 = scalar_select %p430, %s429, 7
        %s432 = smul.addr %s431, 2
        %s433 = scalar_lea.vmem %s4, %s432
        // Predicated region
        $region60: #{_lambda_.17} parent=54 // pred_check
          %p434 = pneg %p122
        $region61: #{_lambda_.17} parent=54 // pred_check_branch
          %436 = sbr.rel (%p434) target = $region63
        $region62: #{_lambda_.17} parent=54 // pred_region
          %s437 = smul.u32 4, %s15
        $region63: #{_lambda_.17} parent=54 // pred_fallthru
          _
      $region55: #{_lambda_.17} parent=5 // pred_fallthru
        _
      %p438 = scmp.le.s32.totalorder 2, %s10
      // Predicated region
      $region64: #{_lambda_.17} parent=5 // pred_check
        %p439 = pneg %p438
      $region65: #{_lambda_.17} parent=5 // pred_check_branch
        %441 = sbr.rel (%p439) target = $region67
      $region66: #{_lambda_.17} parent=5 // pred_region
        %s442 = ssub.s32 %s10, 2
        // Predicated region
        $region68: #{_lambda_.17} parent=66 // pred_check
          %p443 = pneg %p128
        $region69: #{_lambda_.17} parent=66 // pred_check_branch
          %445 = sbr.rel (%p443) target = $region71
        $region70: #{_lambda_.17} parent=66 // pred_region
          %s446 = smul.u32 4, %s16
          %p447 = scmp.lt.s32.totalorder %s446, 7
          %s448 = scalar_select %p447, %s446, 7
          %s449 = smul.addr %s448, 2
          %s450 = scalar_lea.vmem %s4, %s449
        $region71: #{_lambda_.17} parent=66 // pred_fallthru
          _
      $region67: #{_lambda_.17} parent=5 // pred_fallthru
        _
    $region6: #{_lambda_.17} parent=1 // loop_footer
      %s14 = sadd.s32 1, %s10
    $region7: #{_lambda_.17} parent=1 // loop_footer_branch
      %9 = sbr.rel target = $region3
    $region8: #{_lambda_.17} parent=1 // loop_exit
      _

// kernel: _lambda_.18
$region0: #{_lambda_.18}
  #allocation0 [shape = 'u32[]', space=smem, size = 0x4, offset = 0x4, fixed_abs, tag = 'smem constant byte address 0x4 - core index']
  #allocation1 [shape = 'u32[144,128]{1,0:T(1,128)}', space=vmem, size = 0x12000, scoped, tag = 'internal scratch']
  %s0 = inlined_call_operand.vmem [shape: bf16[2,54], index: 0, kind: input, shape index: {}]
  %s1 = inlined_call_operand.vmem [shape: bf16[54,1024], index: 1, kind: input, shape index: {}]
  %s2 = inlined_call_operand.vmem [shape: f32[2,1], index: 2, kind: input, shape index: {}]
  %s3 = inlined_call_operand.vmem [shape: f32[2,1], index: 3, kind: input, shape index: {}]
  %s4 = inlined_call_operand.vmem [shape: f32[2,1024], index: 4, kind: output, shape index: {}]
  %s5 = sld [smem:[#allocation0]]
  $region72: #{_lambda_.18} parent=0
    _
  %s7 = ssub.s32 1, %s5
  %s8 = scalar_select 0, %s7, %s5
  $region1: #{_lambda_.18} parent=0
    #allocation2 [shape = 'u8[114688]{0}', space=vmem, size = 0x1c000, scoped, tag = 'input window, operand 1']
    loop: start=0, step=1, limit=4
    $region2: #{_lambda_.18} parent=1 // loop_pre_header
      _
    $region3: #{_lambda_.18} parent=1 // loop_header
      %s10 = sphi 0, %s14
      %p11 = scmp.ge.s32.totalorder %s10, 4
      %s18 = sphi 0, %s18
      %s20 = sphi 0, %s18
      %s21 = sphi 0, %s20
      %s35 = sphi 0, %s21
      %s41 = sphi 0, %s43
      %s44 = sphi 0, %s41
      %s45 = sphi 0, %s44
      %s61 = sphi 0, %s45
      %s65 = sphi 0, %s65
      %s67 = sphi 0, %s65
      %s68 = sphi 0, %s67
      %s82 = sphi 0, %s68
      %s86 = sphi 0, %s86
      %s88 = sphi 0, %s86
      %s89 = sphi 0, %s88
      %s103 = sphi 0, %s89
      %s109 = sphi 0, %s111
      %s112 = sphi 0, %s109
      %s113 = sphi 0, %s112
      %s129 = sphi 0, %s113
    $region4: #{_lambda_.18} parent=1 // loop_header_branch
      %13 = sbr.rel (%p11) target = $region8
    $region5: #{_lambda_.18} parent=1 // loop_body
      %s15 = ssub.s32 %s10, 1
      %s16 = ssub.s32 %s10, 2
      %s17 = sadd.s32 %s10, 1
      %s19 = sadd.s32 %s18, 1
      %p22 = scmp.eq.s32.totalorder %s10, 1
      %p23 = scmp.ne.s32.totalorder %s18, %s20
      %p24 = scmp.eq.s32.totalorder %s10, 0
      %p25 = por %p23, %p24
      %p26 = scmp.ne.s32.totalorder %s18, %s20
      %p27 = scmp.eq.s32.totalorder %s15, 1
      %p28 = por %p26, %p27
      %p29 = scmp.ne.s32.totalorder %s20, %s21
      %p30 = scmp.eq.s32.totalorder %s15, 0
      %p31 = por %p29, %p30
      %p32 = scmp.ne.s32.totalorder %s20, %s21
      %p33 = scmp.eq.s32.totalorder %s16, 1
      %p34 = por %p32, %p33
      %p36 = scmp.ne.s32.totalorder %s21, %s35
      %p37 = scmp.eq.s32.totalorder %s16, 0
      %p38 = por %p36, %p37
      %s39 = ssub.s32 %s10, %s17
      %p40 = scmp.eq.s32.totalorder %s39, 0
      %s42 = sadd.s32 %s41, 1
      %s43 = scalar_select %p40, %s41, %s42
      %p46 = pneg %p40
      %p47 = scmp.eq.s32.totalorder %s10, 1
      %p48 = por %p46, %p47
      %p49 = scmp.ne.s32.totalorder %s41, %s44
      %p50 = scmp.eq.s32.totalorder %s10, 0
      %p51 = por %p49, %p50
      %p52 = scmp.ne.s32.totalorder %s41, %s44
      %p53 = scmp.eq.s32.totalorder %s15, 1
      %p54 = por %p52, %p53
      %p55 = scmp.ne.s32.totalorder %s44, %s45
      %p56 = scmp.eq.s32.totalorder %s15, 0
      %p57 = por %p55, %p56
      %p58 = scmp.ne.s32.totalorder %s44, %s45
      %p59 = scmp.eq.s32.totalorder %s16, 1
      %p60 = por %p58, %p59
      %p62 = scmp.ne.s32.totalorder %s45, %s61
      %p63 = scmp.eq.s32.totalorder %s16, 0
      %p64 = por %p62, %p63
      %s66 = sadd.s32 %s65, 1
      %p69 = scmp.eq.s32.totalorder %s10, 1
      %p70 = scmp.ne.s32.totalorder %s65, %s67
      %p71 = scmp.eq.s32.totalorder %s10, 0
      %p72 = por %p70, %p71
      %p73 = scmp.ne.s32.totalorder %s65, %s67
      %p74 = scmp.eq.s32.totalorder %s15, 1
      %p75 = por %p73, %p74
      %p76 = scmp.ne.s32.totalorder %s67, %s68
      %p77 = scmp.eq.s32.totalorder %s15, 0
      %p78 = por %p76, %p77
      %p79 = scmp.ne.s32.totalorder %s67, %s68
      %p80 = scmp.eq.s32.totalorder %s16, 1
      %p81 = por %p79, %p80
      %p83 = scmp.ne.s32.totalorder %s68, %s82
      %p84 = scmp.eq.s32.totalorder %s16, 0
      %p85 = por %p83, %p84
      %s87 = sadd.s32 %s86, 1
      %p90 = scmp.eq.s32.totalorder %s10, 1
      %p91 = scmp.ne.s32.totalorder %s86, %s88
      %p92 = scmp.eq.s32.totalorder %s10, 0
      %p93 = por %p91, %p92
      %p94 = scmp.ne.s32.totalorder %s86, %s88
      %p95 = scmp.eq.s32.totalorder %s15, 1
      %p96 = por %p94, %p95
      %p97 = scmp.ne.s32.totalorder %s88, %s89
      %p98 = scmp.eq.s32.totalorder %s15, 0
      %p99 = por %p97, %p98
      %p100 = scmp.ne.s32.totalorder %s88, %s89
      %p101 = scmp.eq.s32.totalorder %s16, 1
      %p102 = por %p100, %p101
      %p104 = scmp.ne.s32.totalorder %s89, %s103
      %p105 = scmp.eq.s32.totalorder %s16, 0
      %p106 = por %p104, %p105
      %s107 = ssub.s32 %s10, %s17
      %p108 = scmp.eq.s32.totalorder %s107, 0
      %s110 = sadd.s32 %s109, 1
      %s111 = scalar_select %p108, %s109, %s110
      %p114 = pneg %p108
      %p115 = scmp.eq.s32.totalorder %s10, 1
      %p116 = por %p114, %p115
      %p117 = scmp.ne.s32.totalorder %s109, %s112
      %p118 = scmp.eq.s32.totalorder %s10, 0
      %p119 = por %p117, %p118
      %p120 = scmp.ne.s32.totalorder %s109, %s112
      %p121 = scmp.eq.s32.totalorder %s15, 1
      %p122 = por %p120, %p121
      %p123 = scmp.ne.s32.totalorder %s112, %s113
      %p124 = scmp.eq.s32.totalorder %s15, 0
      %p125 = por %p123, %p124
      %p126 = scmp.ne.s32.totalorder %s112, %s113
      %p127 = scmp.eq.s32.totalorder %s16, 1
      %p128 = por %p126, %p127
      %p130 = scmp.ne.s32.totalorder %s113, %s129
      %p131 = scmp.eq.s32.totalorder %s16, 0
      %p132 = por %p130, %p131
      %p133 = scmp.le.s32.totalorder 1, %s10
      %p134 = scmp.lt.s32.totalorder %s10, 3
      %p135 = pnand %p133, %p134
      %p136 = pneg %p135
      // Predicated region
      $region9: #{_lambda_.18} parent=5 // pred_check
        _
      $region10: #{_lambda_.18} parent=5 // pred_check_branch
        %138 = sbr.rel (%p135) target = $region12
      $region11: #{_lambda_.18} parent=5 // pred_region
        %s139 = ssub.s32 %s10, 1
        // Predicated region
        $region13: #{_lambda_.18} parent=11 // pred_check
          %p140 = pneg %p31
        $region14: #{_lambda_.18} parent=11 // pred_check_branch
          %142 = sbr.rel (%p140) target = $region16
        $region15: #{_lambda_.18} parent=11 // pred_region
          _
        $region16: #{_lambda_.18} parent=11 // pred_fallthru
          _
        // Predicated region
        $region17: #{_lambda_.18} parent=11 // pred_check
          %p143 = pneg %p78
        $region18: #{_lambda_.18} parent=11 // pred_check_branch
          %145 = sbr.rel (%p143) target = $region20
        $region19: #{_lambda_.18} parent=11 // pred_region
          _
        $region20: #{_lambda_.18} parent=11 // pred_fallthru
          _
        // Predicated region
        $region21: #{_lambda_.18} parent=11 // pred_check
          %p146 = pneg %p99
        $region22: #{_lambda_.18} parent=11 // pred_check_branch
          %148 = sbr.rel (%p146) target = $region24
        $region23: #{_lambda_.18} parent=11 // pred_region
          _
        $region24: #{_lambda_.18} parent=11 // pred_fallthru
          _
      $region12: #{_lambda_.18} parent=5 // pred_fallthru
        _
      %p149 = scmp.lt.s32.totalorder %s10, 2
      // Predicated region
      $region25: #{_lambda_.18} parent=5 // pred_check
        %p150 = pneg %p149
      $region26: #{_lambda_.18} parent=5 // pred_check_branch
        %152 = sbr.rel (%p150) target = $region28
      $region27: #{_lambda_.18} parent=5 // pred_region
        // Predicated region
        $region29: #{_lambda_.18} parent=27 // pred_check
          %p153 = pneg %p51
        $region30: #{_lambda_.18} parent=27 // pred_check_branch
          %155 = sbr.rel (%p153) target = $region32
        $region31: #{_lambda_.18} parent=27 // pred_region
          %s156 = sand.u32 %s41, 1
          %s157 = sand.u32 %s41, 1
          %s158 = smul.addr %s157, 112
          %s159 = scalar_lea.vmem [#allocation2], %s158
          %s160 = smul.u32 4, %s10
          %s161 = smul.addr %s160, 4
          %s162 = scalar_lea.vmem %s1, %s161
          // Predicated region
          $region33: #{_lambda_.18} parent=31 // pred_check
            _
          $region34: #{_lambda_.18} parent=31 // pred_check_branch
            %164 = sbr.rel (0) target = $region36
          $region35: #{_lambda_.18} parent=31 // pred_region
            // Predicated region
            $region37: #{_lambda_.18} parent=35 // pred_check
              _
            $region38: #{_lambda_.18} parent=35 // pred_check_branch
              %166 = sbr.rel (0) target = $region40
            $region39: #{_lambda_.18} parent=35 // pred_region
              loop: start=0, step=1, limit=1
              $region41: #{_lambda_.18} parent=39 // loop_pre_header
                _
              $region42: #{_lambda_.18} parent=39 // loop_header
                %s168 = sphi 0, %s172
                %p169 = scmp.ge.s32.totalorder %s168, 1
                %s173 = sphi %s162, %s162
                %s174 = sphi %s159, %s159
              $region43: #{_lambda_.18} parent=39 // loop_header_branch
                %171 = sbr.rel (%p169) target = $region47
              $region44: #{_lambda_.18} parent=39 // loop_body
                %v175 = vld [vmem:[%s173] sm:$0xff]
                %176 = vst [vmem:[%s174] sm:$0xff] %v175
                %v177 = vld [vmem:[%s173 + $0x8] sm:$0xff]
                %178 = vst [vmem:[%s174 + $0x8] sm:$0xff] %v177
                %v179 = vld [vmem:[%s173 + $0x20] sm:$0xff]
                %180 = vst [vmem:[%s174 + $0x10] sm:$0xff] %v179
                %v181 = vld [vmem:[%s173 + $0x28] sm:$0xff]
                %182 = vst [vmem:[%s174 + $0x18] sm:$0xff] %v181
                %v183 = vld [vmem:[%s173 + $0x40] sm:$0xff]
                %184 = vst [vmem:[%s174 + $0x20] sm:$0xff] %v183
                %v185 = vld [vmem:[%s173 + $0x48] sm:$0xff]
                %186 = vst [vmem:[%s174 + $0x28] sm:$0xff] %v185
                %v187 = vld [vmem:[%s173 + $0x60] sm:$0xff]
                %188 = vst [vmem:[%s174 + $0x30] sm:$0xff] %v187
                %v189 = vld [vmem:[%s173 + $0x68] sm:$0xff]
                %190 = vst [vmem:[%s174 + $0x38] sm:$0xff] %v189
                %v191 = vld [vmem:[%s173 + $0x80] sm:$0xff]
                %192 = vst [vmem:[%s174 + $0x40] sm:$0xff] %v191
                %v193 = vld [vmem:[%s173 + $0x88] sm:$0xff]
                %194 = vst [vmem:[%s174 + $0x48] sm:$0xff] %v193
                %v195 = vld [vmem:[%s173 + $0xa0] sm:$0xff]
                %196 = vst [vmem:[%s174 + $0x50] sm:$0xff] %v195
                %v197 = vld [vmem:[%s173 + $0xa8] sm:$0xff]
                %198 = vst [vmem:[%s174 + $0x58] sm:$0xff] %v197
                %v199 = vld [vmem:[%s173 + $0xc0] sm:$0xff]
                %200 = vst [vmem:[%s174 + $0x60] sm:$0xff] %v199
                %v201 = vld [vmem:[%s173 + $0xc8] sm:$0xff]
                %202 = vst [vmem:[%s174 + $0x68] sm:$0xff] %v201
              $region45: #{_lambda_.18} parent=39 // loop_footer
                %s172 = sadd.s32 1, %s168
              $region46: #{_lambda_.18} parent=39 // loop_footer_branch
                %167 = sbr.rel target = $region42
              $region47: #{_lambda_.18} parent=39 // loop_exit
                _
            $region40: #{_lambda_.18} parent=35 // pred_fallthru
              _
            // Predicated region
            $region48: #{_lambda_.18} parent=35 // pred_check
              _
            $region49: #{_lambda_.18} parent=35 // pred_check_branch
              %204 = sbr.rel target = $region51
            $region50: #{_lambda_.18} parent=35 // pred_region
              _
            $region51: #{_lambda_.18} parent=35 // pred_fallthru
              _
          $region36: #{_lambda_.18} parent=31 // pred_fallthru
            _
          %205 = vnop
        $region32: #{_lambda_.18} parent=27 // pred_fallthru
          _
      $region28: #{_lambda_.18} parent=5 // pred_fallthru
        _
      %p206 = scmp.le.s32.totalorder 1, %s10
      %p207 = scmp.lt.s32.totalorder %s10, 3
      %p208 = pnand %p206, %p207
      %p209 = pneg %p208
      // Predicated region
      $region52: #{_lambda_.18} parent=5 // pred_check
        _
      $region53: #{_lambda_.18} parent=5 // pred_check_branch
        %211 = sbr.rel (%p208) target = $region55
      $region54: #{_lambda_.18} parent=5 // pred_region
        %s212 = ssub.s32 %s10, 1
        %s213 = sand.u32 %s44, 1
        %s214 = sand.u32 %s44, 1
        %s215 = smul.addr %s214, 112
        %s216 = scalar_lea.vmem [#allocation2], %s215
        // Predicated region
        $region56: #{_lambda_.18} parent=54 // pred_check
          %p217 = pneg %p57
        $region57: #{_lambda_.18} parent=54 // pred_check_branch
          %219 = sbr.rel (%p217) target = $region59
        $region58: #{_lambda_.18} parent=54 // pred_region
          _
        $region59: #{_lambda_.18} parent=54 // pred_fallthru
          _
        %p220 = pneg %p31
        %p221 = pneg %p28
        %s222 = sand.u32 %s44, 1
        %s223 = sand.u32 %s44, 1
        %s224 = smul.addr %s223, 112
        %s225 = scalar_lea.vmem [#allocation2], %s224
        %p226 = pneg %p57
        %p227 = pneg %p54
        %p228 = pneg %p78
        %p229 = pneg %p75
        %p230 = pneg %p99
        %p231 = pneg %p96
        %p232 = pneg %p125
        %p233 = pneg %p122
        %s234 = smul.u32 4, %s15
        %p235 = scmp.lt.s32.totalorder %s234, 7
        %s236 = scalar_select %p235, %s234, 7
        %s237 = smul.addr %s236, 2
        %s238 = scalar_lea.vmem %s4, %s237
        %s239 = smul.u32 4, %s15
        %s240 = smul.u32 4, %s15
        %p241 = scmp.lt.s32.totalorder %s240, 7
        %s242 = scalar_select %p241, %s240, 7
        %s243 = smul.addr %s242, 2
        %s244 = scalar_lea.vmem %s4, %s243
        %s245 = smul.u32 4, %s15
        %v247 = vld [vmem:[%s0] sm:$0x1]
        %v248 = vld [vmem:[%s216] sm:$0xff]
        %v249 = vld [vmem:[%s216 + $0x8] sm:$0xff]
        %v250 = vld [vmem:[%s216 + $0x10] sm:$0xff]
        %v251 = vld [vmem:[%s216 + $0x18] sm:$0xff]
        %v252 = vld [vmem:[%s216 + $0x20] sm:$0xff]
        %v253 = vld [vmem:[%s216 + $0x28] sm:$0xff]
        %v254 = vld [vmem:[%s216 + $0x30] sm:$0xff]
        %v255 = vld [vmem:[%s216 + $0x38] sm:$0xff]
        %v256 = vld [vmem:[%s216 + $0x40] sm:$0xff]
        %v257 = vld [vmem:[%s216 + $0x48] sm:$0xff]
        %v258 = vld [vmem:[%s216 + $0x50] sm:$0xff]
        %v259 = vld [vmem:[%s216 + $0x58] sm:$0xff]
        %v260 = vld [vmem:[%s216 + $0x60] sm:$0x77]
        %v261 = vld [vmem:[%s216 + $0x68] sm:$0x77]
        %v276 = vunpack.c.l.b16 %v248
        %v277 = vunpack.c.h.b16 %v248
        %v278 = vunpack.c.l.b16 %v249
        %v279 = vunpack.c.h.b16 %v249
        %v280 = vunpack.c.l.b16 %v250
        %v281 = vunpack.c.h.b16 %v250
        %v282 = vunpack.c.l.b16 %v251
        %v283 = vunpack.c.h.b16 %v251
        %v284 = vunpack.c.l.b16 %v252
        %v285 = vunpack.c.h.b16 %v252
        %v286 = vunpack.c.l.b16 %v253
        %v287 = vunpack.c.h.b16 %v253
        %v288 = vunpack.c.l.b16 %v254
        %v289 = vunpack.c.h.b16 %v254
        %v290 = vunpack.c.l.b16 %v255
        %v291 = vunpack.c.h.b16 %v255
        %v292 = vunpack.c.l.b16 %v256
        %v293 = vunpack.c.h.b16 %v256
        %v294 = vunpack.c.l.b16 %v257
        %v295 = vunpack.c.h.b16 %v257
        %v296 = vunpack.c.l.b16 %v258
        %v297 = vunpack.c.h.b16 %v258
        %v298 = vunpack.c.l.b16 %v259
        %v299 = vunpack.c.h.b16 %v259
        %v300 = vunpack.c.l.b16 %v260
        %v301 = vunpack.c.h.b16 %v260
        %v302 = vunpack.c.l.b16 %v261
        %v303 = vunpack.c.h.b16 %v261
        %v304 = vpack.c.b16 %v280, %v276
        %v305 = vpack.c.b16 %v281, %v277
        %v306 = vpack.c.b16 %v282, %v278
        %v307 = vpack.c.b16 %v283, %v279
        %v308 = vpack.c.b16 %v288, %v284
        %v309 = vpack.c.b16 %v289, %v285
        %v310 = vpack.c.b16 %v290, %v286
        %v311 = vpack.c.b16 %v291, %v287
        %v312 = vpack.c.b16 %v296, %v292
        %v313 = vpack.c.b16 %v297, %v293
        %v314 = vpack.c.b16 %v298, %v294
        %v315 = vpack.c.b16 %v299, %v295
        %v316 = vpack.c.b16 %v300, %v300
        %v317 = vpack.c.b16 %v301, %v301
        %v318 = vpack.c.b16 %v302, %v302
        %v319 = vpack.c.b16 %v303, %v303
        %vm332 = vcmask 441344
        %v334 = vsel %vm332, %v247, 0
        %vm336 = vcmask 1042432
        %v338 = vsel %vm336, %v316, 0
        %v341 = vsel %vm336, %v317, 0
        %v344 = vsel %vm336, %v318, 0
        %v347 = vsel %vm336, %v319, 0
        %349 = vmatprep.subr.bf16.mxu0 0
        %350 = vmatpush1.bf16.msra.mxu0 0
        %351 = vmatprep.subr.bf16.mxu0 0
        %352 = vmatpush1.bf16.msra.mxu0 0
        %353 = vmatprep.subr.bf16.mxu0 0
        %354 = vmatpush1.bf16.msra.mxu0 0
        %355 = vmatprep.subr.bf16.mxu0 0
        %356 = vmatpush1.bf16.msra.mxu0 0
        %357 = vmatprep.subr.bf16.mxu0 %v341
        %358 = vmatpush1.bf16.msra.mxu0 %v338
        %359 = vmatprep.subr.bf16.mxu0 %v313
        %360 = vmatpush1.bf16.msra.mxu0 %v312
        %361 = vmatprep.subr.bf16.mxu0 %v309
        %362 = vmatpush1.bf16.msra.mxu0 %v308
        %363 = vmatprep.subr.bf16.mxu0 %v305
        %364 = vmatpush1.bf16.msra.mxu0 %v304
        %365 = vmatprep.subr.bf16.mxu0 0
        %366 = vmatpush2.bf16.msra.mxu0 0
        %367 = vmatprep.subr.bf16.mxu0 0
        %368 = vmatpush2.bf16.msra.mxu0 0
        %369 = vmatprep.subr.bf16.mxu0 0
        %370 = vmatpush2.bf16.msra.mxu0 0
        %371 = vmatprep.subr.bf16.mxu0 0
        %372 = vmatpush2.bf16.msra.mxu0 0
        %373 = vmatprep.subr.bf16.mxu0 0
        %374 = vmatpush2.bf16.msra.mxu0 0
        %375 = vmatprep.subr.bf16.mxu0 0
        %376 = vmatpush2.bf16.msra.mxu0 0
        %377 = vmatprep.subr.bf16.mxu0 0
        %378 = vmatpush2.bf16.msra.mxu0 0
        %379 = vmatprep.subr.bf16.mxu0 0
        %380 = vmatpush2.bf16.msra.mxu0 0
        %381 = vmatprep.mubr.bf16.mxu0 0
        %382 = vmatmul.mubr.bf16.gmra.mxu0 %v334
        %v383 = vpop.f32.mrf.mxu0
        %v384 = vadd.f32 0.0, %v383
        %v385 = vpop.f32.mrf.mxu0
        %v386 = vadd.f32 0.0, %v385
        %v387 = vpop.f32.mrf.mxu0
        %v388 = vpop.f32.mrf.mxu0
        %389 = vdwg.mxu0
        %390 = vmatprep.subr.bf16.mxu0 0
        %391 = vmatpush1.bf16.msra.mxu0 0
        %392 = vmatprep.subr.bf16.mxu0 0
        %393 = vmatpush1.bf16.msra.mxu0 0
        %394 = vmatprep.subr.bf16.mxu0 0
        %395 = vmatpush1.bf16.msra.mxu0 0
        %396 = vmatprep.subr.bf16.mxu0 0
        %397 = vmatpush1.bf16.msra.mxu0 0
        %398 = vmatprep.subr.bf16.mxu0 %v347
        %399 = vmatpush1.bf16.msra.mxu0 %v344
        %400 = vmatprep.subr.bf16.mxu0 %v315
        %401 = vmatpush1.bf16.msra.mxu0 %v314
        %402 = vmatprep.subr.bf16.mxu0 %v311
        %403 = vmatpush1.bf16.msra.mxu0 %v310
        %404 = vmatprep.subr.bf16.mxu0 %v307
        %405 = vmatpush1.bf16.msra.mxu0 %v306
        %406 = vmatprep.subr.bf16.mxu0 0
        %407 = vmatpush2.bf16.msra.mxu0 0
        %408 = vmatprep.subr.bf16.mxu0 0
        %409 = vmatpush2.bf16.msra.mxu0 0
        %410 = vmatprep.subr.bf16.mxu0 0
        %411 = vmatpush2.bf16.msra.mxu0 0
        %412 = vmatprep.subr.bf16.mxu0 0
        %413 = vmatpush2.bf16.msra.mxu0 0
        %414 = vmatprep.subr.bf16.mxu0 0
        %415 = vmatpush2.bf16.msra.mxu0 0
        %416 = vmatprep.subr.bf16.mxu0 0
        %417 = vmatpush2.bf16.msra.mxu0 0
        %418 = vmatprep.subr.bf16.mxu0 0
        %419 = vmatpush2.bf16.msra.mxu0 0
        %420 = vmatprep.subr.bf16.mxu0 0
        %421 = vmatpush2.bf16.msra.mxu0 0
        %422 = vmatprep.mubr.bf16.mxu0 0
        %423 = vmatmul.mubr.bf16.gmra.mxu0 %v334
        %v424 = vpop.f32.mrf.mxu0
        %v425 = vadd.f32 0.0, %v424
        %v426 = vpop.f32.mrf.mxu0
        %v427 = vadd.f32 0.0, %v426
        %v428 = vpop.f32.mrf.mxu0
        %v429 = vpop.f32.mrf.mxu0
        %430 = vdwg.mxu0
        %v431 = vld [vmem:[%s2] sm:$0x3]
        %433 = vset.pattern.permute.xlu0 0
        %434 = vperm.xlu0 %433, %v431
        %v435 = vpop.permute.xlu0 %434
        %v437 = vmul.f32 %v384, %v435
        %v438 = vmul.f32 %v386, %v435
        %v439 = vmul.f32 %v425, %v435
        %v440 = vmul.f32 %v427, %v435
        %v441 = vld [vmem:[%s3] sm:$0x3]
        %443 = vset.pattern.permute.xlu0 0
        %444 = vperm.xlu0 %443, %v441
        %v445 = vpop.permute.xlu0 %444
        %v447 = vadd.f32 %v437, %v445
        %v448 = vadd.f32 %v438, %v445
        %v449 = vadd.f32 %v439, %v445
        %v450 = vadd.f32 %v440, %v445
        %v451 = vmax.f32 %v447, 0.0
        %v452 = vmax.f32 %v448, 0.0
        %v453 = vmax.f32 %v449, 0.0
        %v454 = vmax.f32 %v450, 0.0
        %v459 = vcombine.low %v451, %v452
        %v460 = vcombine.low %v453, %v454
        %v462 = vunpack.c.l.s4 1983009808
        %v463 = vunpack.c.0.s8 %v462
        %v464 = vlaneseq
        %v465 = vshrl.u32 %v464, 7
        %v466 = vsub.s32 %v463, %v465
        %v467 = vrot.slane %v459, %v466
        %v469 = vunpack.c.l.s4 1983009808
        %v470 = vunpack.c.0.s8 %v469
        %v471 = vlaneseq
        %v472 = vshrl.u32 %v471, 7
        %v473 = vsub.s32 %v470, %v472
        %v474 = vrot.slane %v460, %v473
        %v475 = vcombine.low %v467, %v474
        %477 = vst [vmem:[%s244] sm:$0xff] %v475
        %s478 = smul.u32 4, %s15
        %p479 = scmp.lt.s32.totalorder %s478, 7
        %s480 = scalar_select %p479, %s478, 7
        %s481 = smul.addr %s480, 2
        %s482 = scalar_lea.vmem %s4, %s481
        // Predicated region
        $region60: #{_lambda_.18} parent=54 // pred_check
          %p483 = pneg %p122
        $region61: #{_lambda_.18} parent=54 // pred_check_branch
          %485 = sbr.rel (%p483) target = $region63
        $region62: #{_lambda_.18} parent=54 // pred_region
          %s486 = smul.u32 4, %s15
        $region63: #{_lambda_.18} parent=54 // pred_fallthru
          _
      $region55: #{_lambda_.18} parent=5 // pred_fallthru
        _
      %p487 = scmp.le.s32.totalorder 2, %s10
      // Predicated region
      $region64: #{_lambda_.18} parent=5 // pred_check
        %p488 = pneg %p487
      $region65: #{_lambda_.18} parent=5 // pred_check_branch
        %490 = sbr.rel (%p488) target = $region67
      $region66: #{_lambda_.18} parent=5 // pred_region
        %s491 = ssub.s32 %s10, 2
        // Predicated region
        $region68: #{_lambda_.18} parent=66 // pred_check
          %p492 = pneg %p128
        $region69: #{_lambda_.18} parent=66 // pred_check_branch
          %494 = sbr.rel (%p492) target = $region71
        $region70: #{_lambda_.18} parent=66 // pred_region
          %s495 = smul.u32 4, %s16
          %p496 = scmp.lt.s32.totalorder %s495, 7
          %s497 = scalar_select %p496, %s495, 7
          %s498 = smul.addr %s497, 2
          %s499 = scalar_lea.vmem %s4, %s498
        $region71: #{_lambda_.18} parent=66 // pred_fallthru
          _
      $region67: #{_lambda_.18} parent=5 // pred_fallthru
        _
    $region6: #{_lambda_.18} parent=1 // loop_footer
      %s14 = sadd.s32 1, %s10
    $region7: #{_lambda_.18} parent=1 // loop_footer_branch
      %9 = sbr.rel target = $region3
    $region8: #{_lambda_.18} parent=1 // loop_exit
      _

// kernel: _lambda_.19
$region0: #{_lambda_.19}
  #allocation0 [shape = 'u32[]', space=smem, size = 0x4, offset = 0x4, fixed_abs, tag = 'smem constant byte address 0x4 - core index']
  #allocation1 [shape = 'u32[144,128]{1,0:T(1,128)}', space=vmem, size = 0x12000, scoped, tag = 'internal scratch']
  %s0 = inlined_call_operand.vmem [shape: bf16[4,54], index: 0, kind: input, shape index: {}]
  %s1 = inlined_call_operand.vmem [shape: bf16[54,1024], index: 1, kind: input, shape index: {}]
  %s2 = inlined_call_operand.vmem [shape: f32[4,1], index: 2, kind: input, shape index: {}]
  %s3 = inlined_call_operand.vmem [shape: f32[4,1], index: 3, kind: input, shape index: {}]
  %s4 = inlined_call_operand.vmem [shape: f32[4,1024], index: 4, kind: output, shape index: {}]
  %s5 = sld [smem:[#allocation0]]
  $region72: #{_lambda_.19} parent=0
    _
  %s7 = ssub.s32 1, %s5
  %s8 = scalar_select 0, %s7, %s5
  $region1: #{_lambda_.19} parent=0
    #allocation2 [shape = 'u8[114688]{0}', space=vmem, size = 0x1c000, scoped, tag = 'input window, operand 1']
    loop: start=0, step=1, limit=4
    $region2: #{_lambda_.19} parent=1 // loop_pre_header
      _
    $region3: #{_lambda_.19} parent=1 // loop_header
      %s10 = sphi 0, %s14
      %p11 = scmp.ge.s32.totalorder %s10, 4
      %s18 = sphi 0, %s18
      %s20 = sphi 0, %s18
      %s21 = sphi 0, %s20
      %s35 = sphi 0, %s21
      %s41 = sphi 0, %s43
      %s44 = sphi 0, %s41
      %s45 = sphi 0, %s44
      %s61 = sphi 0, %s45
      %s65 = sphi 0, %s65
      %s67 = sphi 0, %s65
      %s68 = sphi 0, %s67
      %s82 = sphi 0, %s68
      %s86 = sphi 0, %s86
      %s88 = sphi 0, %s86
      %s89 = sphi 0, %s88
      %s103 = sphi 0, %s89
      %s109 = sphi 0, %s111
      %s112 = sphi 0, %s109
      %s113 = sphi 0, %s112
      %s129 = sphi 0, %s113
    $region4: #{_lambda_.19} parent=1 // loop_header_branch
      %13 = sbr.rel (%p11) target = $region8
    $region5: #{_lambda_.19} parent=1 // loop_body
      %s15 = ssub.s32 %s10, 1
      %s16 = ssub.s32 %s10, 2
      %s17 = sadd.s32 %s10, 1
      %s19 = sadd.s32 %s18, 1
      %p22 = scmp.eq.s32.totalorder %s10, 1
      %p23 = scmp.ne.s32.totalorder %s18, %s20
      %p24 = scmp.eq.s32.totalorder %s10, 0
      %p25 = por %p23, %p24
      %p26 = scmp.ne.s32.totalorder %s18, %s20
      %p27 = scmp.eq.s32.totalorder %s15, 1
      %p28 = por %p26, %p27
      %p29 = scmp.ne.s32.totalorder %s20, %s21
      %p30 = scmp.eq.s32.totalorder %s15, 0
      %p31 = por %p29, %p30
      %p32 = scmp.ne.s32.totalorder %s20, %s21
      %p33 = scmp.eq.s32.totalorder %s16, 1
      %p34 = por %p32, %p33
      %p36 = scmp.ne.s32.totalorder %s21, %s35
      %p37 = scmp.eq.s32.totalorder %s16, 0
      %p38 = por %p36, %p37
      %s39 = ssub.s32 %s10, %s17
      %p40 = scmp.eq.s32.totalorder %s39, 0
      %s42 = sadd.s32 %s41, 1
      %s43 = scalar_select %p40, %s41, %s42
      %p46 = pneg %p40
      %p47 = scmp.eq.s32.totalorder %s10, 1
      %p48 = por %p46, %p47
      %p49 = scmp.ne.s32.totalorder %s41, %s44
      %p50 = scmp.eq.s32.totalorder %s10, 0
      %p51 = por %p49, %p50
      %p52 = scmp.ne.s32.totalorder %s41, %s44
      %p53 = scmp.eq.s32.totalorder %s15, 1
      %p54 = por %p52, %p53
      %p55 = scmp.ne.s32.totalorder %s44, %s45
      %p56 = scmp.eq.s32.totalorder %s15, 0
      %p57 = por %p55, %p56
      %p58 = scmp.ne.s32.totalorder %s44, %s45
      %p59 = scmp.eq.s32.totalorder %s16, 1
      %p60 = por %p58, %p59
      %p62 = scmp.ne.s32.totalorder %s45, %s61
      %p63 = scmp.eq.s32.totalorder %s16, 0
      %p64 = por %p62, %p63
      %s66 = sadd.s32 %s65, 1
      %p69 = scmp.eq.s32.totalorder %s10, 1
      %p70 = scmp.ne.s32.totalorder %s65, %s67
      %p71 = scmp.eq.s32.totalorder %s10, 0
      %p72 = por %p70, %p71
      %p73 = scmp.ne.s32.totalorder %s65, %s67
      %p74 = scmp.eq.s32.totalorder %s15, 1
      %p75 = por %p73, %p74
      %p76 = scmp.ne.s32.totalorder %s67, %s68
      %p77 = scmp.eq.s32.totalorder %s15, 0
      %p78 = por %p76, %p77
      %p79 = scmp.ne.s32.totalorder %s67, %s68
      %p80 = scmp.eq.s32.totalorder %s16, 1
      %p81 = por %p79, %p80
      %p83 = scmp.ne.s32.totalorder %s68, %s82
      %p84 = scmp.eq.s32.totalorder %s16, 0
      %p85 = por %p83, %p84
      %s87 = sadd.s32 %s86, 1
      %p90 = scmp.eq.s32.totalorder %s10, 1
      %p91 = scmp.ne.s32.totalorder %s86, %s88
      %p92 = scmp.eq.s32.totalorder %s10, 0
      %p93 = por %p91, %p92
      %p94 = scmp.ne.s32.totalorder %s86, %s88
      %p95 = scmp.eq.s32.totalorder %s15, 1
      %p96 = por %p94, %p95
      %p97 = scmp.ne.s32.totalorder %s88, %s89
      %p98 = scmp.eq.s32.totalorder %s15, 0
      %p99 = por %p97, %p98
      %p100 = scmp.ne.s32.totalorder %s88, %s89
      %p101 = scmp.eq.s32.totalorder %s16, 1
      %p102 = por %p100, %p101
      %p104 = scmp.ne.s32.totalorder %s89, %s103
      %p105 = scmp.eq.s32.totalorder %s16, 0
      %p106 = por %p104, %p105
      %s107 = ssub.s32 %s10, %s17
      %p108 = scmp.eq.s32.totalorder %s107, 0
      %s110 = sadd.s32 %s109, 1
      %s111 = scalar_select %p108, %s109, %s110
      %p114 = pneg %p108
      %p115 = scmp.eq.s32.totalorder %s10, 1
      %p116 = por %p114, %p115
      %p117 = scmp.ne.s32.totalorder %s109, %s112
      %p118 = scmp.eq.s32.totalorder %s10, 0
      %p119 = por %p117, %p118
      %p120 = scmp.ne.s32.totalorder %s109, %s112
      %p121 = scmp.eq.s32.totalorder %s15, 1
      %p122 = por %p120, %p121
      %p123 = scmp.ne.s32.totalorder %s112, %s113
      %p124 = scmp.eq.s32.totalorder %s15, 0
      %p125 = por %p123, %p124
      %p126 = scmp.ne.s32.totalorder %s112, %s113
      %p127 = scmp.eq.s32.totalorder %s16, 1
      %p128 = por %p126, %p127
      %p130 = scmp.ne.s32.totalorder %s113, %s129
      %p131 = scmp.eq.s32.totalorder %s16, 0
      %p132 = por %p130, %p131
      %p133 = scmp.le.s32.totalorder 1, %s10
      %p134 = scmp.lt.s32.totalorder %s10, 3
      %p135 = pnand %p133, %p134
      %p136 = pneg %p135
      // Predicated region
      $region9: #{_lambda_.19} parent=5 // pred_check
        _
      $region10: #{_lambda_.19} parent=5 // pred_check_branch
        %138 = sbr.rel (%p135) target = $region12
      $region11: #{_lambda_.19} parent=5 // pred_region
        %s139 = ssub.s32 %s10, 1
        // Predicated region
        $region13: #{_lambda_.19} parent=11 // pred_check
          %p140 = pneg %p31
        $region14: #{_lambda_.19} parent=11 // pred_check_branch
          %142 = sbr.rel (%p140) target = $region16
        $region15: #{_lambda_.19} parent=11 // pred_region
          _
        $region16: #{_lambda_.19} parent=11 // pred_fallthru
          _
        // Predicated region
        $region17: #{_lambda_.19} parent=11 // pred_check
          %p143 = pneg %p78
        $region18: #{_lambda_.19} parent=11 // pred_check_branch
          %145 = sbr.rel (%p143) target = $region20
        $region19: #{_lambda_.19} parent=11 // pred_region
          _
        $region20: #{_lambda_.19} parent=11 // pred_fallthru
          _
        // Predicated region
        $region21: #{_lambda_.19} parent=11 // pred_check
          %p146 = pneg %p99
        $region22: #{_lambda_.19} parent=11 // pred_check_branch
          %148 = sbr.rel (%p146) target = $region24
        $region23: #{_lambda_.19} parent=11 // pred_region
          _
        $region24: #{_lambda_.19} parent=11 // pred_fallthru
          _
      $region12: #{_lambda_.19} parent=5 // pred_fallthru
        _
      %p149 = scmp.lt.s32.totalorder %s10, 2
      // Predicated region
      $region25: #{_lambda_.19} parent=5 // pred_check
        %p150 = pneg %p149
      $region26: #{_lambda_.19} parent=5 // pred_check_branch
        %152 = sbr.rel (%p150) target = $region28
      $region27: #{_lambda_.19} parent=5 // pred_region
        // Predicated region
        $region29: #{_lambda_.19} parent=27 // pred_check
          %p153 = pneg %p51
        $region30: #{_lambda_.19} parent=27 // pred_check_branch
          %155 = sbr.rel (%p153) target = $region32
        $region31: #{_lambda_.19} parent=27 // pred_region
          %s156 = sand.u32 %s41, 1
          %s157 = sand.u32 %s41, 1
          %s158 = smul.addr %s157, 112
          %s159 = scalar_lea.vmem [#allocation2], %s158
          %s160 = smul.u32 4, %s10
          %s161 = smul.addr %s160, 4
          %s162 = scalar_lea.vmem %s1, %s161
          // Predicated region
          $region33: #{_lambda_.19} parent=31 // pred_check
            _
          $region34: #{_lambda_.19} parent=31 // pred_check_branch
            %164 = sbr.rel (0) target = $region36
          $region35: #{_lambda_.19} parent=31 // pred_region
            // Predicated region
            $region37: #{_lambda_.19} parent=35 // pred_check
              _
            $region38: #{_lambda_.19} parent=35 // pred_check_branch
              %166 = sbr.rel (0) target = $region40
            $region39: #{_lambda_.19} parent=35 // pred_region
              loop: start=0, step=1, limit=1
              $region41: #{_lambda_.19} parent=39 // loop_pre_header
                _
              $region42: #{_lambda_.19} parent=39 // loop_header
                %s168 = sphi 0, %s172
                %p169 = scmp.ge.s32.totalorder %s168, 1
                %s173 = sphi %s162, %s162
                %s174 = sphi %s159, %s159
              $region43: #{_lambda_.19} parent=39 // loop_header_branch
                %171 = sbr.rel (%p169) target = $region47
              $region44: #{_lambda_.19} parent=39 // loop_body
                %v175 = vld [vmem:[%s173] sm:$0xff]
                %176 = vst [vmem:[%s174] sm:$0xff] %v175
                %v177 = vld [vmem:[%s173 + $0x8] sm:$0xff]
                %178 = vst [vmem:[%s174 + $0x8] sm:$0xff] %v177
                %v179 = vld [vmem:[%s173 + $0x20] sm:$0xff]
                %180 = vst [vmem:[%s174 + $0x10] sm:$0xff] %v179
                %v181 = vld [vmem:[%s173 + $0x28] sm:$0xff]
                %182 = vst [vmem:[%s174 + $0x18] sm:$0xff] %v181
                %v183 = vld [vmem:[%s173 + $0x40] sm:$0xff]
                %184 = vst [vmem:[%s174 + $0x20] sm:$0xff] %v183
                %v185 = vld [vmem:[%s173 + $0x48] sm:$0xff]
                %186 = vst [vmem:[%s174 + $0x28] sm:$0xff] %v185
                %v187 = vld [vmem:[%s173 + $0x60] sm:$0xff]
                %188 = vst [vmem:[%s174 + $0x30] sm:$0xff] %v187
                %v189 = vld [vmem:[%s173 + $0x68] sm:$0xff]
                %190 = vst [vmem:[%s174 + $0x38] sm:$0xff] %v189
                %v191 = vld [vmem:[%s173 + $0x80] sm:$0xff]
                %192 = vst [vmem:[%s174 + $0x40] sm:$0xff] %v191
                %v193 = vld [vmem:[%s173 + $0x88] sm:$0xff]
                %194 = vst [vmem:[%s174 + $0x48] sm:$0xff] %v193
                %v195 = vld [vmem:[%s173 + $0xa0] sm:$0xff]
                %196 = vst [vmem:[%s174 + $0x50] sm:$0xff] %v195
                %v197 = vld [vmem:[%s173 + $0xa8] sm:$0xff]
                %198 = vst [vmem:[%s174 + $0x58] sm:$0xff] %v197
                %v199 = vld [vmem:[%s173 + $0xc0] sm:$0xff]
                %200 = vst [vmem:[%s174 + $0x60] sm:$0xff] %v199
                %v201 = vld [vmem:[%s173 + $0xc8] sm:$0xff]
                %202 = vst [vmem:[%s174 + $0x68] sm:$0xff] %v201
              $region45: #{_lambda_.19} parent=39 // loop_footer
                %s172 = sadd.s32 1, %s168
              $region46: #{_lambda_.19} parent=39 // loop_footer_branch
                %167 = sbr.rel target = $region42
              $region47: #{_lambda_.19} parent=39 // loop_exit
                _
            $region40: #{_lambda_.19} parent=35 // pred_fallthru
              _
            // Predicated region
            $region48: #{_lambda_.19} parent=35 // pred_check
              _
            $region49: #{_lambda_.19} parent=35 // pred_check_branch
              %204 = sbr.rel target = $region51
            $region50: #{_lambda_.19} parent=35 // pred_region
              _
            $region51: #{_lambda_.19} parent=35 // pred_fallthru
              _
          $region36: #{_lambda_.19} parent=31 // pred_fallthru
            _
          %205 = vnop
        $region32: #{_lambda_.19} parent=27 // pred_fallthru
          _
      $region28: #{_lambda_.19} parent=5 // pred_fallthru
        _
      %p206 = scmp.le.s32.totalorder 1, %s10
      %p207 = scmp.lt.s32.totalorder %s10, 3
      %p208 = pnand %p206, %p207
      %p209 = pneg %p208
      // Predicated region
      $region52: #{_lambda_.19} parent=5 // pred_check
        _
      $region53: #{_lambda_.19} parent=5 // pred_check_branch
        %211 = sbr.rel (%p208) target = $region55
      $region54: #{_lambda_.19} parent=5 // pred_region
        %s212 = ssub.s32 %s10, 1
        %s213 = sand.u32 %s44, 1
        %s214 = sand.u32 %s44, 1
        %s215 = smul.addr %s214, 112
        %s216 = scalar_lea.vmem [#allocation2], %s215
        // Predicated region
        $region56: #{_lambda_.19} parent=54 // pred_check
          %p217 = pneg %p57
        $region57: #{_lambda_.19} parent=54 // pred_check_branch
          %219 = sbr.rel (%p217) target = $region59
        $region58: #{_lambda_.19} parent=54 // pred_region
          _
        $region59: #{_lambda_.19} parent=54 // pred_fallthru
          _
        %p220 = pneg %p31
        %p221 = pneg %p28
        %s222 = sand.u32 %s44, 1
        %s223 = sand.u32 %s44, 1
        %s224 = smul.addr %s223, 112
        %s225 = scalar_lea.vmem [#allocation2], %s224
        %p226 = pneg %p57
        %p227 = pneg %p54
        %p228 = pneg %p78
        %p229 = pneg %p75
        %p230 = pneg %p99
        %p231 = pneg %p96
        %p232 = pneg %p125
        %p233 = pneg %p122
        %s234 = smul.u32 4, %s15
        %p235 = scmp.lt.s32.totalorder %s234, 7
        %s236 = scalar_select %p235, %s234, 7
        %s237 = smul.addr %s236, 4
        %s238 = scalar_lea.vmem %s4, %s237
        %s239 = smul.u32 4, %s15
        %s240 = smul.u32 4, %s15
        %p241 = scmp.lt.s32.totalorder %s240, 7
        %s242 = scalar_select %p241, %s240, 7
        %s243 = smul.addr %s242, 4
        %s244 = scalar_lea.vmem %s4, %s243
        %s245 = smul.u32 4, %s15
        %v247 = vld [vmem:[%s0] sm:$0x3]
        %v248 = vld [vmem:[%s216] sm:$0xff]
        %v249 = vld [vmem:[%s216 + $0x8] sm:$0xff]
        %v250 = vld [vmem:[%s216 + $0x10] sm:$0xff]
        %v251 = vld [vmem:[%s216 + $0x18] sm:$0xff]
        %v252 = vld [vmem:[%s216 + $0x20] sm:$0xff]
        %v253 = vld [vmem:[%s216 + $0x28] sm:$0xff]
        %v254 = vld [vmem:[%s216 + $0x30] sm:$0xff]
        %v255 = vld [vmem:[%s216 + $0x38] sm:$0xff]
        %v256 = vld [vmem:[%s216 + $0x40] sm:$0xff]
        %v257 = vld [vmem:[%s216 + $0x48] sm:$0xff]
        %v258 = vld [vmem:[%s216 + $0x50] sm:$0xff]
        %v259 = vld [vmem:[%s216 + $0x58] sm:$0xff]
        %v260 = vld [vmem:[%s216 + $0x60] sm:$0x77]
        %v261 = vld [vmem:[%s216 + $0x68] sm:$0x77]
        %v276 = vunpack.c.l.b16 %v248
        %v277 = vunpack.c.h.b16 %v248
        %v278 = vunpack.c.l.b16 %v249
        %v279 = vunpack.c.h.b16 %v249
        %v280 = vunpack.c.l.b16 %v250
        %v281 = vunpack.c.h.b16 %v250
        %v282 = vunpack.c.l.b16 %v251
        %v283 = vunpack.c.h.b16 %v251
        %v284 = vunpack.c.l.b16 %v252
        %v285 = vunpack.c.h.b16 %v252
        %v286 = vunpack.c.l.b16 %v253
        %v287 = vunpack.c.h.b16 %v253
        %v288 = vunpack.c.l.b16 %v254
        %v289 = vunpack.c.h.b16 %v254
        %v290 = vunpack.c.l.b16 %v255
        %v291 = vunpack.c.h.b16 %v255
        %v292 = vunpack.c.l.b16 %v256
        %v293 = vunpack.c.h.b16 %v256
        %v294 = vunpack.c.l.b16 %v257
        %v295 = vunpack.c.h.b16 %v257
        %v296 = vunpack.c.l.b16 %v258
        %v297 = vunpack.c.h.b16 %v258
        %v298 = vunpack.c.l.b16 %v259
        %v299 = vunpack.c.h.b16 %v259
        %v300 = vunpack.c.l.b16 %v260
        %v301 = vunpack.c.h.b16 %v260
        %v302 = vunpack.c.l.b16 %v261
        %v303 = vunpack.c.h.b16 %v261
        %v304 = vpack.c.b16 %v280, %v276
        %v305 = vpack.c.b16 %v281, %v277
        %v306 = vpack.c.b16 %v282, %v278
        %v307 = vpack.c.b16 %v283, %v279
        %v308 = vpack.c.b16 %v288, %v284
        %v309 = vpack.c.b16 %v289, %v285
        %v310 = vpack.c.b16 %v290, %v286
        %v311 = vpack.c.b16 %v291, %v287
        %v312 = vpack.c.b16 %v296, %v292
        %v313 = vpack.c.b16 %v297, %v293
        %v314 = vpack.c.b16 %v298, %v294
        %v315 = vpack.c.b16 %v299, %v295
        %v316 = vpack.c.b16 %v300, %v300
        %v317 = vpack.c.b16 %v301, %v301
        %v318 = vpack.c.b16 %v302, %v302
        %v319 = vpack.c.b16 %v303, %v303
        %vm332 = vcmask 441344
        %v334 = vsel %vm332, %v247, 0
        %vm336 = vcmask 1042432
        %v338 = vsel %vm336, %v316, 0
        %v341 = vsel %vm336, %v317, 0
        %v344 = vsel %vm336, %v318, 0
        %v347 = vsel %vm336, %v319, 0
        %349 = vmatprep.subr.bf16.mxu0 0
        %350 = vmatpush1.bf16.msra.mxu0 0
        %351 = vmatprep.subr.bf16.mxu0 0
        %352 = vmatpush1.bf16.msra.mxu0 0
        %353 = vmatprep.subr.bf16.mxu0 0
        %354 = vmatpush1.bf16.msra.mxu0 0
        %355 = vmatprep.subr.bf16.mxu0 0
        %356 = vmatpush1.bf16.msra.mxu0 0
        %357 = vmatprep.subr.bf16.mxu0 %v341
        %358 = vmatpush1.bf16.msra.mxu0 %v338
        %359 = vmatprep.subr.bf16.mxu0 %v313
        %360 = vmatpush1.bf16.msra.mxu0 %v312
        %361 = vmatprep.subr.bf16.mxu0 %v309
        %362 = vmatpush1.bf16.msra.mxu0 %v308
        %363 = vmatprep.subr.bf16.mxu0 %v305
        %364 = vmatpush1.bf16.msra.mxu0 %v304
        %365 = vmatprep.subr.bf16.mxu0 0
        %366 = vmatpush2.bf16.msra.mxu0 0
        %367 = vmatprep.subr.bf16.mxu0 0
        %368 = vmatpush2.bf16.msra.mxu0 0
        %369 = vmatprep.subr.bf16.mxu0 0
        %370 = vmatpush2.bf16.msra.mxu0 0
        %371 = vmatprep.subr.bf16.mxu0 0
        %372 = vmatpush2.bf16.msra.mxu0 0
        %373 = vmatprep.subr.bf16.mxu0 0
        %374 = vmatpush2.bf16.msra.mxu0 0
        %375 = vmatprep.subr.bf16.mxu0 0
        %376 = vmatpush2.bf16.msra.mxu0 0
        %377 = vmatprep.subr.bf16.mxu0 0
        %378 = vmatpush2.bf16.msra.mxu0 0
        %379 = vmatprep.subr.bf16.mxu0 0
        %380 = vmatpush2.bf16.msra.mxu0 0
        %381 = vmatprep.mubr.bf16.mxu0 0
        %382 = vmatmul.mubr.bf16.gmra.mxu0 %v334
        %v383 = vpop.f32.mrf.mxu0
        %v384 = vadd.f32 0.0, %v383
        %v385 = vpop.f32.mrf.mxu0
        %v386 = vadd.f32 0.0, %v385
        %v387 = vpop.f32.mrf.mxu0
        %v388 = vpop.f32.mrf.mxu0
        %389 = vdwg.mxu0
        %390 = vmatprep.subr.bf16.mxu0 0
        %391 = vmatpush1.bf16.msra.mxu0 0
        %392 = vmatprep.subr.bf16.mxu0 0
        %393 = vmatpush1.bf16.msra.mxu0 0
        %394 = vmatprep.subr.bf16.mxu0 0
        %395 = vmatpush1.bf16.msra.mxu0 0
        %396 = vmatprep.subr.bf16.mxu0 0
        %397 = vmatpush1.bf16.msra.mxu0 0
        %398 = vmatprep.subr.bf16.mxu0 %v347
        %399 = vmatpush1.bf16.msra.mxu0 %v344
        %400 = vmatprep.subr.bf16.mxu0 %v315
        %401 = vmatpush1.bf16.msra.mxu0 %v314
        %402 = vmatprep.subr.bf16.mxu0 %v311
        %403 = vmatpush1.bf16.msra.mxu0 %v310
        %404 = vmatprep.subr.bf16.mxu0 %v307
        %405 = vmatpush1.bf16.msra.mxu0 %v306
        %406 = vmatprep.subr.bf16.mxu0 0
        %407 = vmatpush2.bf16.msra.mxu0 0
        %408 = vmatprep.subr.bf16.mxu0 0
        %409 = vmatpush2.bf16.msra.mxu0 0
        %410 = vmatprep.subr.bf16.mxu0 0
        %411 = vmatpush2.bf16.msra.mxu0 0
        %412 = vmatprep.subr.bf16.mxu0 0
        %413 = vmatpush2.bf16.msra.mxu0 0
        %414 = vmatprep.subr.bf16.mxu0 0
        %415 = vmatpush2.bf16.msra.mxu0 0
        %416 = vmatprep.subr.bf16.mxu0 0
        %417 = vmatpush2.bf16.msra.mxu0 0
        %418 = vmatprep.subr.bf16.mxu0 0
        %419 = vmatpush2.bf16.msra.mxu0 0
        %420 = vmatprep.subr.bf16.mxu0 0
        %421 = vmatpush2.bf16.msra.mxu0 0
        %422 = vmatprep.mubr.bf16.mxu0 0
        %423 = vmatmul.mubr.bf16.gmra.mxu0 %v334
        %v424 = vpop.f32.mrf.mxu0
        %v425 = vadd.f32 0.0, %v424
        %v426 = vpop.f32.mrf.mxu0
        %v427 = vadd.f32 0.0, %v426
        %v428 = vpop.f32.mrf.mxu0
        %v429 = vpop.f32.mrf.mxu0
        %430 = vdwg.mxu0
        %v431 = vld [vmem:[%s2] sm:$0xf]
        %433 = vset.pattern.permute.xlu0 0
        %434 = vperm.xlu0 %433, %v431
        %v435 = vpop.permute.xlu0 %434
        %v437 = vmul.f32 %v384, %v435
        %v438 = vmul.f32 %v386, %v435
        %v439 = vmul.f32 %v425, %v435
        %v440 = vmul.f32 %v427, %v435
        %v441 = vld [vmem:[%s3] sm:$0xf]
        %443 = vset.pattern.permute.xlu0 0
        %444 = vperm.xlu0 %443, %v441
        %v445 = vpop.permute.xlu0 %444
        %v447 = vadd.f32 %v437, %v445
        %v448 = vadd.f32 %v438, %v445
        %v449 = vadd.f32 %v439, %v445
        %v450 = vadd.f32 %v440, %v445
        %v451 = vmax.f32 %v447, 0.0
        %v452 = vmax.f32 %v448, 0.0
        %v453 = vmax.f32 %v449, 0.0
        %v454 = vmax.f32 %v450, 0.0
        %v459 = vcombine.low %v451, %v452
        %v460 = vcombine.low %v453, %v454
        %463 = vst [vmem:[%s244] sm:$0xff] %v459
        %464 = vst [vmem:[%s244 + $0x8] sm:$0xff] %v460
        %s465 = smul.u32 4, %s15
        %p466 = scmp.lt.s32.totalorder %s465, 7
        %s467 = scalar_select %p466, %s465, 7
        %s468 = smul.addr %s467, 4
        %s469 = scalar_lea.vmem %s4, %s468
        // Predicated region
        $region60: #{_lambda_.19} parent=54 // pred_check
          %p470 = pneg %p122
        $region61: #{_lambda_.19} parent=54 // pred_check_branch
          %472 = sbr.rel (%p470) target = $region63
        $region62: #{_lambda_.19} parent=54 // pred_region
          %s473 = smul.u32 4, %s15
        $region63: #{_lambda_.19} parent=54 // pred_fallthru
          _
      $region55: #{_lambda_.19} parent=5 // pred_fallthru
        _
      %p474 = scmp.le.s32.totalorder 2, %s10
      // Predicated region
      $region64: #{_lambda_.19} parent=5 // pred_check
        %p475 = pneg %p474
      $region65: #{_lambda_.19} parent=5 // pred_check_branch
        %477 = sbr.rel (%p475) target = $region67
      $region66: #{_lambda_.19} parent=5 // pred_region
        %s478 = ssub.s32 %s10, 2
        // Predicated region
        $region68: #{_lambda_.19} parent=66 // pred_check
          %p479 = pneg %p128
        $region69: #{_lambda_.19} parent=66 // pred_check_branch
          %481 = sbr.rel (%p479) target = $region71
        $region70: #{_lambda_.19} parent=66 // pred_region
          %s482 = smul.u32 4, %s16
          %p483 = scmp.lt.s32.totalorder %s482, 7
          %s484 = scalar_select %p483, %s482, 7
          %s485 = smul.addr %s484, 4
          %s486 = scalar_lea.vmem %s4, %s485
        $region71: #{_lambda_.19} parent=66 // pred_fallthru
          _
      $region67: #{_lambda_.19} parent=5 // pred_fallthru
        _
    $region6: #{_lambda_.19} parent=1 // loop_footer
      %s14 = sadd.s32 1, %s10
    $region7: #{_lambda_.19} parent=1 // loop_footer_branch
      %9 = sbr.rel target = $region3
    $region8: #{_lambda_.19} parent=1 // loop_exit
      _

// kernel: _lambda_.20
$region0: #{_lambda_.20}
  #allocation0 [shape = 'u32[]', space=smem, size = 0x4, offset = 0x4, fixed_abs, tag = 'smem constant byte address 0x4 - core index']
  #allocation1 [shape = 'u32[144,128]{1,0:T(1,128)}', space=vmem, size = 0x12000, scoped, tag = 'internal scratch']
  %s0 = inlined_call_operand.vmem [shape: bf16[4,108], index: 0, kind: input, shape index: {}]
  %s1 = inlined_call_operand.vmem [shape: bf16[108,1024], index: 1, kind: input, shape index: {}]
  %s2 = inlined_call_operand.vmem [shape: f32[4,1], index: 2, kind: input, shape index: {}]
  %s3 = inlined_call_operand.vmem [shape: f32[4,1], index: 3, kind: input, shape index: {}]
  %s4 = inlined_call_operand.vmem [shape: f32[4,1024], index: 4, kind: output, shape index: {}]
  %s5 = sld [smem:[#allocation0]]
  $region72: #{_lambda_.20} parent=0
    _
  %s7 = ssub.s32 1, %s5
  %s8 = scalar_select 0, %s7, %s5
  $region1: #{_lambda_.20} parent=0
    #allocation2 [shape = 'u8[229376]{0}', space=vmem, size = 0x38000, scoped, tag = 'input window, operand 1']
    loop: start=0, step=1, limit=4
    $region2: #{_lambda_.20} parent=1 // loop_pre_header
      _
    $region3: #{_lambda_.20} parent=1 // loop_header
      %s10 = sphi 0, %s14
      %p11 = scmp.ge.s32.totalorder %s10, 4
      %s18 = sphi 0, %s18
      %s20 = sphi 0, %s18
      %s21 = sphi 0, %s20
      %s35 = sphi 0, %s21
      %s41 = sphi 0, %s43
      %s44 = sphi 0, %s41
      %s45 = sphi 0, %s44
      %s61 = sphi 0, %s45
      %s65 = sphi 0, %s65
      %s67 = sphi 0, %s65
      %s68 = sphi 0, %s67
      %s82 = sphi 0, %s68
      %s86 = sphi 0, %s86
      %s88 = sphi 0, %s86
      %s89 = sphi 0, %s88
      %s103 = sphi 0, %s89
      %s109 = sphi 0, %s111
      %s112 = sphi 0, %s109
      %s113 = sphi 0, %s112
      %s129 = sphi 0, %s113
    $region4: #{_lambda_.20} parent=1 // loop_header_branch
      %13 = sbr.rel (%p11) target = $region8
    $region5: #{_lambda_.20} parent=1 // loop_body
      %s15 = ssub.s32 %s10, 1
      %s16 = ssub.s32 %s10, 2
      %s17 = sadd.s32 %s10, 1
      %s19 = sadd.s32 %s18, 1
      %p22 = scmp.eq.s32.totalorder %s10, 1
      %p23 = scmp.ne.s32.totalorder %s18, %s20
      %p24 = scmp.eq.s32.totalorder %s10, 0
      %p25 = por %p23, %p24
      %p26 = scmp.ne.s32.totalorder %s18, %s20
      %p27 = scmp.eq.s32.totalorder %s15, 1
      %p28 = por %p26, %p27
      %p29 = scmp.ne.s32.totalorder %s20, %s21
      %p30 = scmp.eq.s32.totalorder %s15, 0
      %p31 = por %p29, %p30
      %p32 = scmp.ne.s32.totalorder %s20, %s21
      %p33 = scmp.eq.s32.totalorder %s16, 1
      %p34 = por %p32, %p33
      %p36 = scmp.ne.s32.totalorder %s21, %s35
      %p37 = scmp.eq.s32.totalorder %s16, 0
      %p38 = por %p36, %p37
      %s39 = ssub.s32 %s10, %s17
      %p40 = scmp.eq.s32.totalorder %s39, 0
      %s42 = sadd.s32 %s41, 1
      %s43 = scalar_select %p40, %s41, %s42
      %p46 = pneg %p40
      %p47 = scmp.eq.s32.totalorder %s10, 1
      %p48 = por %p46, %p47
      %p49 = scmp.ne.s32.totalorder %s41, %s44
      %p50 = scmp.eq.s32.totalorder %s10, 0
      %p51 = por %p49, %p50
      %p52 = scmp.ne.s32.totalorder %s41, %s44
      %p53 = scmp.eq.s32.totalorder %s15, 1
      %p54 = por %p52, %p53
      %p55 = scmp.ne.s32.totalorder %s44, %s45
      %p56 = scmp.eq.s32.totalorder %s15, 0
      %p57 = por %p55, %p56
      %p58 = scmp.ne.s32.totalorder %s44, %s45
      %p59 = scmp.eq.s32.totalorder %s16, 1
      %p60 = por %p58, %p59
      %p62 = scmp.ne.s32.totalorder %s45, %s61
      %p63 = scmp.eq.s32.totalorder %s16, 0
      %p64 = por %p62, %p63
      %s66 = sadd.s32 %s65, 1
      %p69 = scmp.eq.s32.totalorder %s10, 1
      %p70 = scmp.ne.s32.totalorder %s65, %s67
      %p71 = scmp.eq.s32.totalorder %s10, 0
      %p72 = por %p70, %p71
      %p73 = scmp.ne.s32.totalorder %s65, %s67
      %p74 = scmp.eq.s32.totalorder %s15, 1
      %p75 = por %p73, %p74
      %p76 = scmp.ne.s32.totalorder %s67, %s68
      %p77 = scmp.eq.s32.totalorder %s15, 0
      %p78 = por %p76, %p77
      %p79 = scmp.ne.s32.totalorder %s67, %s68
      %p80 = scmp.eq.s32.totalorder %s16, 1
      %p81 = por %p79, %p80
      %p83 = scmp.ne.s32.totalorder %s68, %s82
      %p84 = scmp.eq.s32.totalorder %s16, 0
      %p85 = por %p83, %p84
      %s87 = sadd.s32 %s86, 1
      %p90 = scmp.eq.s32.totalorder %s10, 1
      %p91 = scmp.ne.s32.totalorder %s86, %s88
      %p92 = scmp.eq.s32.totalorder %s10, 0
      %p93 = por %p91, %p92
      %p94 = scmp.ne.s32.totalorder %s86, %s88
      %p95 = scmp.eq.s32.totalorder %s15, 1
      %p96 = por %p94, %p95
      %p97 = scmp.ne.s32.totalorder %s88, %s89
      %p98 = scmp.eq.s32.totalorder %s15, 0
      %p99 = por %p97, %p98
      %p100 = scmp.ne.s32.totalorder %s88, %s89
      %p101 = scmp.eq.s32.totalorder %s16, 1
      %p102 = por %p100, %p101
      %p104 = scmp.ne.s32.totalorder %s89, %s103
      %p105 = scmp.eq.s32.totalorder %s16, 0
      %p106 = por %p104, %p105
      %s107 = ssub.s32 %s10, %s17
      %p108 = scmp.eq.s32.totalorder %s107, 0
      %s110 = sadd.s32 %s109, 1
      %s111 = scalar_select %p108, %s109, %s110
      %p114 = pneg %p108
      %p115 = scmp.eq.s32.totalorder %s10, 1
      %p116 = por %p114, %p115
      %p117 = scmp.ne.s32.totalorder %s109, %s112
      %p118 = scmp.eq.s32.totalorder %s10, 0
      %p119 = por %p117, %p118
      %p120 = scmp.ne.s32.totalorder %s109, %s112
      %p121 = scmp.eq.s32.totalorder %s15, 1
      %p122 = por %p120, %p121
      %p123 = scmp.ne.s32.totalorder %s112, %s113
      %p124 = scmp.eq.s32.totalorder %s15, 0
      %p125 = por %p123, %p124
      %p126 = scmp.ne.s32.totalorder %s112, %s113
      %p127 = scmp.eq.s32.totalorder %s16, 1
      %p128 = por %p126, %p127
      %p130 = scmp.ne.s32.totalorder %s113, %s129
      %p131 = scmp.eq.s32.totalorder %s16, 0
      %p132 = por %p130, %p131
      %p133 = scmp.le.s32.totalorder 1, %s10
      %p134 = scmp.lt.s32.totalorder %s10, 3
      %p135 = pnand %p133, %p134
      %p136 = pneg %p135
      // Predicated region
      $region9: #{_lambda_.20} parent=5 // pred_check
        _
      $region10: #{_lambda_.20} parent=5 // pred_check_branch
        %138 = sbr.rel (%p135) target = $region12
      $region11: #{_lambda_.20} parent=5 // pred_region
        %s139 = ssub.s32 %s10, 1
        // Predicated region
        $region13: #{_lambda_.20} parent=11 // pred_check
          %p140 = pneg %p31
        $region14: #{_lambda_.20} parent=11 // pred_check_branch
          %142 = sbr.rel (%p140) target = $region16
        $region15: #{_lambda_.20} parent=11 // pred_region
          _
        $region16: #{_lambda_.20} parent=11 // pred_fallthru
          _
        // Predicated region
        $region17: #{_lambda_.20} parent=11 // pred_check
          %p143 = pneg %p78
        $region18: #{_lambda_.20} parent=11 // pred_check_branch
          %145 = sbr.rel (%p143) target = $region20
        $region19: #{_lambda_.20} parent=11 // pred_region
          _
        $region20: #{_lambda_.20} parent=11 // pred_fallthru
          _
        // Predicated region
        $region21: #{_lambda_.20} parent=11 // pred_check
          %p146 = pneg %p99
        $region22: #{_lambda_.20} parent=11 // pred_check_branch
          %148 = sbr.rel (%p146) target = $region24
        $region23: #{_lambda_.20} parent=11 // pred_region
          _
        $region24: #{_lambda_.20} parent=11 // pred_fallthru
          _
      $region12: #{_lambda_.20} parent=5 // pred_fallthru
        _
      %p149 = scmp.lt.s32.totalorder %s10, 2
      // Predicated region
      $region25: #{_lambda_.20} parent=5 // pred_check
        %p150 = pneg %p149
      $region26: #{_lambda_.20} parent=5 // pred_check_branch
        %152 = sbr.rel (%p150) target = $region28
      $region27: #{_lambda_.20} parent=5 // pred_region
        // Predicated region
        $region29: #{_lambda_.20} parent=27 // pred_check
          %p153 = pneg %p51
        $region30: #{_lambda_.20} parent=27 // pred_check_branch
          %155 = sbr.rel (%p153) target = $region32
        $region31: #{_lambda_.20} parent=27 // pred_region
          %s156 = sand.u32 %s41, 1
          %s157 = sand.u32 %s41, 1
          %s158 = smul.addr %s157, 224
          %s159 = scalar_lea.vmem [#allocation2], %s158
          %s160 = smul.u32 4, %s10
          %s161 = smul.addr %s160, 4
          %s162 = scalar_lea.vmem %s1, %s161
          // Predicated region
          $region33: #{_lambda_.20} parent=31 // pred_check
            _
          $region34: #{_lambda_.20} parent=31 // pred_check_branch
            %164 = sbr.rel (0) target = $region36
          $region35: #{_lambda_.20} parent=31 // pred_region
            // Predicated region
            $region37: #{_lambda_.20} parent=35 // pred_check
              _
            $region38: #{_lambda_.20} parent=35 // pred_check_branch
              %166 = sbr.rel (0) target = $region40
            $region39: #{_lambda_.20} parent=35 // pred_region
              loop: start=0, step=1, limit=1
              $region41: #{_lambda_.20} parent=39 // loop_pre_header
                _
              $region42: #{_lambda_.20} parent=39 // loop_header
                %s168 = sphi 0, %s172
                %p169 = scmp.ge.s32.totalorder %s168, 1
                %s173 = sphi %s162, %s162
                %s174 = sphi %s159, %s159
              $region43: #{_lambda_.20} parent=39 // loop_header_branch
                %171 = sbr.rel (%p169) target = $region47
              $region44: #{_lambda_.20} parent=39 // loop_body
                %v175 = vld [vmem:[%s173] sm:$0xff]
                %176 = vst [vmem:[%s174] sm:$0xff] %v175
                %v177 = vld [vmem:[%s173 + $0x8] sm:$0xff]
                %178 = vst [vmem:[%s174 + $0x8] sm:$0xff] %v177
                %v179 = vld [vmem:[%s173 + $0x20] sm:$0xff]
                %180 = vst [vmem:[%s174 + $0x10] sm:$0xff] %v179
                %v181 = vld [vmem:[%s173 + $0x28] sm:$0xff]
                %182 = vst [vmem:[%s174 + $0x18] sm:$0xff] %v181
                %v183 = vld [vmem:[%s173 + $0x40] sm:$0xff]
                %184 = vst [vmem:[%s174 + $0x20] sm:$0xff] %v183
                %v185 = vld [vmem:[%s173 + $0x48] sm:$0xff]
                %186 = vst [vmem:[%s174 + $0x28] sm:$0xff] %v185
                %v187 = vld [vmem:[%s173 + $0x60] sm:$0xff]
                %188 = vst [vmem:[%s174 + $0x30] sm:$0xff] %v187
                %v189 = vld [vmem:[%s173 + $0x68] sm:$0xff]
                %190 = vst [vmem:[%s174 + $0x38] sm:$0xff] %v189
                %v191 = vld [vmem:[%s173 + $0x80] sm:$0xff]
                %192 = vst [vmem:[%s174 + $0x40] sm:$0xff] %v191
                %v193 = vld [vmem:[%s173 + $0x88] sm:$0xff]
                %194 = vst [vmem:[%s174 + $0x48] sm:$0xff] %v193
                %v195 = vld [vmem:[%s173 + $0xa0] sm:$0xff]
                %196 = vst [vmem:[%s174 + $0x50] sm:$0xff] %v195
                %v197 = vld [vmem:[%s173 + $0xa8] sm:$0xff]
                %198 = vst [vmem:[%s174 + $0x58] sm:$0xff] %v197
                %v199 = vld [vmem:[%s173 + $0xc0] sm:$0xff]
                %200 = vst [vmem:[%s174 + $0x60] sm:$0xff] %v199
                %v201 = vld [vmem:[%s173 + $0xc8] sm:$0xff]
                %202 = vst [vmem:[%s174 + $0x68] sm:$0xff] %v201
                %v203 = vld [vmem:[%s173 + $0xe0] sm:$0xff]
                %204 = vst [vmem:[%s174 + $0x70] sm:$0xff] %v203
                %v205 = vld [vmem:[%s173 + $0xe8] sm:$0xff]
                %206 = vst [vmem:[%s174 + $0x78] sm:$0xff] %v205
                %v207 = vld [vmem:[%s173 + $0x100] sm:$0xff]
                %208 = vst [vmem:[%s174 + $0x80] sm:$0xff] %v207
                %v209 = vld [vmem:[%s173 + $0x108] sm:$0xff]
                %210 = vst [vmem:[%s174 + $0x88] sm:$0xff] %v209
                %v211 = vld [vmem:[%s173 + $0x120] sm:$0xff]
                %212 = vst [vmem:[%s174 + $0x90] sm:$0xff] %v211
                %v213 = vld [vmem:[%s173 + $0x128] sm:$0xff]
                %214 = vst [vmem:[%s174 + $0x98] sm:$0xff] %v213
                %v215 = vld [vmem:[%s173 + $0x140] sm:$0xff]
                %216 = vst [vmem:[%s174 + $0xa0] sm:$0xff] %v215
                %v217 = vld [vmem:[%s173 + $0x148] sm:$0xff]
                %218 = vst [vmem:[%s174 + $0xa8] sm:$0xff] %v217
                %v219 = vld [vmem:[%s173 + $0x160] sm:$0xff]
                %220 = vst [vmem:[%s174 + $0xb0] sm:$0xff] %v219
                %v221 = vld [vmem:[%s173 + $0x168] sm:$0xff]
                %222 = vst [vmem:[%s174 + $0xb8] sm:$0xff] %v221
                %v223 = vld [vmem:[%s173 + $0x180] sm:$0xff]
                %224 = vst [vmem:[%s174 + $0xc0] sm:$0xff] %v223
                %v225 = vld [vmem:[%s173 + $0x188] sm:$0xff]
                %226 = vst [vmem:[%s174 + $0xc8] sm:$0xff] %v225
                %v227 = vld [vmem:[%s173 + $0x1a0] sm:$0xff]
                %228 = vst [vmem:[%s174 + $0xd0] sm:$0xff] %v227
                %v229 = vld [vmem:[%s173 + $0x1a8] sm:$0xff]
                %230 = vst [vmem:[%s174 + $0xd8] sm:$0xff] %v229
              $region45: #{_lambda_.20} parent=39 // loop_footer
                %s172 = sadd.s32 1, %s168
              $region46: #{_lambda_.20} parent=39 // loop_footer_branch
                %167 = sbr.rel target = $region42
              $region47: #{_lambda_.20} parent=39 // loop_exit
                _
            $region40: #{_lambda_.20} parent=35 // pred_fallthru
              _
            // Predicated region
            $region48: #{_lambda_.20} parent=35 // pred_check
              _
            $region49: #{_lambda_.20} parent=35 // pred_check_branch
              %232 = sbr.rel target = $region51
            $region50: #{_lambda_.20} parent=35 // pred_region
              _
            $region51: #{_lambda_.20} parent=35 // pred_fallthru
              _
          $region36: #{_lambda_.20} parent=31 // pred_fallthru
            _
          %233 = vnop
        $region32: #{_lambda_.20} parent=27 // pred_fallthru
          _
      $region28: #{_lambda_.20} parent=5 // pred_fallthru
        _
      %p234 = scmp.le.s32.totalorder 1, %s10
      %p235 = scmp.lt.s32.totalorder %s10, 3
      %p236 = pnand %p234, %p235
      %p237 = pneg %p236
      // Predicated region
      $region52: #{_lambda_.20} parent=5 // pred_check
        _
      $region53: #{_lambda_.20} parent=5 // pred_check_branch
        %239 = sbr.rel (%p236) target = $region55
      $region54: #{_lambda_.20} parent=5 // pred_region
        %s240 = ssub.s32 %s10, 1
        %s241 = sand.u32 %s44, 1
        %s242 = sand.u32 %s44, 1
        %s243 = smul.addr %s242, 224
        %s244 = scalar_lea.vmem [#allocation2], %s243
        // Predicated region
        $region56: #{_lambda_.20} parent=54 // pred_check
          %p245 = pneg %p57
        $region57: #{_lambda_.20} parent=54 // pred_check_branch
          %247 = sbr.rel (%p245) target = $region59
        $region58: #{_lambda_.20} parent=54 // pred_region
          _
        $region59: #{_lambda_.20} parent=54 // pred_fallthru
          _
        %p248 = pneg %p31
        %p249 = pneg %p28
        %s250 = sand.u32 %s44, 1
        %s251 = sand.u32 %s44, 1
        %s252 = smul.addr %s251, 224
        %s253 = scalar_lea.vmem [#allocation2], %s252
        %p254 = pneg %p57
        %p255 = pneg %p54
        %p256 = pneg %p78
        %p257 = pneg %p75
        %p258 = pneg %p99
        %p259 = pneg %p96
        %p260 = pneg %p125
        %p261 = pneg %p122
        %s262 = smul.u32 4, %s15
        %p263 = scmp.lt.s32.totalorder %s262, 7
        %s264 = scalar_select %p263, %s262, 7
        %s265 = smul.addr %s264, 4
        %s266 = scalar_lea.vmem %s4, %s265
        %s267 = smul.u32 4, %s15
        %s268 = smul.u32 4, %s15
        %p269 = scmp.lt.s32.totalorder %s268, 7
        %s270 = scalar_select %p269, %s268, 7
        %s271 = smul.addr %s270, 4
        %s272 = scalar_lea.vmem %s4, %s271
        %s273 = smul.u32 4, %s15
        %v275 = vld [vmem:[%s0] sm:$0x3]
        %v276 = vld [vmem:[%s244] sm:$0xff]
        %v277 = vld [vmem:[%s244 + $0x8] sm:$0xff]
        %v278 = vld [vmem:[%s244 + $0x10] sm:$0xff]
        %v279 = vld [vmem:[%s244 + $0x18] sm:$0xff]
        %v280 = vld [vmem:[%s244 + $0x20] sm:$0xff]
        %v281 = vld [vmem:[%s244 + $0x28] sm:$0xff]
        %v282 = vld [vmem:[%s244 + $0x30] sm:$0xff]
        %v283 = vld [vmem:[%s244 + $0x38] sm:$0xff]
        %v284 = vld [vmem:[%s244 + $0x40] sm:$0xff]
        %v285 = vld [vmem:[%s244 + $0x48] sm:$0xff]
        %v286 = vld [vmem:[%s244 + $0x50] sm:$0xff]
        %v287 = vld [vmem:[%s244 + $0x58] sm:$0xff]
        %v288 = vld [vmem:[%s244 + $0x60] sm:$0xff]
        %v289 = vld [vmem:[%s244 + $0x68] sm:$0xff]
        %v290 = vld [vmem:[%s244 + $0x70] sm:$0xff]
        %v291 = vld [vmem:[%s244 + $0x78] sm:$0xff]
        %v292 = vld [vmem:[%s244 + $0x80] sm:$0xff]
        %v293 = vld [vmem:[%s244 + $0x88] sm:$0xff]
        %v294 = vld [vmem:[%s244 + $0x90] sm:$0xff]
        %v295 = vld [vmem:[%s244 + $0x98] sm:$0xff]
        %v296 = vld [vmem:[%s244 + $0xa0] sm:$0xff]
        %v297 = vld [vmem:[%s244 + $0xa8] sm:$0xff]
        %v298 = vld [vmem:[%s244 + $0xb0] sm:$0xff]
        %v299 = vld [vmem:[%s244 + $0xb8] sm:$0xff]
        %v300 = vld [vmem:[%s244 + $0xc0] sm:$0xff]
        %v301 = vld [vmem:[%s244 + $0xc8] sm:$0xff]
        %v302 = vld [vmem:[%s244 + $0xd0] sm:$0x33]
        %v303 = vld [vmem:[%s244 + $0xd8] sm:$0x33]
        %v332 = vunpack.c.l.b16 %v276
        %v333 = vunpack.c.h.b16 %v276
        %v334 = vunpack.c.l.b16 %v277
        %v335 = vunpack.c.h.b16 %v277
        %v336 = vunpack.c.l.b16 %v278
        %v337 = vunpack.c.h.b16 %v278
        %v338 = vunpack.c.l.b16 %v279
        %v339 = vunpack.c.h.b16 %v279
        %v340 = vunpack.c.l.b16 %v280
        %v341 = vunpack.c.h.b16 %v280
        %v342 = vunpack.c.l.b16 %v281
        %v343 = vunpack.c.h.b16 %v281
        %v344 = vunpack.c.l.b16 %v282
        %v345 = vunpack.c.h.b16 %v282
        %v346 = vunpack.c.l.b16 %v283
        %v347 = vunpack.c.h.b16 %v283
        %v348 = vunpack.c.l.b16 %v284
        %v349 = vunpack.c.h.b16 %v284
        %v350 = vunpack.c.l.b16 %v285
        %v351 = vunpack.c.h.b16 %v285
        %v352 = vunpack.c.l.b16 %v286
        %v353 = vunpack.c.h.b16 %v286
        %v354 = vunpack.c.l.b16 %v287
        %v355 = vunpack.c.h.b16 %v287
        %v356 = vunpack.c.l.b16 %v288
        %v357 = vunpack.c.h.b16 %v288
        %v358 = vunpack.c.l.b16 %v289
        %v359 = vunpack.c.h.b16 %v289
        %v360 = vunpack.c.l.b16 %v290
        %v361 = vunpack.c.h.b16 %v290
        %v362 = vunpack.c.l.b16 %v291
        %v363 = vunpack.c.h.b16 %v291
        %v364 = vunpack.c.l.b16 %v292
        %v365 = vunpack.c.h.b16 %v292
        %v366 = vunpack.c.l.b16 %v293
        %v367 = vunpack.c.h.b16 %v293
        %v368 = vunpack.c.l.b16 %v294
        %v369 = vunpack.c.h.b16 %v294
        %v370 = vunpack.c.l.b16 %v295
        %v371 = vunpack.c.h.b16 %v295
        %v372 = vunpack.c.l.b16 %v296
        %v373 = vunpack.c.h.b16 %v296
        %v374 = vunpack.c.l.b16 %v297
        %v375 = vunpack.c.h.b16 %v297
        %v376 = vunpack.c.l.b16 %v298
        %v377 = vunpack.c.h.b16 %v298
        %v378 = vunpack.c.l.b16 %v299
        %v379 = vunpack.c.h.b16 %v299
        %v380 = vunpack.c.l.b16 %v300
        %v381 = vunpack.c.h.b16 %v300
        %v382 = vunpack.c.l.b16 %v301
        %v383 = vunpack.c.h.b16 %v301
        %v384 = vunpack.c.l.b16 %v302
        %v385 = vunpack.c.h.b16 %v302
        %v386 = vunpack.c.l.b16 %v303
        %v387 = vunpack.c.h.b16 %v303
        %v388 = vpack.c.b16 %v336, %v332
        %v389 = vpack.c.b16 %v337, %v333
        %v390 = vpack.c.b16 %v338, %v334
        %v391 = vpack.c.b16 %v339, %v335
        %v392 = vpack.c.b16 %v344, %v340
        %v393 = vpack.c.b16 %v345, %v341
        %v394 = vpack.c.b16 %v346, %v342
        %v395 = vpack.c.b16 %v347, %v343
        %v396 = vpack.c.b16 %v352, %v348
        %v397 = vpack.c.b16 %v353, %v349
        %v398 = vpack.c.b16 %v354, %v350
        %v399 = vpack.c.b16 %v355, %v351
        %v400 = vpack.c.b16 %v360, %v356
        %v401 = vpack.c.b16 %v361, %v357
        %v402 = vpack.c.b16 %v362, %v358
        %v403 = vpack.c.b16 %v363, %v359
        %v404 = vpack.c.b16 %v368, %v364
        %v405 = vpack.c.b16 %v369, %v365
        %v406 = vpack.c.b16 %v370, %v366
        %v407 = vpack.c.b16 %v371, %v367
        %v408 = vpack.c.b16 %v376, %v372
        %v409 = vpack.c.b16 %v377, %v373
        %v410 = vpack.c.b16 %v378, %v374
        %v411 = vpack.c.b16 %v379, %v375
        %v412 = vpack.c.b16 %v384, %v380
        %v413 = vpack.c.b16 %v385, %v381
        %v414 = vpack.c.b16 %v386, %v382
        %v415 = vpack.c.b16 %v387, %v383
        %vm440 = vcmask 883712
        %v442 = vsel %vm440, %v275, 0
        %vm444 = vcmask 1045504
        %v446 = vsel %vm444, %v412, 0
        %v449 = vsel %vm444, %v413, 0
        %v452 = vsel %vm444, %v414, 0
        %v455 = vsel %vm444, %v415, 0
        %457 = vmatprep.subr.bf16.mxu0 0
        %458 = vmatpush1.bf16.msra.mxu0 0
        %459 = vmatprep.subr.bf16.mxu0 %v449
        %460 = vmatpush1.bf16.msra.mxu0 %v446
        %461 = vmatprep.subr.bf16.mxu0 %v409
        %462 = vmatpush1.bf16.msra.mxu0 %v408
        %463 = vmatprep.subr.bf16.mxu0 %v405
        %464 = vmatpush1.bf16.msra.mxu0 %v404
        %465 = vmatprep.subr.bf16.mxu0 %v401
        %466 = vmatpush1.bf16.msra.mxu0 %v400
        %467 = vmatprep.subr.bf16.mxu0 %v397
        %468 = vmatpush1.bf16.msra.mxu0 %v396
        %469 = vmatprep.subr.bf16.mxu0 %v393
        %470 = vmatpush1.bf16.msra.mxu0 %v392
        %471 = vmatprep.subr.bf16.mxu0 %v389
        %472 = vmatpush1.bf16.msra.mxu0 %v388
        %473 = vmatprep.subr.bf16.mxu0 0
        %474 = vmatpush2.bf16.msra.mxu0 0
        %475 = vmatprep.subr.bf16.mxu0 0
        %476 = vmatpush2.bf16.msra.mxu0 0
        %477 = vmatprep.subr.bf16.mxu0 0
        %478 = vmatpush2.bf16.msra.mxu0 0
        %479 = vmatprep.subr.bf16.mxu0 0
        %480 = vmatpush2.bf16.msra.mxu0 0
        %481 = vmatprep.subr.bf16.mxu0 0
        %482 = vmatpush2.bf16.msra.mxu0 0
        %483 = vmatprep.subr.bf16.mxu0 0
        %484 = vmatpush2.bf16.msra.mxu0 0
        %485 = vmatprep.subr.bf16.mxu0 0
        %486 = vmatpush2.bf16.msra.mxu0 0
        %487 = vmatprep.subr.bf16.mxu0 0
        %488 = vmatpush2.bf16.msra.mxu0 0
        %489 = vmatprep.mubr.bf16.mxu0 0
        %490 = vmatmul.mubr.bf16.gmra.mxu0 %v442
        %v491 = vpop.f32.mrf.mxu0
        %v492 = vadd.f32 0.0, %v491
        %v493 = vpop.f32.mrf.mxu0
        %v494 = vadd.f32 0.0, %v493
        %v495 = vpop.f32.mrf.mxu0
        %v496 = vpop.f32.mrf.mxu0
        %497 = vdwg.mxu0
        %498 = vmatprep.subr.bf16.mxu0 0
        %499 = vmatpush1.bf16.msra.mxu0 0
        %500 = vmatprep.subr.bf16.mxu0 %v455
        %501 = vmatpush1.bf16.msra.mxu0 %v452
        %502 = vmatprep.subr.bf16.mxu0 %v411
        %503 = vmatpush1.bf16.msra.mxu0 %v410
        %504 = vmatprep.subr.bf16.mxu0 %v407
        %505 = vmatpush1.bf16.msra.mxu0 %v406
        %506 = vmatprep.subr.bf16.mxu0 %v403
        %507 = vmatpush1.bf16.msra.mxu0 %v402
        %508 = vmatprep.subr.bf16.mxu0 %v399
        %509 = vmatpush1.bf16.msra.mxu0 %v398
        %510 = vmatprep.subr.bf16.mxu0 %v395
        %511 = vmatpush1.bf16.msra.mxu0 %v394
        %512 = vmatprep.subr.bf16.mxu0 %v391
        %513 = vmatpush1.bf16.msra.mxu0 %v390
        %514 = vmatprep.subr.bf16.mxu0 0
        %515 = vmatpush2.bf16.msra.mxu0 0
        %516 = vmatprep.subr.bf16.mxu0 0
        %517 = vmatpush2.bf16.msra.mxu0 0
        %518 = vmatprep.subr.bf16.mxu0 0
        %519 = vmatpush2.bf16.msra.mxu0 0
        %520 = vmatprep.subr.bf16.mxu0 0
        %521 = vmatpush2.bf16.msra.mxu0 0
        %522 = vmatprep.subr.bf16.mxu0 0
        %523 = vmatpush2.bf16.msra.mxu0 0
        %524 = vmatprep.subr.bf16.mxu0 0
        %525 = vmatpush2.bf16.msra.mxu0 0
        %526 = vmatprep.subr.bf16.mxu0 0
        %527 = vmatpush2.bf16.msra.mxu0 0
        %528 = vmatprep.subr.bf16.mxu0 0
        %529 = vmatpush2.bf16.msra.mxu0 0
        %530 = vmatprep.mubr.bf16.mxu0 0
        %531 = vmatmul.mubr.bf16.gmra.mxu0 %v442
        %v532 = vpop.f32.mrf.mxu0
        %v533 = vadd.f32 0.0, %v532
        %v534 = vpop.f32.mrf.mxu0
        %v535 = vadd.f32 0.0, %v534
        %v536 = vpop.f32.mrf.mxu0
        %v537 = vpop.f32.mrf.mxu0
        %538 = vdwg.mxu0
        %v539 = vld [vmem:[%s2] sm:$0xf]
        %541 = vset.pattern.permute.xlu0 0
        %542 = vperm.xlu0 %541, %v539
        %v543 = vpop.permute.xlu0 %542
        %v545 = vmul.f32 %v492, %v543
        %v546 = vmul.f32 %v494, %v543
        %v547 = vmul.f32 %v533, %v543
        %v548 = vmul.f32 %v535, %v543
        %v549 = vld [vmem:[%s3] sm:$0xf]
        %551 = vset.pattern.permute.xlu0 0
        %552 = vperm.xlu0 %551, %v549
        %v553 = vpop.permute.xlu0 %552
        %v555 = vadd.f32 %v545, %v553
        %v556 = vadd.f32 %v546, %v553
        %v557 = vadd.f32 %v547, %v553
        %v558 = vadd.f32 %v548, %v553
        %v559 = vmax.f32 %v555, 0.0
        %v560 = vmax.f32 %v556, 0.0
        %v561 = vmax.f32 %v557, 0.0
        %v562 = vmax.f32 %v558, 0.0
        %v567 = vcombine.low %v559, %v560
        %v568 = vcombine.low %v561, %v562
        %571 = vst [vmem:[%s272] sm:$0xff] %v567
        %572 = vst [vmem:[%s272 + $0x8] sm:$0xff] %v568
        %s573 = smul.u32 4, %s15
        %p574 = scmp.lt.s32.totalorder %s573, 7
        %s575 = scalar_select %p574, %s573, 7
        %s576 = smul.addr %s575, 4
        %s577 = scalar_lea.vmem %s4, %s576
        // Predicated region
        $region60: #{_lambda_.20} parent=54 // pred_check
          %p578 = pneg %p122
        $region61: #{_lambda_.20} parent=54 // pred_check_branch
          %580 = sbr.rel (%p578) target = $region63
        $region62: #{_lambda_.20} parent=54 // pred_region
          %s581 = smul.u32 4, %s15
        $region63: #{_lambda_.20} parent=54 // pred_fallthru
          _
      $region55: #{_lambda_.20} parent=5 // pred_fallthru
        _
      %p582 = scmp.le.s32.totalorder 2, %s10
      // Predicated region
      $region64: #{_lambda_.20} parent=5 // pred_check
        %p583 = pneg %p582
      $region65: #{_lambda_.20} parent=5 // pred_check_branch
        %585 = sbr.rel (%p583) target = $region67
      $region66: #{_lambda_.20} parent=5 // pred_region
        %s586 = ssub.s32 %s10, 2
        // Predicated region
        $region68: #{_lambda_.20} parent=66 // pred_check
          %p587 = pneg %p128
        $region69: #{_lambda_.20} parent=66 // pred_check_branch
          %589 = sbr.rel (%p587) target = $region71
        $region70: #{_lambda_.20} parent=66 // pred_region
          %s590 = smul.u32 4, %s16
          %p591 = scmp.lt.s32.totalorder %s590, 7
          %s592 = scalar_select %p591, %s590, 7
          %s593 = smul.addr %s592, 4
          %s594 = scalar_lea.vmem %s4, %s593
        $region71: #{_lambda_.20} parent=66 // pred_fallthru
          _
      $region67: #{_lambda_.20} parent=5 // pred_fallthru
        _
    $region6: #{_lambda_.20} parent=1 // loop_footer
      %s14 = sadd.s32 1, %s10
    $region7: #{_lambda_.20} parent=1 // loop_footer_branch
      %9 = sbr.rel target = $region3
    $region8: #{_lambda_.20} parent=1 // loop_exit
      _

// kernel: _lambda_.21
$region0: #{_lambda_.21}
  #allocation0 [shape = 'u32[]', space=smem, size = 0x4, offset = 0x4, fixed_abs, tag = 'smem constant byte address 0x4 - core index']
  #allocation1 [shape = 'u32[144,128]{1,0:T(1,128)}', space=vmem, size = 0x12000, scoped, tag = 'internal scratch']
  %s0 = inlined_call_operand.vmem [shape: bf16[4,108], index: 0, kind: input, shape index: {}]
  %s1 = inlined_call_operand.vmem [shape: bf16[108,1024], index: 1, kind: input, shape index: {}]
  %s2 = inlined_call_operand.vmem [shape: f32[4,1], index: 2, kind: input, shape index: {}]
  %s3 = inlined_call_operand.vmem [shape: f32[4,1], index: 3, kind: input, shape index: {}]
  %s4 = inlined_call_operand.vmem [shape: f32[4,1024], index: 4, kind: input, shape index: {}]
  %s5 = inlined_call_operand.vmem [shape: f32[4,1024], index: 5, kind: output, shape index: {}]
  %s6 = sld [smem:[#allocation0]]
  $region76: #{_lambda_.21} parent=0
    _
  %s8 = ssub.s32 1, %s6
  %s9 = scalar_select 0, %s8, %s6
  $region1: #{_lambda_.21} parent=0
    #allocation2 [shape = 'u8[229376]{0}', space=vmem, size = 0x38000, scoped, tag = 'input window, operand 1']
    loop: start=0, step=1, limit=4
    $region2: #{_lambda_.21} parent=1 // loop_pre_header
      _
    $region3: #{_lambda_.21} parent=1 // loop_header
      %s11 = sphi 0, %s15
      %p12 = scmp.ge.s32.totalorder %s11, 4
      %s19 = sphi 0, %s19
      %s21 = sphi 0, %s19
      %s22 = sphi 0, %s21
      %s36 = sphi 0, %s22
      %s42 = sphi 0, %s44
      %s45 = sphi 0, %s42
      %s46 = sphi 0, %s45
      %s62 = sphi 0, %s46
      %s66 = sphi 0, %s66
      %s68 = sphi 0, %s66
      %s69 = sphi 0, %s68
      %s83 = sphi 0, %s69
      %s87 = sphi 0, %s87
      %s89 = sphi 0, %s87
      %s90 = sphi 0, %s89
      %s104 = sphi 0, %s90
      %s110 = sphi 0, %s112
      %s113 = sphi 0, %s110
      %s114 = sphi 0, %s113
      %s130 = sphi 0, %s114
      %s136 = sphi 0, %s138
      %s139 = sphi 0, %s136
      %s140 = sphi 0, %s139
      %s156 = sphi 0, %s140
    $region4: #{_lambda_.21} parent=1 // loop_header_branch
      %14 = sbr.rel (%p12) target = $region8
    $region5: #{_lambda_.21} parent=1 // loop_body
      %s16 = ssub.s32 %s11, 1
      %s17 = ssub.s32 %s11, 2
      %s18 = sadd.s32 %s11, 1
      %s20 = sadd.s32 %s19, 1
      %p23 = scmp.eq.s32.totalorder %s11, 1
      %p24 = scmp.ne.s32.totalorder %s19, %s21
      %p25 = scmp.eq.s32.totalorder %s11, 0
      %p26 = por %p24, %p25
      %p27 = scmp.ne.s32.totalorder %s19, %s21
      %p28 = scmp.eq.s32.totalorder %s16, 1
      %p29 = por %p27, %p28
      %p30 = scmp.ne.s32.totalorder %s21, %s22
      %p31 = scmp.eq.s32.totalorder %s16, 0
      %p32 = por %p30, %p31
      %p33 = scmp.ne.s32.totalorder %s21, %s22
      %p34 = scmp.eq.s32.totalorder %s17, 1
      %p35 = por %p33, %p34
      %p37 = scmp.ne.s32.totalorder %s22, %s36
      %p38 = scmp.eq.s32.totalorder %s17, 0
      %p39 = por %p37, %p38
      %s40 = ssub.s32 %s11, %s18
      %p41 = scmp.eq.s32.totalorder %s40, 0
      %s43 = sadd.s32 %s42, 1
      %s44 = scalar_select %p41, %s42, %s43
      %p47 = pneg %p41
      %p48 = scmp.eq.s32.totalorder %s11, 1
      %p49 = por %p47, %p48
      %p50 = scmp.ne.s32.totalorder %s42, %s45
      %p51 = scmp.eq.s32.totalorder %s11, 0
      %p52 = por %p50, %p51
      %p53 = scmp.ne.s32.totalorder %s42, %s45
      %p54 = scmp.eq.s32.totalorder %s16, 1
      %p55 = por %p53, %p54
      %p56 = scmp.ne.s32.totalorder %s45, %s46
      %p57 = scmp.eq.s32.totalorder %s16, 0
      %p58 = por %p56, %p57
      %p59 = scmp.ne.s32.totalorder %s45, %s46
      %p60 = scmp.eq.s32.totalorder %s17, 1
      %p61 = por %p59, %p60
      %p63 = scmp.ne.s32.totalorder %s46, %s62
      %p64 = scmp.eq.s32.totalorder %s17, 0
      %p65 = por %p63, %p64
      %s67 = sadd.s32 %s66, 1
      %p70 = scmp.eq.s32.totalorder %s11, 1
      %p71 = scmp.ne.s32.totalorder %s66, %s68
      %p72 = scmp.eq.s32.totalorder %s11, 0
      %p73 = por %p71, %p72
      %p74 = scmp.ne.s32.totalorder %s66, %s68
      %p75 = scmp.eq.s32.totalorder %s16, 1
      %p76 = por %p74, %p75
      %p77 = scmp.ne.s32.totalorder %s68, %s69
      %p78 = scmp.eq.s32.totalorder %s16, 0
      %p79 = por %p77, %p78
      %p80 = scmp.ne.s32.totalorder %s68, %s69
      %p81 = scmp.eq.s32.totalorder %s17, 1
      %p82 = por %p80, %p81
      %p84 = scmp.ne.s32.totalorder %s69, %s83
      %p85 = scmp.eq.s32.totalorder %s17, 0
      %p86 = por %p84, %p85
      %s88 = sadd.s32 %s87, 1
      %p91 = scmp.eq.s32.totalorder %s11, 1
      %p92 = scmp.ne.s32.totalorder %s87, %s89
      %p93 = scmp.eq.s32.totalorder %s11, 0
      %p94 = por %p92, %p93
      %p95 = scmp.ne.s32.totalorder %s87, %s89
      %p96 = scmp.eq.s32.totalorder %s16, 1
      %p97 = por %p95, %p96
      %p98 = scmp.ne.s32.totalorder %s89, %s90
      %p99 = scmp.eq.s32.totalorder %s16, 0
      %p100 = por %p98, %p99
      %p101 = scmp.ne.s32.totalorder %s89, %s90
      %p102 = scmp.eq.s32.totalorder %s17, 1
      %p103 = por %p101, %p102
      %p105 = scmp.ne.s32.totalorder %s90, %s104
      %p106 = scmp.eq.s32.totalorder %s17, 0
      %p107 = por %p105, %p106
      %s108 = ssub.s32 %s11, %s18
      %p109 = scmp.eq.s32.totalorder %s108, 0
      %s111 = sadd.s32 %s110, 1
      %s112 = scalar_select %p109, %s110, %s111
      %p115 = pneg %p109
      %p116 = scmp.eq.s32.totalorder %s11, 1
      %p117 = por %p115, %p116
      %p118 = scmp.ne.s32.totalorder %s110, %s113
      %p119 = scmp.eq.s32.totalorder %s11, 0
      %p120 = por %p118, %p119
      %p121 = scmp.ne.s32.totalorder %s110, %s113
      %p122 = scmp.eq.s32.totalorder %s16, 1
      %p123 = por %p121, %p122
      %p124 = scmp.ne.s32.totalorder %s113, %s114
      %p125 = scmp.eq.s32.totalorder %s16, 0
      %p126 = por %p124, %p125
      %p127 = scmp.ne.s32.totalorder %s113, %s114
      %p128 = scmp.eq.s32.totalorder %s17, 1
      %p129 = por %p127, %p128
      %p131 = scmp.ne.s32.totalorder %s114, %s130
      %p132 = scmp.eq.s32.totalorder %s17, 0
      %p133 = por %p131, %p132
      %s134 = ssub.s32 %s11, %s18
      %p135 = scmp.eq.s32.totalorder %s134, 0
      %s137 = sadd.s32 %s136, 1
      %s138 = scalar_select %p135, %s136, %s137
      %p141 = pneg %p135
      %p142 = scmp.eq.s32.totalorder %s11, 1
      %p143 = por %p141, %p142
      %p144 = scmp.ne.s32.totalorder %s136, %s139
      %p145 = scmp.eq.s32.totalorder %s11, 0
      %p146 = por %p144, %p145
      %p147 = scmp.ne.s32.totalorder %s136, %s139
      %p148 = scmp.eq.s32.totalorder %s16, 1
      %p149 = por %p147, %p148
      %p150 = scmp.ne.s32.totalorder %s139, %s140
      %p151 = scmp.eq.s32.totalorder %s16, 0
      %p152 = por %p150, %p151
      %p153 = scmp.ne.s32.totalorder %s139, %s140
      %p154 = scmp.eq.s32.totalorder %s17, 1
      %p155 = por %p153, %p154
      %p157 = scmp.ne.s32.totalorder %s140, %s156
      %p158 = scmp.eq.s32.totalorder %s17, 0
      %p159 = por %p157, %p158
      %p160 = scmp.le.s32.totalorder 1, %s11
      %p161 = scmp.lt.s32.totalorder %s11, 3
      %p162 = pnand %p160, %p161
      %p163 = pneg %p162
      // Predicated region
      $region9: #{_lambda_.21} parent=5 // pred_check
        _
      $region10: #{_lambda_.21} parent=5 // pred_check_branch
        %165 = sbr.rel (%p162) target = $region12
      $region11: #{_lambda_.21} parent=5 // pred_region
        %s166 = ssub.s32 %s11, 1
        // Predicated region
        $region13: #{_lambda_.21} parent=11 // pred_check
          %p167 = pneg %p32
        $region14: #{_lambda_.21} parent=11 // pred_check_branch
          %169 = sbr.rel (%p167) target = $region16
        $region15: #{_lambda_.21} parent=11 // pred_region
          _
        $region16: #{_lambda_.21} parent=11 // pred_fallthru
          _
        // Predicated region
        $region17: #{_lambda_.21} parent=11 // pred_check
          %p170 = pneg %p79
        $region18: #{_lambda_.21} parent=11 // pred_check_branch
          %172 = sbr.rel (%p170) target = $region20
        $region19: #{_lambda_.21} parent=11 // pred_region
          _
        $region20: #{_lambda_.21} parent=11 // pred_fallthru
          _
        // Predicated region
        $region21: #{_lambda_.21} parent=11 // pred_check
          %p173 = pneg %p100
        $region22: #{_lambda_.21} parent=11 // pred_check_branch
          %175 = sbr.rel (%p173) target = $region24
        $region23: #{_lambda_.21} parent=11 // pred_region
          _
        $region24: #{_lambda_.21} parent=11 // pred_fallthru
          _
      $region12: #{_lambda_.21} parent=5 // pred_fallthru
        _
      %p176 = scmp.lt.s32.totalorder %s11, 2
      // Predicated region
      $region25: #{_lambda_.21} parent=5 // pred_check
        %p177 = pneg %p176
      $region26: #{_lambda_.21} parent=5 // pred_check_branch
        %179 = sbr.rel (%p177) target = $region28
      $region27: #{_lambda_.21} parent=5 // pred_region
        // Predicated region
        $region29: #{_lambda_.21} parent=27 // pred_check
          %p180 = pneg %p52
        $region30: #{_lambda_.21} parent=27 // pred_check_branch
          %182 = sbr.rel (%p180) target = $region32
        $region31: #{_lambda_.21} parent=27 // pred_region
          %s183 = sand.u32 %s42, 1
          %s184 = sand.u32 %s42, 1
          %s185 = smul.addr %s184, 224
          %s186 = scalar_lea.vmem [#allocation2], %s185
          %s187 = smul.u32 4, %s11
          %s188 = smul.addr %s187, 4
          %s189 = scalar_lea.vmem %s1, %s188
          // Predicated region
          $region33: #{_lambda_.21} parent=31 // pred_check
            _
          $region34: #{_lambda_.21} parent=31 // pred_check_branch
            %191 = sbr.rel (0) target = $region36
          $region35: #{_lambda_.21} parent=31 // pred_region
            // Predicated region
            $region37: #{_lambda_.21} parent=35 // pred_check
              _
            $region38: #{_lambda_.21} parent=35 // pred_check_branch
              %193 = sbr.rel (0) target = $region40
            $region39: #{_lambda_.21} parent=35 // pred_region
              loop: start=0, step=1, limit=1
              $region41: #{_lambda_.21} parent=39 // loop_pre_header
                _
              $region42: #{_lambda_.21} parent=39 // loop_header
                %s195 = sphi 0, %s199
                %p196 = scmp.ge.s32.totalorder %s195, 1
                %s200 = sphi %s189, %s189
                %s201 = sphi %s186, %s186
              $region43: #{_lambda_.21} parent=39 // loop_header_branch
                %198 = sbr.rel (%p196) target = $region47
              $region44: #{_lambda_.21} parent=39 // loop_body
                %v202 = vld [vmem:[%s200] sm:$0xff]
                %203 = vst [vmem:[%s201] sm:$0xff] %v202
                %v204 = vld [vmem:[%s200 + $0x8] sm:$0xff]
                %205 = vst [vmem:[%s201 + $0x8] sm:$0xff] %v204
                %v206 = vld [vmem:[%s200 + $0x20] sm:$0xff]
                %207 = vst [vmem:[%s201 + $0x10] sm:$0xff] %v206
                %v208 = vld [vmem:[%s200 + $0x28] sm:$0xff]
                %209 = vst [vmem:[%s201 + $0x18] sm:$0xff] %v208
                %v210 = vld [vmem:[%s200 + $0x40] sm:$0xff]
                %211 = vst [vmem:[%s201 + $0x20] sm:$0xff] %v210
                %v212 = vld [vmem:[%s200 + $0x48] sm:$0xff]
                %213 = vst [vmem:[%s201 + $0x28] sm:$0xff] %v212
                %v214 = vld [vmem:[%s200 + $0x60] sm:$0xff]
                %215 = vst [vmem:[%s201 + $0x30] sm:$0xff] %v214
                %v216 = vld [vmem:[%s200 + $0x68] sm:$0xff]
                %217 = vst [vmem:[%s201 + $0x38] sm:$0xff] %v216
                %v218 = vld [vmem:[%s200 + $0x80] sm:$0xff]
                %219 = vst [vmem:[%s201 + $0x40] sm:$0xff] %v218
                %v220 = vld [vmem:[%s200 + $0x88] sm:$0xff]
                %221 = vst [vmem:[%s201 + $0x48] sm:$0xff] %v220
                %v222 = vld [vmem:[%s200 + $0xa0] sm:$0xff]
                %223 = vst [vmem:[%s201 + $0x50] sm:$0xff] %v222
                %v224 = vld [vmem:[%s200 + $0xa8] sm:$0xff]
                %225 = vst [vmem:[%s201 + $0x58] sm:$0xff] %v224
                %v226 = vld [vmem:[%s200 + $0xc0] sm:$0xff]
                %227 = vst [vmem:[%s201 + $0x60] sm:$0xff] %v226
                %v228 = vld [vmem:[%s200 + $0xc8] sm:$0xff]
                %229 = vst [vmem:[%s201 + $0x68] sm:$0xff] %v228
                %v230 = vld [vmem:[%s200 + $0xe0] sm:$0xff]
                %231 = vst [vmem:[%s201 + $0x70] sm:$0xff] %v230
                %v232 = vld [vmem:[%s200 + $0xe8] sm:$0xff]
                %233 = vst [vmem:[%s201 + $0x78] sm:$0xff] %v232
                %v234 = vld [vmem:[%s200 + $0x100] sm:$0xff]
                %235 = vst [vmem:[%s201 + $0x80] sm:$0xff] %v234
                %v236 = vld [vmem:[%s200 + $0x108] sm:$0xff]
                %237 = vst [vmem:[%s201 + $0x88] sm:$0xff] %v236
                %v238 = vld [vmem:[%s200 + $0x120] sm:$0xff]
                %239 = vst [vmem:[%s201 + $0x90] sm:$0xff] %v238
                %v240 = vld [vmem:[%s200 + $0x128] sm:$0xff]
                %241 = vst [vmem:[%s201 + $0x98] sm:$0xff] %v240
                %v242 = vld [vmem:[%s200 + $0x140] sm:$0xff]
                %243 = vst [vmem:[%s201 + $0xa0] sm:$0xff] %v242
                %v244 = vld [vmem:[%s200 + $0x148] sm:$0xff]
                %245 = vst [vmem:[%s201 + $0xa8] sm:$0xff] %v244
                %v246 = vld [vmem:[%s200 + $0x160] sm:$0xff]
                %247 = vst [vmem:[%s201 + $0xb0] sm:$0xff] %v246
                %v248 = vld [vmem:[%s200 + $0x168] sm:$0xff]
                %249 = vst [vmem:[%s201 + $0xb8] sm:$0xff] %v248
                %v250 = vld [vmem:[%s200 + $0x180] sm:$0xff]
                %251 = vst [vmem:[%s201 + $0xc0] sm:$0xff] %v250
                %v252 = vld [vmem:[%s200 + $0x188] sm:$0xff]
                %253 = vst [vmem:[%s201 + $0xc8] sm:$0xff] %v252
                %v254 = vld [vmem:[%s200 + $0x1a0] sm:$0xff]
                %255 = vst [vmem:[%s201 + $0xd0] sm:$0xff] %v254
                %v256 = vld [vmem:[%s200 + $0x1a8] sm:$0xff]
                %257 = vst [vmem:[%s201 + $0xd8] sm:$0xff] %v256
              $region45: #{_lambda_.21} parent=39 // loop_footer
                %s199 = sadd.s32 1, %s195
              $region46: #{_lambda_.21} parent=39 // loop_footer_branch
                %194 = sbr.rel target = $region42
              $region47: #{_lambda_.21} parent=39 // loop_exit
                _
            $region40: #{_lambda_.21} parent=35 // pred_fallthru
              _
            // Predicated region
            $region48: #{_lambda_.21} parent=35 // pred_check
              _
            $region49: #{_lambda_.21} parent=35 // pred_check_branch
              %259 = sbr.rel target = $region51
            $region50: #{_lambda_.21} parent=35 // pred_region
              _
            $region51: #{_lambda_.21} parent=35 // pred_fallthru
              _
          $region36: #{_lambda_.21} parent=31 // pred_fallthru
            _
          %260 = vnop
        $region32: #{_lambda_.21} parent=27 // pred_fallthru
          _
        // Predicated region
        $region52: #{_lambda_.21} parent=27 // pred_check
          %p261 = pneg %p120
        $region53: #{_lambda_.21} parent=27 // pred_check_branch
          %263 = sbr.rel (%p261) target = $region55
        $region54: #{_lambda_.21} parent=27 // pred_region
          %s264 = smul.u32 4, %s11
          %p265 = scmp.lt.s32.totalorder %s264, 7
          %s266 = scalar_select %p265, %s264, 7
          %s267 = smul.addr %s266, 4
          %s268 = scalar_lea.vmem %s4, %s267
          %s269 = smul.u32 4, %s11
        $region55: #{_lambda_.21} parent=27 // pred_fallthru
          _
      $region28: #{_lambda_.21} parent=5 // pred_fallthru
        _
      %p270 = scmp.le.s32.totalorder 1, %s11
      %p271 = scmp.lt.s32.totalorder %s11, 3
      %p272 = pnand %p270, %p271
      %p273 = pneg %p272
      // Predicated region
      $region56: #{_lambda_.21} parent=5 // pred_check
        _
      $region57: #{_lambda_.21} parent=5 // pred_check_branch
        %275 = sbr.rel (%p272) target = $region59
      $region58: #{_lambda_.21} parent=5 // pred_region
        %s276 = ssub.s32 %s11, 1
        %s277 = sand.u32 %s45, 1
        %s278 = sand.u32 %s45, 1
        %s279 = smul.addr %s278, 224
        %s280 = scalar_lea.vmem [#allocation2], %s279
        // Predicated region
        $region60: #{_lambda_.21} parent=58 // pred_check
          %p281 = pneg %p58
        $region61: #{_lambda_.21} parent=58 // pred_check_branch
          %283 = sbr.rel (%p281) target = $region63
        $region62: #{_lambda_.21} parent=58 // pred_region
          _
        $region63: #{_lambda_.21} parent=58 // pred_fallthru
          _
        %p284 = pneg %p32
        %p285 = pneg %p29
        %s286 = sand.u32 %s45, 1
        %s287 = sand.u32 %s45, 1
        %s288 = smul.addr %s287, 224
        %s289 = scalar_lea.vmem [#allocation2], %s288
        %p290 = pneg %p58
        %p291 = pneg %p55
        %p292 = pneg %p79
        %p293 = pneg %p76
        %p294 = pneg %p100
        %p295 = pneg %p97
        %s296 = smul.u32 4, %s16
        %p297 = scmp.lt.s32.totalorder %s296, 7
        %s298 = scalar_select %p297, %s296, 7
        %s299 = smul.addr %s298, 4
        %s300 = scalar_lea.vmem %s4, %s299
        %p301 = pneg %p126
        %p302 = pneg %p123
        %p303 = pneg %p152
        %p304 = pneg %p149
        %s305 = smul.u32 4, %s16
        %p306 = scmp.lt.s32.totalorder %s305, 7
        %s307 = scalar_select %p306, %s305, 7
        %s308 = smul.addr %s307, 4
        %s309 = scalar_lea.vmem %s5, %s308
        %s310 = smul.u32 4, %s16
        %s311 = smul.u32 4, %s16
        %p312 = scmp.lt.s32.totalorder %s311, 7
        %s313 = scalar_select %p312, %s311, 7
        %s314 = smul.addr %s313, 4
        %s315 = scalar_lea.vmem %s4, %s314
        %s316 = smul.u32 4, %s16
        %s317 = smul.u32 4, %s16
        %p318 = scmp.lt.s32.totalorder %s317, 7
        %s319 = scalar_select %p318, %s317, 7
        %s320 = smul.addr %s319, 4
        %s321 = scalar_lea.vmem %s5, %s320
        %s322 = smul.u32 4, %s16
        %v324 = vld [vmem:[%s0] sm:$0x3]
        %v325 = vld [vmem:[%s280] sm:$0xff]
        %v326 = vld [vmem:[%s280 + $0x8] sm:$0xff]
        %v327 = vld [vmem:[%s280 + $0x10] sm:$0xff]
        %v328 = vld [vmem:[%s280 + $0x18] sm:$0xff]
        %v329 = vld [vmem:[%s280 + $0x20] sm:$0xff]
        %v330 = vld [vmem:[%s280 + $0x28] sm:$0xff]
        %v331 = vld [vmem:[%s280 + $0x30] sm:$0xff]
        %v332 = vld [vmem:[%s280 + $0x38] sm:$0xff]
        %v333 = vld [vmem:[%s280 + $0x40] sm:$0xff]
        %v334 = vld [vmem:[%s280 + $0x48] sm:$0xff]
        %v335 = vld [vmem:[%s280 + $0x50] sm:$0xff]
        %v336 = vld [vmem:[%s280 + $0x58] sm:$0xff]
        %v337 = vld [vmem:[%s280 + $0x60] sm:$0xff]
        %v338 = vld [vmem:[%s280 + $0x68] sm:$0xff]
        %v339 = vld [vmem:[%s280 + $0x70] sm:$0xff]
        %v340 = vld [vmem:[%s280 + $0x78] sm:$0xff]
        %v341 = vld [vmem:[%s280 + $0x80] sm:$0xff]
        %v342 = vld [vmem:[%s280 + $0x88] sm:$0xff]
        %v343 = vld [vmem:[%s280 + $0x90] sm:$0xff]
        %v344 = vld [vmem:[%s280 + $0x98] sm:$0xff]
        %v345 = vld [vmem:[%s280 + $0xa0] sm:$0xff]
        %v346 = vld [vmem:[%s280 + $0xa8] sm:$0xff]
        %v347 = vld [vmem:[%s280 + $0xb0] sm:$0xff]
        %v348 = vld [vmem:[%s280 + $0xb8] sm:$0xff]
        %v349 = vld [vmem:[%s280 + $0xc0] sm:$0xff]
        %v350 = vld [vmem:[%s280 + $0xc8] sm:$0xff]
        %v351 = vld [vmem:[%s280 + $0xd0] sm:$0x33]
        %v352 = vld [vmem:[%s280 + $0xd8] sm:$0x33]
        %v381 = vunpack.c.l.b16 %v325
        %v382 = vunpack.c.h.b16 %v325
        %v383 = vunpack.c.l.b16 %v326
        %v384 = vunpack.c.h.b16 %v326
        %v385 = vunpack.c.l.b16 %v327
        %v386 = vunpack.c.h.b16 %v327
        %v387 = vunpack.c.l.b16 %v328
        %v388 = vunpack.c.h.b16 %v328
        %v389 = vunpack.c.l.b16 %v329
        %v390 = vunpack.c.h.b16 %v329
        %v391 = vunpack.c.l.b16 %v330
        %v392 = vunpack.c.h.b16 %v330
        %v393 = vunpack.c.l.b16 %v331
        %v394 = vunpack.c.h.b16 %v331
        %v395 = vunpack.c.l.b16 %v332
        %v396 = vunpack.c.h.b16 %v332
        %v397 = vunpack.c.l.b16 %v333
        %v398 = vunpack.c.h.b16 %v333
        %v399 = vunpack.c.l.b16 %v334
        %v400 = vunpack.c.h.b16 %v334
        %v401 = vunpack.c.l.b16 %v335
        %v402 = vunpack.c.h.b16 %v335
        %v403 = vunpack.c.l.b16 %v336
        %v404 = vunpack.c.h.b16 %v336
        %v405 = vunpack.c.l.b16 %v337
        %v406 = vunpack.c.h.b16 %v337
        %v407 = vunpack.c.l.b16 %v338
        %v408 = vunpack.c.h.b16 %v338
        %v409 = vunpack.c.l.b16 %v339
        %v410 = vunpack.c.h.b16 %v339
        %v411 = vunpack.c.l.b16 %v340
        %v412 = vunpack.c.h.b16 %v340
        %v413 = vunpack.c.l.b16 %v341
        %v414 = vunpack.c.h.b16 %v341
        %v415 = vunpack.c.l.b16 %v342
        %v416 = vunpack.c.h.b16 %v342
        %v417 = vunpack.c.l.b16 %v343
        %v418 = vunpack.c.h.b16 %v343
        %v419 = vunpack.c.l.b16 %v344
        %v420 = vunpack.c.h.b16 %v344
        %v421 = vunpack.c.l.b16 %v345
        %v422 = vunpack.c.h.b16 %v345
        %v423 = vunpack.c.l.b16 %v346
        %v424 = vunpack.c.h.b16 %v346
        %v425 = vunpack.c.l.b16 %v347
        %v426 = vunpack.c.h.b16 %v347
        %v427 = vunpack.c.l.b16 %v348
        %v428 = vunpack.c.h.b16 %v348
        %v429 = vunpack.c.l.b16 %v349
        %v430 = vunpack.c.h.b16 %v349
        %v431 = vunpack.c.l.b16 %v350
        %v432 = vunpack.c.h.b16 %v350
        %v433 = vunpack.c.l.b16 %v351
        %v434 = vunpack.c.h.b16 %v351
        %v435 = vunpack.c.l.b16 %v352
        %v436 = vunpack.c.h.b16 %v352
        %v437 = vpack.c.b16 %v385, %v381
        %v438 = vpack.c.b16 %v386, %v382
        %v439 = vpack.c.b16 %v387, %v383
        %v440 = vpack.c.b16 %v388, %v384
        %v441 = vpack.c.b16 %v393, %v389
        %v442 = vpack.c.b16 %v394, %v390
        %v443 = vpack.c.b16 %v395, %v391
        %v444 = vpack.c.b16 %v396, %v392
        %v445 = vpack.c.b16 %v401, %v397
        %v446 = vpack.c.b16 %v402, %v398
        %v447 = vpack.c.b16 %v403, %v399
        %v448 = vpack.c.b16 %v404, %v400
        %v449 = vpack.c.b16 %v409, %v405
        %v450 = vpack.c.b16 %v410, %v406
        %v451 = vpack.c.b16 %v411, %v407
        %v452 = vpack.c.b16 %v412, %v408
        %v453 = vpack.c.b16 %v417, %v413
        %v454 = vpack.c.b16 %v418, %v414
        %v455 = vpack.c.b16 %v419, %v415
        %v456 = vpack.c.b16 %v420, %v416
        %v457 = vpack.c.b16 %v425, %v421
        %v458 = vpack.c.b16 %v426, %v422
        %v459 = vpack.c.b16 %v427, %v423
        %v460 = vpack.c.b16 %v428, %v424
        %v461 = vpack.c.b16 %v433, %v429
        %v462 = vpack.c.b16 %v434, %v430
        %v463 = vpack.c.b16 %v435, %v431
        %v464 = vpack.c.b16 %v436, %v432
        %vm489 = vcmask 883712
        %v491 = vsel %vm489, %v324, 0
        %vm493 = vcmask 1045504
        %v495 = vsel %vm493, %v461, 0
        %v498 = vsel %vm493, %v462, 0
        %v501 = vsel %vm493, %v463, 0
        %v504 = vsel %vm493, %v464, 0
        %506 = vmatprep.subr.bf16.mxu0 0
        %507 = vmatpush1.bf16.msra.mxu0 0
        %508 = vmatprep.subr.bf16.mxu0 %v498
        %509 = vmatpush1.bf16.msra.mxu0 %v495
        %510 = vmatprep.subr.bf16.mxu0 %v458
        %511 = vmatpush1.bf16.msra.mxu0 %v457
        %512 = vmatprep.subr.bf16.mxu0 %v454
        %513 = vmatpush1.bf16.msra.mxu0 %v453
        %514 = vmatprep.subr.bf16.mxu0 %v450
        %515 = vmatpush1.bf16.msra.mxu0 %v449
        %516 = vmatprep.subr.bf16.mxu0 %v446
        %517 = vmatpush1.bf16.msra.mxu0 %v445
        %518 = vmatprep.subr.bf16.mxu0 %v442
        %519 = vmatpush1.bf16.msra.mxu0 %v441
        %520 = vmatprep.subr.bf16.mxu0 %v438
        %521 = vmatpush1.bf16.msra.mxu0 %v437
        %522 = vmatprep.subr.bf16.mxu0 0
        %523 = vmatpush2.bf16.msra.mxu0 0
        %524 = vmatprep.subr.bf16.mxu0 0
        %525 = vmatpush2.bf16.msra.mxu0 0
        %526 = vmatprep.subr.bf16.mxu0 0
        %527 = vmatpush2.bf16.msra.mxu0 0
        %528 = vmatprep.subr.bf16.mxu0 0
        %529 = vmatpush2.bf16.msra.mxu0 0
        %530 = vmatprep.subr.bf16.mxu0 0
        %531 = vmatpush2.bf16.msra.mxu0 0
        %532 = vmatprep.subr.bf16.mxu0 0
        %533 = vmatpush2.bf16.msra.mxu0 0
        %534 = vmatprep.subr.bf16.mxu0 0
        %535 = vmatpush2.bf16.msra.mxu0 0
        %536 = vmatprep.subr.bf16.mxu0 0
        %537 = vmatpush2.bf16.msra.mxu0 0
        %538 = vmatprep.mubr.bf16.mxu0 0
        %539 = vmatmul.mubr.bf16.gmra.mxu0 %v491
        %v540 = vpop.f32.mrf.mxu0
        %v541 = vadd.f32 0.0, %v540
        %v542 = vpop.f32.mrf.mxu0
        %v543 = vadd.f32 0.0, %v542
        %v544 = vpop.f32.mrf.mxu0
        %v545 = vpop.f32.mrf.mxu0
        %546 = vdwg.mxu0
        %547 = vmatprep.subr.bf16.mxu0 0
        %548 = vmatpush1.bf16.msra.mxu0 0
        %549 = vmatprep.subr.bf16.mxu0 %v504
        %550 = vmatpush1.bf16.msra.mxu0 %v501
        %551 = vmatprep.subr.bf16.mxu0 %v460
        %552 = vmatpush1.bf16.msra.mxu0 %v459
        %553 = vmatprep.subr.bf16.mxu0 %v456
        %554 = vmatpush1.bf16.msra.mxu0 %v455
        %555 = vmatprep.subr.bf16.mxu0 %v452
        %556 = vmatpush1.bf16.msra.mxu0 %v451
        %557 = vmatprep.subr.bf16.mxu0 %v448
        %558 = vmatpush1.bf16.msra.mxu0 %v447
        %559 = vmatprep.subr.bf16.mxu0 %v444
        %560 = vmatpush1.bf16.msra.mxu0 %v443
        %561 = vmatprep.subr.bf16.mxu0 %v440
        %562 = vmatpush1.bf16.msra.mxu0 %v439
        %563 = vmatprep.subr.bf16.mxu0 0
        %564 = vmatpush2.bf16.msra.mxu0 0
        %565 = vmatprep.subr.bf16.mxu0 0
        %566 = vmatpush2.bf16.msra.mxu0 0
        %567 = vmatprep.subr.bf16.mxu0 0
        %568 = vmatpush2.bf16.msra.mxu0 0
        %569 = vmatprep.subr.bf16.mxu0 0
        %570 = vmatpush2.bf16.msra.mxu0 0
        %571 = vmatprep.subr.bf16.mxu0 0
        %572 = vmatpush2.bf16.msra.mxu0 0
        %573 = vmatprep.subr.bf16.mxu0 0
        %574 = vmatpush2.bf16.msra.mxu0 0
        %575 = vmatprep.subr.bf16.mxu0 0
        %576 = vmatpush2.bf16.msra.mxu0 0
        %577 = vmatprep.subr.bf16.mxu0 0
        %578 = vmatpush2.bf16.msra.mxu0 0
        %579 = vmatprep.mubr.bf16.mxu0 0
        %580 = vmatmul.mubr.bf16.gmra.mxu0 %v491
        %v581 = vpop.f32.mrf.mxu0
        %v582 = vadd.f32 0.0, %v581
        %v583 = vpop.f32.mrf.mxu0
        %v584 = vadd.f32 0.0, %v583
        %v585 = vpop.f32.mrf.mxu0
        %v586 = vpop.f32.mrf.mxu0
        %587 = vdwg.mxu0
        %v588 = vld [vmem:[%s2] sm:$0xf]
        %590 = vset.pattern.permute.xlu0 0
        %591 = vperm.xlu0 %590, %v588
        %v592 = vpop.permute.xlu0 %591
        %v594 = vmul.f32 %v541, %v592
        %v595 = vmul.f32 %v543, %v592
        %v596 = vmul.f32 %v582, %v592
        %v597 = vmul.f32 %v584, %v592
        %v598 = vld [vmem:[%s3] sm:$0xf]
        %600 = vset.pattern.permute.xlu0 0
        %601 = vperm.xlu0 %600, %v598
        %v602 = vpop.permute.xlu0 %601
        %v604 = vadd.f32 %v594, %v602
        %v605 = vadd.f32 %v595, %v602
        %v606 = vadd.f32 %v596, %v602
        %v607 = vadd.f32 %v597, %v602
        %v608 = vld [vmem:[%s315] sm:$0xff]
        %v609 = vld [vmem:[%s315 + $0x8] sm:$0xff]
        %v612 = vcombine.high %v608, %v608
        %v613 = vcombine.high %v609, %v609
        %v616 = vadd.f32 %v604, %v608
        %v617 = vadd.f32 %v605, %v612
        %v618 = vadd.f32 %v606, %v609
        %v619 = vadd.f32 %v607, %v613
        %v620 = vmax.f32 %v616, 0.0
        %v621 = vmax.f32 %v617, 0.0
        %v622 = vmax.f32 %v618, 0.0
        %v623 = vmax.f32 %v619, 0.0
        %v628 = vcombine.low %v620, %v621
        %v629 = vcombine.low %v622, %v623
        %632 = vst [vmem:[%s321] sm:$0xff] %v628
        %633 = vst [vmem:[%s321 + $0x8] sm:$0xff] %v629
        %s634 = smul.u32 4, %s16
        %p635 = scmp.lt.s32.totalorder %s634, 7
        %s636 = scalar_select %p635, %s634, 7
        %s637 = smul.addr %s636, 4
        %s638 = scalar_lea.vmem %s5, %s637
        // Predicated region
        $region64: #{_lambda_.21} parent=58 // pred_check
          %p639 = pneg %p149
        $region65: #{_lambda_.21} parent=58 // pred_check_branch
          %641 = sbr.rel (%p639) target = $region67
        $region66: #{_lambda_.21} parent=58 // pred_region
          %s642 = smul.u32 4, %s16
        $region67: #{_lambda_.21} parent=58 // pred_fallthru
          _
      $region59: #{_lambda_.21} parent=5 // pred_fallthru
        _
      %p643 = scmp.le.s32.totalorder 2, %s11
      // Predicated region
      $region68: #{_lambda_.21} parent=5 // pred_check
        %p644 = pneg %p643
      $region69: #{_lambda_.21} parent=5 // pred_check_branch
        %646 = sbr.rel (%p644) target = $region71
      $region70: #{_lambda_.21} parent=5 // pred_region
        %s647 = ssub.s32 %s11, 2
        // Predicated region
        $region72: #{_lambda_.21} parent=70 // pred_check
          %p648 = pneg %p155
        $region73: #{_lambda_.21} parent=70 // pred_check_branch
          %650 = sbr.rel (%p648) target = $region75
        $region74: #{_lambda_.21} parent=70 // pred_region
          %s651 = smul.u32 4, %s17
          %p652 = scmp.lt.s32.totalorder %s651, 7
          %s653 = scalar_select %p652, %s651, 7
          %s654 = smul.addr %s653, 4
          %s655 = scalar_lea.vmem %s5, %s654
        $region75: #{_lambda_.21} parent=70 // pred_fallthru
          _
      $region71: #{_lambda_.21} parent=5 // pred_fallthru
        _
    $region6: #{_lambda_.21} parent=1 // loop_footer
      %s15 = sadd.s32 1, %s11
    $region7: #{_lambda_.21} parent=1 // loop_footer_branch
      %10 = sbr.rel target = $region3
    $region8: #{_lambda_.21} parent=1 // loop_exit
      _

// kernel: _lambda_.24
$region0: #{_lambda_.24}
  #allocation0 [shape = 'u32[]', space=smem, size = 0x4, offset = 0x4, fixed_abs, tag = 'smem constant byte address 0x4 - core index']
  #allocation1 [shape = 'u32[144,128]{1,0:T(1,128)}', space=vmem, size = 0x12000, scoped, tag = 'internal scratch']
  %s0 = inlined_call_operand.vmem [shape: bf16[8,4], index: 0, kind: input, shape index: {}]
  %s1 = inlined_call_operand.vmem [shape: bf16[4,128], index: 1, kind: input, shape index: {}]
  %s2 = inlined_call_operand.vmem [shape: f32[8,1], index: 2, kind: input, shape index: {}]
  %s3 = inlined_call_operand.vmem [shape: f32[8,1], index: 3, kind: input, shape index: {}]
  %s4 = inlined_call_operand.vmem [shape: f32[8,128], index: 4, kind: output, shape index: {}]
  %s5 = sld [smem:[#allocation0]]
  $region26: #{_lambda_.24} parent=0
    _
  %s7 = ssub.s32 1, %s5
  %s8 = scalar_select 0, %s7, %s5
  // Predicated region
  $region2: #{_lambda_.24} parent=0 // pred_check
    _
  $region3: #{_lambda_.24} parent=0 // pred_check_branch
    %10 = sbr.rel (0) target = $region5
  $region4: #{_lambda_.24} parent=0 // pred_region
    _
  $region5: #{_lambda_.24} parent=0 // pred_fallthru
    _
  // Predicated region
  $region6: #{_lambda_.24} parent=0 // pred_check
    _
  $region7: #{_lambda_.24} parent=0 // pred_check_branch
    %12 = sbr.rel (0) target = $region9
  $region8: #{_lambda_.24} parent=0 // pred_region
    _
  $region9: #{_lambda_.24} parent=0 // pred_fallthru
    _
  // Predicated region
  $region10: #{_lambda_.24} parent=0 // pred_check
    _
  $region11: #{_lambda_.24} parent=0 // pred_check_branch
    %14 = sbr.rel (0) target = $region13
  $region12: #{_lambda_.24} parent=0 // pred_region
    _
  $region13: #{_lambda_.24} parent=0 // pred_fallthru
    _
  // Predicated region
  $region14: #{_lambda_.24} parent=0 // pred_check
    _
  $region15: #{_lambda_.24} parent=0 // pred_check_branch
    %16 = sbr.rel (0) target = $region17
  $region16: #{_lambda_.24} parent=0 // pred_region
    _
  $region17: #{_lambda_.24} parent=0 // pred_fallthru
    _
  %v18 = vld [vmem:[%s0] sm:$0xf]
  %v19 = vld [vmem:[%s1] sm:$0x3]
  %vm20 = vcmask 31744
  %v22 = vsel %vm20, %v18, 0
  %vm24 = vcmask 1041408
  %v26 = vsel %vm24, %v19, 0
  %28 = vmatprep.subr.bf16.mxu0 0
  %29 = vmatpush1.bf16.msra.mxu0 0
  %30 = vmatprep.subr.bf16.mxu0 0
  %31 = vmatpush1.bf16.msra.mxu0 0
  %32 = vmatprep.subr.bf16.mxu0 0
  %33 = vmatpush1.bf16.msra.mxu0 0
  %34 = vmatprep.subr.bf16.mxu0 0
  %35 = vmatpush1.bf16.msra.mxu0 0
  %36 = vmatprep.subr.bf16.mxu0 0
  %37 = vmatpush1.bf16.msra.mxu0 0
  %38 = vmatprep.subr.bf16.mxu0 0
  %39 = vmatpush1.bf16.msra.mxu0 0
  %40 = vmatprep.subr.bf16.mxu0 0
  %41 = vmatpush1.bf16.msra.mxu0 0
  %42 = vmatprep.subr.bf16.mxu0 0
  %43 = vmatpush1.bf16.msra.mxu0 %v26
  %44 = vmatprep.subr.bf16.mxu0 0
  %45 = vmatpush2.bf16.msra.mxu0 0
  %46 = vmatprep.subr.bf16.mxu0 0
  %47 = vmatpush2.bf16.msra.mxu0 0
  %48 = vmatprep.subr.bf16.mxu0 0
  %49 = vmatpush2.bf16.msra.mxu0 0
  %50 = vmatprep.subr.bf16.mxu0 0
  %51 = vmatpush2.bf16.msra.mxu0 0
  %52 = vmatprep.subr.bf16.mxu0 0
  %53 = vmatpush2.bf16.msra.mxu0 0
  %54 = vmatprep.subr.bf16.mxu0 0
  %55 = vmatpush2.bf16.msra.mxu0 0
  %56 = vmatprep.subr.bf16.mxu0 0
  %57 = vmatpush2.bf16.msra.mxu0 0
  %58 = vmatprep.subr.bf16.mxu0 0
  %59 = vmatpush2.bf16.msra.mxu0 0
  %60 = vmatprep.mubr.bf16.mxu0 0
  %61 = vmatmul.mubr.bf16.gmra.mxu0 %v22
  %v62 = vpop.f32.mrf.mxu0
  %v63 = vadd.f32 0.0, %v62
  %v64 = vpop.f32.mrf.mxu0
  %v65 = vpop.f32.mrf.mxu0
  %v66 = vpop.f32.mrf.mxu0
  %67 = vdwg.mxu0
  %v68 = vld [vmem:[%s2] sm:$0xff]
  %70 = vset.pattern.permute.xlu0 0
  %71 = vperm.xlu0 %70, %v68
  %v72 = vpop.permute.xlu0 %71
  %v74 = vmul.f32 %v63, %v72
  %v75 = vld [vmem:[%s3] sm:$0xff]
  %77 = vset.pattern.permute.xlu0 0
  %78 = vperm.xlu0 %77, %v75
  %v79 = vpop.permute.xlu0 %78
  %v81 = vadd.f32 %v74, %v79
  %82 = vst [vmem:[%s4] sm:$0xff] %v81
  // Predicated region
  $region18: #{_lambda_.24} parent=0 // pred_check
    _
  $region19: #{_lambda_.24} parent=0 // pred_check_branch
    %84 = sbr.rel (0) target = $region21
  $region20: #{_lambda_.24} parent=0 // pred_region
    _
  $region21: #{_lambda_.24} parent=0 // pred_fallthru
    _
  // Predicated region
  $region22: #{_lambda_.24} parent=0 // pred_check
    _
  $region23: #{_lambda_.24} parent=0 // pred_check_branch
    %86 = sbr.rel (0) target = $region25
  $region24: #{_lambda_.24} parent=0 // pred_region
    _
  $region25: #{_lambda_.24} parent=0 // pred_fallthru
    _

// kernel: _lambda_.25
$region0: #{_lambda_.25}
  #allocation0 [shape = 'u32[]', space=smem, size = 0x4, offset = 0x4, fixed_abs, tag = 'smem constant byte address 0x4 - core index']
  #allocation1 [shape = 'u32[144,128]{1,0:T(1,128)}', space=vmem, size = 0x12000, scoped, tag = 'internal scratch']
  %s0 = inlined_call_operand.vmem [shape: bf16[8,108], index: 0, kind: input, shape index: {}]
  %s1 = inlined_call_operand.vmem [shape: bf16[108,128], index: 1, kind: input, shape index: {}]
  %s2 = inlined_call_operand.vmem [shape: f32[8,1], index: 2, kind: input, shape index: {}]
  %s3 = inlined_call_operand.vmem [shape: f32[8,1], index: 3, kind: input, shape index: {}]
  %s4 = inlined_call_operand.vmem [shape: f32[8,128], index: 4, kind: output, shape index: {}]
  %s5 = sld [smem:[#allocation0]]
  $region26: #{_lambda_.25} parent=0
    _
  %s7 = ssub.s32 1, %s5
  %s8 = scalar_select 0, %s7, %s5
  // Predicated region
  $region2: #{_lambda_.25} parent=0 // pred_check
    _
  $region3: #{_lambda_.25} parent=0 // pred_check_branch
    %10 = sbr.rel (0) target = $region5
  $region4: #{_lambda_.25} parent=0 // pred_region
    _
  $region5: #{_lambda_.25} parent=0 // pred_fallthru
    _
  // Predicated region
  $region6: #{_lambda_.25} parent=0 // pred_check
    _
  $region7: #{_lambda_.25} parent=0 // pred_check_branch
    %12 = sbr.rel (0) target = $region9
  $region8: #{_lambda_.25} parent=0 // pred_region
    _
  $region9: #{_lambda_.25} parent=0 // pred_fallthru
    _
  // Predicated region
  $region10: #{_lambda_.25} parent=0 // pred_check
    _
  $region11: #{_lambda_.25} parent=0 // pred_check_branch
    %14 = sbr.rel (0) target = $region13
  $region12: #{_lambda_.25} parent=0 // pred_region
    _
  $region13: #{_lambda_.25} parent=0 // pred_fallthru
    _
  // Predicated region
  $region14: #{_lambda_.25} parent=0 // pred_check
    _
  $region15: #{_lambda_.25} parent=0 // pred_check_branch
    %16 = sbr.rel (0) target = $region17
  $region16: #{_lambda_.25} parent=0 // pred_region
    _
  $region17: #{_lambda_.25} parent=0 // pred_fallthru
    _
  %v18 = vld [vmem:[%s0] sm:$0xf]
  %v19 = vld [vmem:[%s1] sm:$0xf]
  %v20 = vld [vmem:[%s1 + $0x4] sm:$0xf]
  %v21 = vld [vmem:[%s1 + $0x8] sm:$0xf]
  %v22 = vld [vmem:[%s1 + $0xc] sm:$0xf]
  %v23 = vld [vmem:[%s1 + $0x10] sm:$0xf]
  %v24 = vld [vmem:[%s1 + $0x14] sm:$0xf]
  %v25 = vld [vmem:[%s1 + $0x18] sm:$0xf]
  %v26 = vld [vmem:[%s1 + $0x1c] sm:$0xf]
  %v27 = vld [vmem:[%s1 + $0x20] sm:$0xf]
  %v28 = vld [vmem:[%s1 + $0x24] sm:$0xf]
  %v29 = vld [vmem:[%s1 + $0x28] sm:$0xf]
  %v30 = vld [vmem:[%s1 + $0x2c] sm:$0xf]
  %v31 = vld [vmem:[%s1 + $0x30] sm:$0xf]
  %v32 = vld [vmem:[%s1 + $0x34] sm:$0x3]
  %v47 = vunpack.c.l.b16 %v19
  %v48 = vunpack.c.l.b16 %v20
  %v49 = vunpack.c.l.b16 %v21
  %v50 = vunpack.c.l.b16 %v22
  %v51 = vunpack.c.l.b16 %v23
  %v52 = vunpack.c.l.b16 %v24
  %v53 = vunpack.c.l.b16 %v25
  %v54 = vunpack.c.l.b16 %v26
  %v55 = vunpack.c.l.b16 %v27
  %v56 = vunpack.c.l.b16 %v28
  %v57 = vunpack.c.l.b16 %v29
  %v58 = vunpack.c.l.b16 %v30
  %v59 = vunpack.c.l.b16 %v31
  %v60 = vunpack.c.l.b16 %v32
  %v61 = vpack.c.b16 %v48, %v47
  %v62 = vpack.c.b16 %v50, %v49
  %v63 = vpack.c.b16 %v52, %v51
  %v64 = vpack.c.b16 %v54, %v53
  %v65 = vpack.c.b16 %v56, %v55
  %v66 = vpack.c.b16 %v58, %v57
  %v67 = vpack.c.b16 %v60, %v59
  %vm74 = vcmask 883712
  %v76 = vsel %vm74, %v18, 0
  %vm78 = vcmask 1045504
  %v80 = vsel %vm78, %v67, 0
  %82 = vmatprep.subr.bf16.mxu0 0
  %83 = vmatpush1.bf16.msra.mxu0 0
  %84 = vmatprep.subr.bf16.mxu0 0
  %85 = vmatpush1.bf16.msra.mxu0 %v80
  %86 = vmatprep.subr.bf16.mxu0 0
  %87 = vmatpush1.bf16.msra.mxu0 %v66
  %88 = vmatprep.subr.bf16.mxu0 0
  %89 = vmatpush1.bf16.msra.mxu0 %v65
  %90 = vmatprep.subr.bf16.mxu0 0
  %91 = vmatpush1.bf16.msra.mxu0 %v64
  %92 = vmatprep.subr.bf16.mxu0 0
  %93 = vmatpush1.bf16.msra.mxu0 %v63
  %94 = vmatprep.subr.bf16.mxu0 0
  %95 = vmatpush1.bf16.msra.mxu0 %v62
  %96 = vmatprep.subr.bf16.mxu0 0
  %97 = vmatpush1.bf16.msra.mxu0 %v61
  %98 = vmatprep.subr.bf16.mxu0 0
  %99 = vmatpush2.bf16.msra.mxu0 0
  %100 = vmatprep.subr.bf16.mxu0 0
  %101 = vmatpush2.bf16.msra.mxu0 0
  %102 = vmatprep.subr.bf16.mxu0 0
  %103 = vmatpush2.bf16.msra.mxu0 0
  %104 = vmatprep.subr.bf16.mxu0 0
  %105 = vmatpush2.bf16.msra.mxu0 0
  %106 = vmatprep.subr.bf16.mxu0 0
  %107 = vmatpush2.bf16.msra.mxu0 0
  %108 = vmatprep.subr.bf16.mxu0 0
  %109 = vmatpush2.bf16.msra.mxu0 0
  %110 = vmatprep.subr.bf16.mxu0 0
  %111 = vmatpush2.bf16.msra.mxu0 0
  %112 = vmatprep.subr.bf16.mxu0 0
  %113 = vmatpush2.bf16.msra.mxu0 0
  %114 = vmatprep.mubr.bf16.mxu0 0
  %115 = vmatmul.mubr.bf16.gmra.mxu0 %v76
  %v116 = vpop.f32.mrf.mxu0
  %v117 = vadd.f32 0.0, %v116
  %v118 = vpop.f32.mrf.mxu0
  %v119 = vpop.f32.mrf.mxu0
  %v120 = vpop.f32.mrf.mxu0
  %121 = vdwg.mxu0
  %v122 = vld [vmem:[%s2] sm:$0xff]
  %124 = vset.pattern.permute.xlu0 0
  %125 = vperm.xlu0 %124, %v122
  %v126 = vpop.permute.xlu0 %125
  %v128 = vmul.f32 %v117, %v126
  %v129 = vld [vmem:[%s3] sm:$0xff]
  %131 = vset.pattern.permute.xlu0 0
  %132 = vperm.xlu0 %131, %v129
  %v133 = vpop.permute.xlu0 %132
  %v135 = vadd.f32 %v128, %v133
  %v136 = vmax.f32 %v135, 0.0
  %137 = vst [vmem:[%s4] sm:$0xff] %v136
  // Predicated region
  $region18: #{_lambda_.25} parent=0 // pred_check
    _
  $region19: #{_lambda_.25} parent=0 // pred_check_branch
    %139 = sbr.rel (0) target = $region21
  $region20: #{_lambda_.25} parent=0 // pred_region
    _
  $region21: #{_lambda_.25} parent=0 // pred_fallthru
    _
  // Predicated region
  $region22: #{_lambda_.25} parent=0 // pred_check
    _
  $region23: #{_lambda_.25} parent=0 // pred_check_branch
    %141 = sbr.rel (0) target = $region25
  $region24: #{_lambda_.25} parent=0 // pred_region
    _
  $region25: #{_lambda_.25} parent=0 // pred_fallthru
    _

// kernel: _lambda_.26
$region0: #{_lambda_.26}
  #allocation0 [shape = 'u32[]', space=smem, size = 0x4, offset = 0x4, fixed_abs, tag = 'smem constant byte address 0x4 - core index']
  #allocation1 [shape = 'u32[144,128]{1,0:T(1,128)}', space=vmem, size = 0x12000, scoped, tag = 'internal scratch']
  %s0 = inlined_call_operand.vmem [shape: bf16[8,216], index: 0, kind: input, shape index: {}]
  %s1 = inlined_call_operand.vmem [shape: bf16[216,128], index: 1, kind: input, shape index: {}]
  %s2 = inlined_call_operand.vmem [shape: f32[8,1], index: 2, kind: input, shape index: {}]
  %s3 = inlined_call_operand.vmem [shape: f32[8,1], index: 3, kind: input, shape index: {}]
  %s4 = inlined_call_operand.vmem [shape: f32[8,128], index: 4, kind: input, shape index: {}]
  %s5 = inlined_call_operand.vmem [shape: f32[8,128], index: 5, kind: output, shape index: {}]
  %s6 = sld [smem:[#allocation0]]
  $region30: #{_lambda_.26} parent=0
    _
  %s8 = ssub.s32 1, %s6
  %s9 = scalar_select 0, %s8, %s6
  // Predicated region
  $region2: #{_lambda_.26} parent=0 // pred_check
    _
  $region3: #{_lambda_.26} parent=0 // pred_check_branch
    %11 = sbr.rel (0) target = $region5
  $region4: #{_lambda_.26} parent=0 // pred_region
    _
  $region5: #{_lambda_.26} parent=0 // pred_fallthru
    _
  // Predicated region
  $region6: #{_lambda_.26} parent=0 // pred_check
    _
  $region7: #{_lambda_.26} parent=0 // pred_check_branch
    %13 = sbr.rel (0) target = $region9
  $region8: #{_lambda_.26} parent=0 // pred_region
    _
  $region9: #{_lambda_.26} parent=0 // pred_fallthru
    _
  // Predicated region
  $region10: #{_lambda_.26} parent=0 // pred_check
    _
  $region11: #{_lambda_.26} parent=0 // pred_check_branch
    %15 = sbr.rel (0) target = $region13
  $region12: #{_lambda_.26} parent=0 // pred_region
    _
  $region13: #{_lambda_.26} parent=0 // pred_fallthru
    _
  // Predicated region
  $region14: #{_lambda_.26} parent=0 // pred_check
    _
  $region15: #{_lambda_.26} parent=0 // pred_check_branch
    %17 = sbr.rel (0) target = $region17
  $region16: #{_lambda_.26} parent=0 // pred_region
    _
  $region17: #{_lambda_.26} parent=0 // pred_fallthru
    _
  // Predicated region
  $region18: #{_lambda_.26} parent=0 // pred_check
    _
  $region19: #{_lambda_.26} parent=0 // pred_check_branch
    %19 = sbr.rel (0) target = $region21
  $region20: #{_lambda_.26} parent=0 // pred_region
    _
  $region21: #{_lambda_.26} parent=0 // pred_fallthru
    _
  %v21 = vld [vmem:[%s0] sm:$0xff]
  %v22 = vld [vmem:[%s1] sm:$0xf]
  %v23 = vld [vmem:[%s1 + $0x4] sm:$0xf]
  %v24 = vld [vmem:[%s1 + $0x8] sm:$0xf]
  %v25 = vld [vmem:[%s1 + $0xc] sm:$0xf]
  %v26 = vld [vmem:[%s1 + $0x10] sm:$0xf]
  %v27 = vld [vmem:[%s1 + $0x14] sm:$0xf]
  %v28 = vld [vmem:[%s1 + $0x18] sm:$0xf]
  %v29 = vld [vmem:[%s1 + $0x1c] sm:$0xf]
  %v30 = vld [vmem:[%s1 + $0x20] sm:$0xf]
  %v31 = vld [vmem:[%s1 + $0x24] sm:$0xf]
  %v32 = vld [vmem:[%s1 + $0x28] sm:$0xf]
  %v33 = vld [vmem:[%s1 + $0x2c] sm:$0xf]
  %v34 = vld [vmem:[%s1 + $0x30] sm:$0xf]
  %v35 = vld [vmem:[%s1 + $0x34] sm:$0xf]
  %v36 = vld [vmem:[%s1 + $0x38] sm:$0xf]
  %v37 = vld [vmem:[%s1 + $0x3c] sm:$0xf]
  %v38 = vld [vmem:[%s1 + $0x40] sm:$0xf]
  %v39 = vld [vmem:[%s1 + $0x44] sm:$0xf]
  %v40 = vld [vmem:[%s1 + $0x48] sm:$0xf]
  %v41 = vld [vmem:[%s1 + $0x4c] sm:$0xf]
  %v42 = vld [vmem:[%s1 + $0x50] sm:$0xf]
  %v43 = vld [vmem:[%s1 + $0x54] sm:$0xf]
  %v44 = vld [vmem:[%s1 + $0x58] sm:$0xf]
  %v45 = vld [vmem:[%s1 + $0x5c] sm:$0xf]
  %v46 = vld [vmem:[%s1 + $0x60] sm:$0xf]
  %v47 = vld [vmem:[%s1 + $0x64] sm:$0xf]
  %v48 = vld [vmem:[%s1 + $0x68] sm:$0xf]
  %v50 = vunpack.c.l.b16 %v21
  %v51 = vunpack.c.h.b16 %v21
  %v52 = vpack.c.b16 %v50, %v50
  %v53 = vpack.c.b16 %v51, %v51
  %v82 = vunpack.c.l.b16 %v22
  %v83 = vunpack.c.l.b16 %v23
  %v84 = vunpack.c.l.b16 %v24
  %v85 = vunpack.c.l.b16 %v25
  %v86 = vunpack.c.l.b16 %v26
  %v87 = vunpack.c.l.b16 %v27
  %v88 = vunpack.c.l.b16 %v28
  %v89 = vunpack.c.l.b16 %v29
  %v90 = vunpack.c.l.b16 %v30
  %v91 = vunpack.c.l.b16 %v31
  %v92 = vunpack.c.l.b16 %v32
  %v93 = vunpack.c.l.b16 %v33
  %v94 = vunpack.c.l.b16 %v34
  %v95 = vunpack.c.l.b16 %v35
  %v96 = vunpack.c.l.b16 %v36
  %v97 = vunpack.c.l.b16 %v37
  %v98 = vunpack.c.l.b16 %v38
  %v99 = vunpack.c.l.b16 %v39
  %v100 = vunpack.c.l.b16 %v40
  %v101 = vunpack.c.l.b16 %v41
  %v102 = vunpack.c.l.b16 %v42
  %v103 = vunpack.c.l.b16 %v43
  %v104 = vunpack.c.l.b16 %v44
  %v105 = vunpack.c.l.b16 %v45
  %v106 = vunpack.c.l.b16 %v46
  %v107 = vunpack.c.l.b16 %v47
  %v108 = vunpack.c.l.b16 %v48
  %v109 = vpack.c.b16 %v83, %v82
  %v110 = vpack.c.b16 %v85, %v84
  %v111 = vpack.c.b16 %v87, %v86
  %v112 = vpack.c.b16 %v89, %v88
  %v113 = vpack.c.b16 %v91, %v90
  %v114 = vpack.c.b16 %v93, %v92
  %v115 = vpack.c.b16 %v95, %v94
  %v116 = vpack.c.b16 %v97, %v96
  %v117 = vpack.c.b16 %v99, %v98
  %v118 = vpack.c.b16 %v101, %v100
  %v119 = vpack.c.b16 %v103, %v102
  %v120 = vpack.c.b16 %v105, %v104
  %v121 = vpack.c.b16 %v107, %v106
  %v122 = vpack.c.b16 %v108, %v108
  %vm136 = vcmask 719872
  %v138 = vsel %vm136, %v53, 0
  %vm140 = vcmask 1043456
  %v142 = vsel %vm140, %v122, 0
  %144 = vmatprep.subr.bf16.mxu0 0
  %145 = vmatpush1.bf16.msra.mxu0 %v116
  %146 = vmatprep.subr.bf16.mxu0 0
  %147 = vmatpush1.bf16.msra.mxu0 %v115
  %148 = vmatprep.subr.bf16.mxu0 0
  %149 = vmatpush1.bf16.msra.mxu0 %v114
  %150 = vmatprep.subr.bf16.mxu0 0
  %151 = vmatpush1.bf16.msra.mxu0 %v113
  %152 = vmatprep.subr.bf16.mxu0 0
  %153 = vmatpush1.bf16.msra.mxu0 %v112
  %154 = vmatprep.subr.bf16.mxu0 0
  %155 = vmatpush1.bf16.msra.mxu0 %v111
  %156 = vmatprep.subr.bf16.mxu0 0
  %157 = vmatpush1.bf16.msra.mxu0 %v110
  %158 = vmatprep.subr.bf16.mxu0 0
  %159 = vmatpush1.bf16.msra.mxu0 %v109
  %160 = vmatprep.subr.bf16.mxu0 0
  %161 = vmatpush2.bf16.msra.mxu0 0
  %162 = vmatprep.subr.bf16.mxu0 0
  %163 = vmatpush2.bf16.msra.mxu0 0
  %164 = vmatprep.subr.bf16.mxu0 0
  %165 = vmatpush2.bf16.msra.mxu0 %v142
  %166 = vmatprep.subr.bf16.mxu0 0
  %167 = vmatpush2.bf16.msra.mxu0 %v121
  %168 = vmatprep.subr.bf16.mxu0 0
  %169 = vmatpush2.bf16.msra.mxu0 %v120
  %170 = vmatprep.subr.bf16.mxu0 0
  %171 = vmatpush2.bf16.msra.mxu0 %v119
  %172 = vmatprep.subr.bf16.mxu0 0
  %173 = vmatpush2.bf16.msra.mxu0 %v118
  %174 = vmatprep.subr.bf16.mxu0 0
  %175 = vmatpush2.bf16.msra.mxu0 %v117
  %176 = vmatprep.mubr.bf16.mxu0 %v138
  %177 = vmatmul.mubr.bf16.gmra.mxu0 %v52
  %v178 = vpop.f32.mrf.mxu0
  %v179 = vadd.f32 0.0, %v178
  %v180 = vpop.f32.mrf.mxu0
  %v181 = vpop.f32.mrf.mxu0
  %v182 = vpop.f32.mrf.mxu0
  %183 = vdwg.mxu0
  %v184 = vld [vmem:[%s2] sm:$0xff]
  %186 = vset.pattern.permute.xlu0 0
  %187 = vperm.xlu0 %186, %v184
  %v188 = vpop.permute.xlu0 %187
  %v190 = vmul.f32 %v179, %v188
  %v191 = vld [vmem:[%s3] sm:$0xff]
  %193 = vset.pattern.permute.xlu0 0
  %194 = vperm.xlu0 %193, %v191
  %v195 = vpop.permute.xlu0 %194
  %v197 = vadd.f32 %v190, %v195
  %v198 = vld [vmem:[%s4] sm:$0xff]
  %v199 = vadd.f32 %v197, %v198
  %v200 = vmax.f32 %v199, 0.0
  %201 = vst [vmem:[%s5] sm:$0xff] %v200
  // Predicated region
  $region22: #{_lambda_.26} parent=0 // pred_check
    _
  $region23: #{_lambda_.26} parent=0 // pred_check_branch
    %203 = sbr.rel (0) target = $region25
  $region24: #{_lambda_.26} parent=0 // pred_region
    _
  $region25: #{_lambda_.26} parent=0 // pred_fallthru
    _
  // Predicated region
  $region26: #{_lambda_.26} parent=0 // pred_check
    _
  $region27: #{_lambda_.26} parent=0 // pred_check_branch
    %205 = sbr.rel (0) target = $region29
  $region28: #{_lambda_.26} parent=0 // pred_region
    _
  $region29: #{_lambda_.26} parent=0 // pred_fallthru
    _

// kernel: _lambda_.27
$region0: #{_lambda_.27}
  #allocation0 [shape = 'u32[]', space=smem, size = 0x4, offset = 0x4, fixed_abs, tag = 'smem constant byte address 0x4 - core index']
  #allocation1 [shape = 'u32[144,128]{1,0:T(1,128)}', space=vmem, size = 0x12000, scoped, tag = 'internal scratch']
  %s0 = inlined_call_operand.vmem [shape: bf16[8,216], index: 0, kind: input, shape index: {}]
  %s1 = inlined_call_operand.vmem [shape: bf16[216,128], index: 1, kind: input, shape index: {}]
  %s2 = inlined_call_operand.vmem [shape: f32[8,1], index: 2, kind: input, shape index: {}]
  %s3 = inlined_call_operand.vmem [shape: f32[8,1], index: 3, kind: input, shape index: {}]
  %s4 = inlined_call_operand.vmem [shape: f32[8,128], index: 4, kind: output, shape index: {}]
  %s5 = sld [smem:[#allocation0]]
  $region26: #{_lambda_.27} parent=0
    _
  %s7 = ssub.s32 1, %s5
  %s8 = scalar_select 0, %s7, %s5
  // Predicated region
  $region2: #{_lambda_.27} parent=0 // pred_check
    _
  $region3: #{_lambda_.27} parent=0 // pred_check_branch
    %10 = sbr.rel (0) target = $region5
  $region4: #{_lambda_.27} parent=0 // pred_region
    _
  $region5: #{_lambda_.27} parent=0 // pred_fallthru
    _
  // Predicated region
  $region6: #{_lambda_.27} parent=0 // pred_check
    _
  $region7: #{_lambda_.27} parent=0 // pred_check_branch
    %12 = sbr.rel (0) target = $region9
  $region8: #{_lambda_.27} parent=0 // pred_region
    _
  $region9: #{_lambda_.27} parent=0 // pred_fallthru
    _
  // Predicated region
  $region10: #{_lambda_.27} parent=0 // pred_check
    _
  $region11: #{_lambda_.27} parent=0 // pred_check_branch
    %14 = sbr.rel (0) target = $region13
  $region12: #{_lambda_.27} parent=0 // pred_region
    _
  $region13: #{_lambda_.27} parent=0 // pred_fallthru
    _
  // Predicated region
  $region14: #{_lambda_.27} parent=0 // pred_check
    _
  $region15: #{_lambda_.27} parent=0 // pred_check_branch
    %16 = sbr.rel (0) target = $region17
  $region16: #{_lambda_.27} parent=0 // pred_region
    _
  $region17: #{_lambda_.27} parent=0 // pred_fallthru
    _
  %v18 = vld [vmem:[%s0] sm:$0xff]
  %v19 = vld [vmem:[%s1] sm:$0xf]
  %v20 = vld [vmem:[%s1 + $0x4] sm:$0xf]
  %v21 = vld [vmem:[%s1 + $0x8] sm:$0xf]
  %v22 = vld [vmem:[%s1 + $0xc] sm:$0xf]
  %v23 = vld [vmem:[%s1 + $0x10] sm:$0xf]
  %v24 = vld [vmem:[%s1 + $0x14] sm:$0xf]
  %v25 = vld [vmem:[%s1 + $0x18] sm:$0xf]
  %v26 = vld [vmem:[%s1 + $0x1c] sm:$0xf]
  %v27 = vld [vmem:[%s1 + $0x20] sm:$0xf]
  %v28 = vld [vmem:[%s1 + $0x24] sm:$0xf]
  %v29 = vld [vmem:[%s1 + $0x28] sm:$0xf]
  %v30 = vld [vmem:[%s1 + $0x2c] sm:$0xf]
  %v31 = vld [vmem:[%s1 + $0x30] sm:$0xf]
  %v32 = vld [vmem:[%s1 + $0x34] sm:$0xf]
  %v33 = vld [vmem:[%s1 + $0x38] sm:$0xf]
  %v34 = vld [vmem:[%s1 + $0x3c] sm:$0xf]
  %v35 = vld [vmem:[%s1 + $0x40] sm:$0xf]
  %v36 = vld [vmem:[%s1 + $0x44] sm:$0xf]
  %v37 = vld [vmem:[%s1 + $0x48] sm:$0xf]
  %v38 = vld [vmem:[%s1 + $0x4c] sm:$0xf]
  %v39 = vld [vmem:[%s1 + $0x50] sm:$0xf]
  %v40 = vld [vmem:[%s1 + $0x54] sm:$0xf]
  %v41 = vld [vmem:[%s1 + $0x58] sm:$0xf]
  %v42 = vld [vmem:[%s1 + $0x5c] sm:$0xf]
  %v43 = vld [vmem:[%s1 + $0x60] sm:$0xf]
  %v44 = vld [vmem:[%s1 + $0x64] sm:$0xf]
  %v45 = vld [vmem:[%s1 + $0x68] sm:$0xf]
  %v47 = vunpack.c.l.b16 %v18
  %v48 = vunpack.c.h.b16 %v18
  %v49 = vpack.c.b16 %v47, %v47
  %v50 = vpack.c.b16 %v48, %v48
  %v79 = vunpack.c.l.b16 %v19
  %v80 = vunpack.c.l.b16 %v20
  %v81 = vunpack.c.l.b16 %v21
  %v82 = vunpack.c.l.b16 %v22
  %v83 = vunpack.c.l.b16 %v23
  %v84 = vunpack.c.l.b16 %v24
  %v85 = vunpack.c.l.b16 %v25
  %v86 = vunpack.c.l.b16 %v26
  %v87 = vunpack.c.l.b16 %v27
  %v88 = vunpack.c.l.b16 %v28
  %v89 = vunpack.c.l.b16 %v29
  %v90 = vunpack.c.l.b16 %v30
  %v91 = vunpack.c.l.b16 %v31
  %v92 = vunpack.c.l.b16 %v32
  %v93 = vunpack.c.l.b16 %v33
  %v94 = vunpack.c.l.b16 %v34
  %v95 = vunpack.c.l.b16 %v35
  %v96 = vunpack.c.l.b16 %v36
  %v97 = vunpack.c.l.b16 %v37
  %v98 = vunpack.c.l.b16 %v38
  %v99 = vunpack.c.l.b16 %v39
  %v100 = vunpack.c.l.b16 %v40
  %v101 = vunpack.c.l.b16 %v41
  %v102 = vunpack.c.l.b16 %v42
  %v103 = vunpack.c.l.b16 %v43
  %v104 = vunpack.c.l.b16 %v44
  %v105 = vunpack.c.l.b16 %v45
  %v106 = vpack.c.b16 %v80, %v79
  %v107 = vpack.c.b16 %v82, %v81
  %v108 = vpack.c.b16 %v84, %v83
  %v109 = vpack.c.b16 %v86, %v85
  %v110 = vpack.c.b16 %v88, %v87
  %v111 = vpack.c.b16 %v90, %v89
  %v112 = vpack.c.b16 %v92, %v91
  %v113 = vpack.c.b16 %v94, %v93
  %v114 = vpack.c.b16 %v96, %v95
  %v115 = vpack.c.b16 %v98, %v97
  %v116 = vpack.c.b16 %v100, %v99
  %v117 = vpack.c.b16 %v102, %v101
  %v118 = vpack.c.b16 %v104, %v103
  %v119 = vpack.c.b16 %v105, %v105
  %vm133 = vcmask 719872
  %v135 = vsel %vm133, %v50, 0
  %vm137 = vcmask 1043456
  %v139 = vsel %vm137, %v119, 0
  %141 = vmatprep.subr.bf16.mxu0 0
  %142 = vmatpush1.bf16.msra.mxu0 %v113
  %143 = vmatprep.subr.bf16.mxu0 0
  %144 = vmatpush1.bf16.msra.mxu0 %v112
  %145 = vmatprep.subr.bf16.mxu0 0
  %146 = vmatpush1.bf16.msra.mxu0 %v111
  %147 = vmatprep.subr.bf16.mxu0 0
  %148 = vmatpush1.bf16.msra.mxu0 %v110
  %149 = vmatprep.subr.bf16.mxu0 0
  %150 = vmatpush1.bf16.msra.mxu0 %v109
  %151 = vmatprep.subr.bf16.mxu0 0
  %152 = vmatpush1.bf16.msra.mxu0 %v108
  %153 = vmatprep.subr.bf16.mxu0 0
  %154 = vmatpush1.bf16.msra.mxu0 %v107
  %155 = vmatprep.subr.bf16.mxu0 0
  %156 = vmatpush1.bf16.msra.mxu0 %v106
  %157 = vmatprep.subr.bf16.mxu0 0
  %158 = vmatpush2.bf16.msra.mxu0 0
  %159 = vmatprep.subr.bf16.mxu0 0
  %160 = vmatpush2.bf16.msra.mxu0 0
  %161 = vmatprep.subr.bf16.mxu0 0
  %162 = vmatpush2.bf16.msra.mxu0 %v139
  %163 = vmatprep.subr.bf16.mxu0 0
  %164 = vmatpush2.bf16.msra.mxu0 %v118
  %165 = vmatprep.subr.bf16.mxu0 0
  %166 = vmatpush2.bf16.msra.mxu0 %v117
  %167 = vmatprep.subr.bf16.mxu0 0
  %168 = vmatpush2.bf16.msra.mxu0 %v116
  %169 = vmatprep.subr.bf16.mxu0 0
  %170 = vmatpush2.bf16.msra.mxu0 %v115
  %171 = vmatprep.subr.bf16.mxu0 0
  %172 = vmatpush2.bf16.msra.mxu0 %v114
  %173 = vmatprep.mubr.bf16.mxu0 %v135
  %174 = vmatmul.mubr.bf16.gmra.mxu0 %v49
  %v175 = vpop.f32.mrf.mxu0
  %v176 = vadd.f32 0.0, %v175
  %v177 = vpop.f32.mrf.mxu0
  %v178 = vpop.f32.mrf.mxu0
  %v179 = vpop.f32.mrf.mxu0
  %180 = vdwg.mxu0
  %v181 = vld [vmem:[%s2] sm:$0xff]
  %183 = vset.pattern.permute.xlu0 0
  %184 = vperm.xlu0 %183, %v181
  %v185 = vpop.permute.xlu0 %184
  %v187 = vmul.f32 %v176, %v185
  %v188 = vld [vmem:[%s3] sm:$0xff]
  %190 = vset.pattern.permute.xlu0 0
  %191 = vperm.xlu0 %190, %v188
  %v192 = vpop.permute.xlu0 %191
  %v194 = vadd.f32 %v187, %v192
  %v195 = vmax.f32 %v194, 0.0
  %196 = vst [vmem:[%s4] sm:$0xff] %v195
  // Predicated region
  $region18: #{_lambda_.27} parent=0 // pred_check
    _
  $region19: #{_lambda_.27} parent=0 // pred_check_branch
    %198 = sbr.rel (0) target = $region21
  $region20: #{_lambda_.27} parent=0 // pred_region
    _
  $region21: #{_lambda_.27} parent=0 // pred_fallthru
    _
  // Predicated region
  $region22: #{_lambda_.27} parent=0 // pred_check
    _
  $region23: #{_lambda_.27} parent=0 // pred_check_branch
    %200 = sbr.rel (0) target = $region25
  $region24: #{_lambda_.27} parent=0 // pred_region
    _
  $region25: #{_lambda_.27} parent=0 // pred_fallthru
    _

// kernel: _lambda_.29
$region0: #{_lambda_.29}
  #allocation0 [shape = 'u32[]', space=smem, size = 0x4, offset = 0x4, fixed_abs, tag = 'smem constant byte address 0x4 - core index']
  #allocation1 [shape = 'u32[144,128]{1,0:T(1,128)}', space=vmem, size = 0x12000, scoped, tag = 'internal scratch']
  %s0 = inlined_call_operand.vmem [shape: bf16[16,8], index: 0, kind: input, shape index: {}]
  %s1 = inlined_call_operand.vmem [shape: bf16[8,128], index: 1, kind: input, shape index: {}]
  %s2 = inlined_call_operand.vmem [shape: f32[16,1], index: 2, kind: input, shape index: {}]
  %s3 = inlined_call_operand.vmem [shape: f32[16,1], index: 3, kind: input, shape index: {}]
  %s4 = inlined_call_operand.vmem [shape: f32[16,128], index: 4, kind: output, shape index: {}]
  %s5 = sld [smem:[#allocation0]]
  $region26: #{_lambda_.29} parent=0
    _
  %s7 = ssub.s32 1, %s5
  %s8 = scalar_select 0, %s7, %s5
  // Predicated region
  $region2: #{_lambda_.29} parent=0 // pred_check
    _
  $region3: #{_lambda_.29} parent=0 // pred_check_branch
    %10 = sbr.rel (0) target = $region5
  $region4: #{_lambda_.29} parent=0 // pred_region
    _
  $region5: #{_lambda_.29} parent=0 // pred_fallthru
    _
  // Predicated region
  $region6: #{_lambda_.29} parent=0 // pred_check
    _
  $region7: #{_lambda_.29} parent=0 // pred_check_branch
    %12 = sbr.rel (0) target = $region9
  $region8: #{_lambda_.29} parent=0 // pred_region
    _
  $region9: #{_lambda_.29} parent=0 // pred_fallthru
    _
  // Predicated region
  $region10: #{_lambda_.29} parent=0 // pred_check
    _
  $region11: #{_lambda_.29} parent=0 // pred_check_branch
    %14 = sbr.rel (0) target = $region13
  $region12: #{_lambda_.29} parent=0 // pred_region
    _
  $region13: #{_lambda_.29} parent=0 // pred_fallthru
    _
  // Predicated region
  $region14: #{_lambda_.29} parent=0 // pred_check
    _
  $region15: #{_lambda_.29} parent=0 // pred_check_branch
    %16 = sbr.rel (0) target = $region17
  $region16: #{_lambda_.29} parent=0 // pred_region
    _
  $region17: #{_lambda_.29} parent=0 // pred_fallthru
    _
  %v18 = vld [vmem:[%s0] sm:$0xf]
  %v19 = vld [vmem:[%s0 + $0x4] sm:$0xf]
  %v20 = vld [vmem:[%s1] sm:$0xf]
  %v23 = vunpack.c.l.b16 %v18
  %v24 = vunpack.c.l.b16 %v19
  %v25 = vpack.c.b16 %v24, %v23
  %vm26 = vcmask 64512
  %v28 = vsel %vm26, %v25, 0
  %vm30 = vcmask 1043456
  %v32 = vsel %vm30, %v20, 0
  %34 = vmatprep.subr.bf16.mxu0 0
  %35 = vmatpush1.bf16.msra.mxu0 0
  %36 = vmatprep.subr.bf16.mxu0 0
  %37 = vmatpush1.bf16.msra.mxu0 0
  %38 = vmatprep.subr.bf16.mxu0 0
  %39 = vmatpush1.bf16.msra.mxu0 0
  %40 = vmatprep.subr.bf16.mxu0 0
  %41 = vmatpush1.bf16.msra.mxu0 0
  %42 = vmatprep.subr.bf16.mxu0 0
  %43 = vmatpush1.bf16.msra.mxu0 0
  %44 = vmatprep.subr.bf16.mxu0 0
  %45 = vmatpush1.bf16.msra.mxu0 0
  %46 = vmatprep.subr.bf16.mxu0 0
  %47 = vmatpush1.bf16.msra.mxu0 0
  %48 = vmatprep.subr.bf16.mxu0 0
  %49 = vmatpush1.bf16.msra.mxu0 %v32
  %50 = vmatprep.subr.bf16.mxu0 0
  %51 = vmatpush2.bf16.msra.mxu0 0
  %52 = vmatprep.subr.bf16.mxu0 0
  %53 = vmatpush2.bf16.msra.mxu0 0
  %54 = vmatprep.subr.bf16.mxu0 0
  %55 = vmatpush2.bf16.msra.mxu0 0
  %56 = vmatprep.subr.bf16.mxu0 0
  %57 = vmatpush2.bf16.msra.mxu0 0
  %58 = vmatprep.subr.bf16.mxu0 0
  %59 = vmatpush2.bf16.msra.mxu0 0
  %60 = vmatprep.subr.bf16.mxu0 0
  %61 = vmatpush2.bf16.msra.mxu0 0
  %62 = vmatprep.subr.bf16.mxu0 0
  %63 = vmatpush2.bf16.msra.mxu0 0
  %64 = vmatprep.subr.bf16.mxu0 0
  %65 = vmatpush2.bf16.msra.mxu0 0
  %66 = vmatprep.mubr.bf16.mxu0 0
  %67 = vmatmul.mubr.bf16.gmra.mxu0 %v28
  %v68 = vpop.f32.mrf.mxu0
  %v69 = vadd.f32 0.0, %v68
  %v70 = vpop.f32.mrf.mxu0
  %v71 = vpop.f32.mrf.mxu0
  %v72 = vadd.f32 0.0, %v71
  %v73 = vpop.f32.mrf.mxu0
  %74 = vdwg.mxu0
  %v75 = vld [vmem:[%s2] sm:$0xff]
  %v76 = vld [vmem:[%s2 + $0x8] sm:$0xff]
  %78 = vset.pattern.permute.xlu0 0
  %79 = vperm.xlu0 %78, %v75
  %v80 = vpop.permute.xlu0 %79
  %83 = vset.pattern.permute.xlu0 0
  %84 = vperm.xlu0 %83, %v76
  %v85 = vpop.permute.xlu0 %84
  %v87 = vmul.f32 %v69, %v80
  %v88 = vmul.f32 %v72, %v85
  %v89 = vld [vmem:[%s3] sm:$0xff]
  %v90 = vld [vmem:[%s3 + $0x8] sm:$0xff]
  %92 = vset.pattern.permute.xlu0 0
  %93 = vperm.xlu0 %92, %v89
  %v94 = vpop.permute.xlu0 %93
  %97 = vset.pattern.permute.xlu0 0
  %98 = vperm.xlu0 %97, %v90
  %v99 = vpop.permute.xlu0 %98
  %v101 = vadd.f32 %v87, %v94
  %v102 = vadd.f32 %v88, %v99
  %103 = vst [vmem:[%s4] sm:$0xff] %v101
  %104 = vst [vmem:[%s4 + $0x8] sm:$0xff] %v102
  // Predicated region
  $region18: #{_lambda_.29} parent=0 // pred_check
    _
  $region19: #{_lambda_.29} parent=0 // pred_check_branch
    %106 = sbr.rel (0) target = $region21
  $region20: #{_lambda_.29} parent=0 // pred_region
    _
  $region21: #{_lambda_.29} parent=0 // pred_fallthru
    _
  // Predicated region
  $region22: #{_lambda_.29} parent=0 // pred_check
    _
  $region23: #{_lambda_.29} parent=0 // pred_check_branch
    %108 = sbr.rel (0) target = $region25
  $region24: #{_lambda_.29} parent=0 // pred_region
    _
  $region25: #{_lambda_.29} parent=0 // pred_fallthru
    _

// kernel: _lambda_.30
$region0: #{_lambda_.30}
  #allocation0 [shape = 'u32[]', space=smem, size = 0x4, offset = 0x4, fixed_abs, tag = 'smem constant byte address 0x4 - core index']
  #allocation1 [shape = 'u32[144,128]{1,0:T(1,128)}', space=vmem, size = 0x12000, scoped, tag = 'internal scratch']
  %s0 = inlined_call_operand.vmem [shape: bf16[16,216], index: 0, kind: input, shape index: {}]
  %s1 = inlined_call_operand.vmem [shape: bf16[216,128], index: 1, kind: input, shape index: {}]
  %s2 = inlined_call_operand.vmem [shape: f32[16,1], index: 2, kind: input, shape index: {}]
  %s3 = inlined_call_operand.vmem [shape: f32[16,1], index: 3, kind: input, shape index: {}]
  %s4 = inlined_call_operand.vmem [shape: f32[16,128], index: 4, kind: output, shape index: {}]
  %s5 = sld [smem:[#allocation0]]
  $region26: #{_lambda_.30} parent=0
    _
  %s7 = ssub.s32 1, %s5
  %s8 = scalar_select 0, %s7, %s5
  // Predicated region
  $region2: #{_lambda_.30} parent=0 // pred_check
    _
  $region3: #{_lambda_.30} parent=0 // pred_check_branch
    %10 = sbr.rel (0) target = $region5
  $region4: #{_lambda_.30} parent=0 // pred_region
    _
  $region5: #{_lambda_.30} parent=0 // pred_fallthru
    _
  // Predicated region
  $region6: #{_lambda_.30} parent=0 // pred_check
    _
  $region7: #{_lambda_.30} parent=0 // pred_check_branch
    %12 = sbr.rel (0) target = $region9
  $region8: #{_lambda_.30} parent=0 // pred_region
    _
  $region9: #{_lambda_.30} parent=0 // pred_fallthru
    _
  // Predicated region
  $region10: #{_lambda_.30} parent=0 // pred_check
    _
  $region11: #{_lambda_.30} parent=0 // pred_check_branch
    %14 = sbr.rel (0) target = $region13
  $region12: #{_lambda_.30} parent=0 // pred_region
    _
  $region13: #{_lambda_.30} parent=0 // pred_fallthru
    _
  // Predicated region
  $region14: #{_lambda_.30} parent=0 // pred_check
    _
  $region15: #{_lambda_.30} parent=0 // pred_check_branch
    %16 = sbr.rel (0) target = $region17
  $region16: #{_lambda_.30} parent=0 // pred_region
    _
  $region17: #{_lambda_.30} parent=0 // pred_fallthru
    _
  %v18 = vld [vmem:[%s0] sm:$0xff]
  %v19 = vld [vmem:[%s0 + $0x8] sm:$0xff]
  %v20 = vld [vmem:[%s1] sm:$0xf]
  %v21 = vld [vmem:[%s1 + $0x4] sm:$0xf]
  %v22 = vld [vmem:[%s1 + $0x8] sm:$0xf]
  %v23 = vld [vmem:[%s1 + $0xc] sm:$0xf]
  %v24 = vld [vmem:[%s1 + $0x10] sm:$0xf]
  %v25 = vld [vmem:[%s1 + $0x14] sm:$0xf]
  %v26 = vld [vmem:[%s1 + $0x18] sm:$0xf]
  %v27 = vld [vmem:[%s1 + $0x1c] sm:$0xf]
  %v28 = vld [vmem:[%s1 + $0x20] sm:$0xf]
  %v29 = vld [vmem:[%s1 + $0x24] sm:$0xf]
  %v30 = vld [vmem:[%s1 + $0x28] sm:$0xf]
  %v31 = vld [vmem:[%s1 + $0x2c] sm:$0xf]
  %v32 = vld [vmem:[%s1 + $0x30] sm:$0xf]
  %v33 = vld [vmem:[%s1 + $0x34] sm:$0xf]
  %v34 = vld [vmem:[%s1 + $0x38] sm:$0xf]
  %v35 = vld [vmem:[%s1 + $0x3c] sm:$0xf]
  %v36 = vld [vmem:[%s1 + $0x40] sm:$0xf]
  %v37 = vld [vmem:[%s1 + $0x44] sm:$0xf]
  %v38 = vld [vmem:[%s1 + $0x48] sm:$0xf]
  %v39 = vld [vmem:[%s1 + $0x4c] sm:$0xf]
  %v40 = vld [vmem:[%s1 + $0x50] sm:$0xf]
  %v41 = vld [vmem:[%s1 + $0x54] sm:$0xf]
  %v42 = vld [vmem:[%s1 + $0x58] sm:$0xf]
  %v43 = vld [vmem:[%s1 + $0x5c] sm:$0xf]
  %v44 = vld [vmem:[%s1 + $0x60] sm:$0xf]
  %v45 = vld [vmem:[%s1 + $0x64] sm:$0xf]
  %v46 = vld [vmem:[%s1 + $0x68] sm:$0xf]
  %v49 = vunpack.c.l.b16 %v18
  %v50 = vunpack.c.h.b16 %v18
  %v51 = vunpack.c.l.b16 %v19
  %v52 = vunpack.c.h.b16 %v19
  %v53 = vpack.c.b16 %v51, %v49
  %v54 = vpack.c.b16 %v52, %v50
  %v83 = vunpack.c.l.b16 %v20
  %v84 = vunpack.c.l.b16 %v21
  %v85 = vunpack.c.l.b16 %v22
  %v86 = vunpack.c.l.b16 %v23
  %v87 = vunpack.c.l.b16 %v24
  %v88 = vunpack.c.l.b16 %v25
  %v89 = vunpack.c.l.b16 %v26
  %v90 = vunpack.c.l.b16 %v27
  %v91 = vunpack.c.l.b16 %v28
  %v92 = vunpack.c.l.b16 %v29
  %v93 = vunpack.c.l.b16 %v30
  %v94 = vunpack.c.l.b16 %v31
  %v95 = vunpack.c.l.b16 %v32
  %v96 = vunpack.c.l.b16 %v33
  %v97 = vunpack.c.l.b16 %v34
  %v98 = vunpack.c.l.b16 %v35
  %v99 = vunpack.c.l.b16 %v36
  %v100 = vunpack.c.l.b16 %v37
  %v101 = vunpack.c.l.b16 %v38
  %v102 = vunpack.c.l.b16 %v39
  %v103 = vunpack.c.l.b16 %v40
  %v104 = vunpack.c.l.b16 %v41
  %v105 = vunpack.c.l.b16 %v42
  %v106 = vunpack.c.l.b16 %v43
  %v107 = vunpack.c.l.b16 %v44
  %v108 = vunpack.c.l.b16 %v45
  %v109 = vunpack.c.l.b16 %v46
  %v110 = vpack.c.b16 %v84, %v83
  %v111 = vpack.c.b16 %v86, %v85
  %v112 = vpack.c.b16 %v88, %v87
  %v113 = vpack.c.b16 %v90, %v89
  %v114 = vpack.c.b16 %v92, %v91
  %v115 = vpack.c.b16 %v94, %v93
  %v116 = vpack.c.b16 %v96, %v95
  %v117 = vpack.c.b16 %v98, %v97
  %v118 = vpack.c.b16 %v100, %v99
  %v119 = vpack.c.b16 %v102, %v101
  %v120 = vpack.c.b16 %v104, %v103
  %v121 = vpack.c.b16 %v106, %v105
  %v122 = vpack.c.b16 %v108, %v107
  %v123 = vpack.c.b16 %v109, %v109
  %vm137 = vcmask 719872
  %v139 = vsel %vm137, %v54, 0
  %vm141 = vcmask 1043456
  %v143 = vsel %vm141, %v123, 0
  %145 = vmatprep.subr.bf16.mxu0 0
  %146 = vmatpush1.bf16.msra.mxu0 %v117
  %147 = vmatprep.subr.bf16.mxu0 0
  %148 = vmatpush1.bf16.msra.mxu0 %v116
  %149 = vmatprep.subr.bf16.mxu0 0
  %150 = vmatpush1.bf16.msra.mxu0 %v115
  %151 = vmatprep.subr.bf16.mxu0 0
  %152 = vmatpush1.bf16.msra.mxu0 %v114
  %153 = vmatprep.subr.bf16.mxu0 0
  %154 = vmatpush1.bf16.msra.mxu0 %v113
  %155 = vmatprep.subr.bf16.mxu0 0
  %156 = vmatpush1.bf16.msra.mxu0 %v112
  %157 = vmatprep.subr.bf16.mxu0 0
  %158 = vmatpush1.bf16.msra.mxu0 %v111
  %159 = vmatprep.subr.bf16.mxu0 0
  %160 = vmatpush1.bf16.msra.mxu0 %v110
  %161 = vmatprep.subr.bf16.mxu0 0
  %162 = vmatpush2.bf16.msra.mxu0 0
  %163 = vmatprep.subr.bf16.mxu0 0
  %164 = vmatpush2.bf16.msra.mxu0 0
  %165 = vmatprep.subr.bf16.mxu0 0
  %166 = vmatpush2.bf16.msra.mxu0 %v143
  %167 = vmatprep.subr.bf16.mxu0 0
  %168 = vmatpush2.bf16.msra.mxu0 %v122
  %169 = vmatprep.subr.bf16.mxu0 0
  %170 = vmatpush2.bf16.msra.mxu0 %v121
  %171 = vmatprep.subr.bf16.mxu0 0
  %172 = vmatpush2.bf16.msra.mxu0 %v120
  %173 = vmatprep.subr.bf16.mxu0 0
  %174 = vmatpush2.bf16.msra.mxu0 %v119
  %175 = vmatprep.subr.bf16.mxu0 0
  %176 = vmatpush2.bf16.msra.mxu0 %v118
  %177 = vmatprep.mubr.bf16.mxu0 %v139
  %178 = vmatmul.mubr.bf16.gmra.mxu0 %v53
  %v179 = vpop.f32.mrf.mxu0
  %v180 = vadd.f32 0.0, %v179
  %v181 = vpop.f32.mrf.mxu0
  %v182 = vpop.f32.mrf.mxu0
  %v183 = vadd.f32 0.0, %v182
  %v184 = vpop.f32.mrf.mxu0
  %185 = vdwg.mxu0
  %v186 = vld [vmem:[%s2] sm:$0xff]
  %v187 = vld [vmem:[%s2 + $0x8] sm:$0xff]
  %189 = vset.pattern.permute.xlu0 0
  %190 = vperm.xlu0 %189, %v186
  %v191 = vpop.permute.xlu0 %190
  %194 = vset.pattern.permute.xlu0 0
  %195 = vperm.xlu0 %194, %v187
  %v196 = vpop.permute.xlu0 %195
  %v198 = vmul.f32 %v180, %v191
  %v199 = vmul.f32 %v183, %v196
  %v200 = vld [vmem:[%s3] sm:$0xff]
  %v201 = vld [vmem:[%s3 + $0x8] sm:$0xff]
  %203 = vset.pattern.permute.xlu0 0
  %204 = vperm.xlu0 %203, %v200
  %v205 = vpop.permute.xlu0 %204
  %208 = vset.pattern.permute.xlu0 0
  %209 = vperm.xlu0 %208, %v201
  %v210 = vpop.permute.xlu0 %209
  %v212 = vadd.f32 %v198, %v205
  %v213 = vadd.f32 %v199, %v210
  %v214 = vmax.f32 %v212, 0.0
  %v215 = vmax.f32 %v213, 0.0
  %216 = vst [vmem:[%s4] sm:$0xff] %v214
  %217 = vst [vmem:[%s4 + $0x8] sm:$0xff] %v215
  // Predicated region
  $region18: #{_lambda_.30} parent=0 // pred_check
    _
  $region19: #{_lambda_.30} parent=0 // pred_check_branch
    %219 = sbr.rel (0) target = $region21
  $region20: #{_lambda_.30} parent=0 // pred_region
    _
  $region21: #{_lambda_.30} parent=0 // pred_fallthru
    _
  // Predicated region
  $region22: #{_lambda_.30} parent=0 // pred_check
    _
  $region23: #{_lambda_.30} parent=0 // pred_check_branch
    %221 = sbr.rel (0) target = $region25
  $region24: #{_lambda_.30} parent=0 // pred_region
    _
  $region25: #{_lambda_.30} parent=0 // pred_fallthru
    _

// kernel: _lambda_.31
$region0: #{_lambda_.31}
  #allocation0 [shape = 'u32[]', space=smem, size = 0x4, offset = 0x4, fixed_abs, tag = 'smem constant byte address 0x4 - core index']
  #allocation1 [shape = 'u32[144,128]{1,0:T(1,128)}', space=vmem, size = 0x12000, scoped, tag = 'internal scratch']
  %s0 = inlined_call_operand.vmem [shape: bf16[16,432], index: 0, kind: input, shape index: {}]
  %s1 = inlined_call_operand.vmem [shape: bf16[432,128], index: 1, kind: input, shape index: {}]
  %s2 = inlined_call_operand.vmem [shape: f32[16,1], index: 2, kind: input, shape index: {}]
  %s3 = inlined_call_operand.vmem [shape: f32[16,1], index: 3, kind: input, shape index: {}]
  %s4 = inlined_call_operand.vmem [shape: f32[16,128], index: 4, kind: input, shape index: {}]
  %s5 = inlined_call_operand.vmem [shape: f32[16,128], index: 5, kind: output, shape index: {}]
  %s6 = sld [smem:[#allocation0]]
  $region30: #{_lambda_.31} parent=0
    _
  %s8 = ssub.s32 1, %s6
  %s9 = scalar_select 0, %s8, %s6
  // Predicated region
  $region2: #{_lambda_.31} parent=0 // pred_check
    _
  $region3: #{_lambda_.31} parent=0 // pred_check_branch
    %11 = sbr.rel (0) target = $region5
  $region4: #{_lambda_.31} parent=0 // pred_region
    _
  $region5: #{_lambda_.31} parent=0 // pred_fallthru
    _
  // Predicated region
  $region6: #{_lambda_.31} parent=0 // pred_check
    _
  $region7: #{_lambda_.31} parent=0 // pred_check_branch
    %13 = sbr.rel (0) target = $region9
  $region8: #{_lambda_.31} parent=0 // pred_region
    _
  $region9: #{_lambda_.31} parent=0 // pred_fallthru
    _
  // Predicated region
  $region10: #{_lambda_.31} parent=0 // pred_check
    _
  $region11: #{_lambda_.31} parent=0 // pred_check_branch
    %15 = sbr.rel (0) target = $region13
  $region12: #{_lambda_.31} parent=0 // pred_region
    _
  $region13: #{_lambda_.31} parent=0 // pred_fallthru
    _
  // Predicated region
  $region14: #{_lambda_.31} parent=0 // pred_check
    _
  $region15: #{_lambda_.31} parent=0 // pred_check_branch
    %17 = sbr.rel (0) target = $region17
  $region16: #{_lambda_.31} parent=0 // pred_region
    _
  $region17: #{_lambda_.31} parent=0 // pred_fallthru
    _
  // Predicated region
  $region18: #{_lambda_.31} parent=0 // pred_check
    _
  $region19: #{_lambda_.31} parent=0 // pred_check_branch
    %19 = sbr.rel (0) target = $region21
  $region20: #{_lambda_.31} parent=0 // pred_region
    _
  $region21: #{_lambda_.31} parent=0 // pred_fallthru
    _
  %v21 = vld [vmem:[%s0] sm:$0xff]
  %v22 = vld [vmem:[%s0 + $0x8] sm:$0xff]
  %v23 = vld [vmem:[%s0 + $0x10] sm:$0xff]
  %v24 = vld [vmem:[%s0 + $0x18] sm:$0xff]
  %v25 = vld [vmem:[%s1] sm:$0xf]
  %v26 = vld [vmem:[%s1 + $0x4] sm:$0xf]
  %v27 = vld [vmem:[%s1 + $0x8] sm:$0xf]
  %v28 = vld [vmem:[%s1 + $0xc] sm:$0xf]
  %v29 = vld [vmem:[%s1 + $0x10] sm:$0xf]
  %v30 = vld [vmem:[%s1 + $0x14] sm:$0xf]
  %v31 = vld [vmem:[%s1 + $0x18] sm:$0xf]
  %v32 = vld [vmem:[%s1 + $0x1c] sm:$0xf]
  %v33 = vld [vmem:[%s1 + $0x20] sm:$0xf]
  %v34 = vld [vmem:[%s1 + $0x24] sm:$0xf]
  %v35 = vld [vmem:[%s1 + $0x28] sm:$0xf]
  %v36 = vld [vmem:[%s1 + $0x2c] sm:$0xf]
  %v37 = vld [vmem:[%s1 + $0x30] sm:$0xf]
  %v38 = vld [vmem:[%s1 + $0x34] sm:$0xf]
  %v39 = vld [vmem:[%s1 + $0x38] sm:$0xf]
  %v40 = vld [vmem:[%s1 + $0x3c] sm:$0xf]
  %v41 = vld [vmem:[%s1 + $0x40] sm:$0xf]
  %v42 = vld [vmem:[%s1 + $0x44] sm:$0xf]
  %v43 = vld [vmem:[%s1 + $0x48] sm:$0xf]
  %v44 = vld [vmem:[%s1 + $0x4c] sm:$0xf]
  %v45 = vld [vmem:[%s1 + $0x50] sm:$0xf]
  %v46 = vld [vmem:[%s1 + $0x54] sm:$0xf]
  %v47 = vld [vmem:[%s1 + $0x58] sm:$0xf]
  %v48 = vld [vmem:[%s1 + $0x5c] sm:$0xf]
  %v49 = vld [vmem:[%s1 + $0x60] sm:$0xf]
  %v50 = vld [vmem:[%s1 + $0x64] sm:$0xf]
  %v51 = vld [vmem:[%s1 + $0x68] sm:$0xf]
  %v52 = vld [vmem:[%s1 + $0x6c] sm:$0xf]
  %v53 = vld [vmem:[%s1 + $0x70] sm:$0xf]
  %v54 = vld [vmem:[%s1 + $0x74] sm:$0xf]
  %v55 = vld [vmem:[%s1 + $0x78] sm:$0xf]
  %v56 = vld [vmem:[%s1 + $0x7c] sm:$0xf]
  %v57 = vld [vmem:[%s1 + $0x80] sm:$0xf]
  %v58 = vld [vmem:[%s1 + $0x84] sm:$0xf]
  %v59 = vld [vmem:[%s1 + $0x88] sm:$0xf]
  %v60 = vld [vmem:[%s1 + $0x8c] sm:$0xf]
  %v61 = vld [vmem:[%s1 + $0x90] sm:$0xf]
  %v62 = vld [vmem:[%s1 + $0x94] sm:$0xf]
  %v63 = vld [vmem:[%s1 + $0x98] sm:$0xf]
  %v64 = vld [vmem:[%s1 + $0x9c] sm:$0xf]
  %v65 = vld [vmem:[%s1 + $0xa0] sm:$0xf]
  %v66 = vld [vmem:[%s1 + $0xa4] sm:$0xf]
  %v67 = vld [vmem:[%s1 + $0xa8] sm:$0xf]
  %v68 = vld [vmem:[%s1 + $0xac] sm:$0xf]
  %v69 = vld [vmem:[%s1 + $0xb0] sm:$0xf]
  %v70 = vld [vmem:[%s1 + $0xb4] sm:$0xf]
  %v71 = vld [vmem:[%s1 + $0xb8] sm:$0xf]
  %v72 = vld [vmem:[%s1 + $0xbc] sm:$0xf]
  %v73 = vld [vmem:[%s1 + $0xc0] sm:$0xf]
  %v74 = vld [vmem:[%s1 + $0xc4] sm:$0xf]
  %v75 = vld [vmem:[%s1 + $0xc8] sm:$0xf]
  %v76 = vld [vmem:[%s1 + $0xcc] sm:$0xf]
  %v77 = vld [vmem:[%s1 + $0xd0] sm:$0xf]
  %v78 = vld [vmem:[%s1 + $0xd4] sm:$0xf]
  %v83 = vunpack.c.l.b16 %v21
  %v84 = vunpack.c.h.b16 %v21
  %v85 = vunpack.c.l.b16 %v22
  %v86 = vunpack.c.h.b16 %v22
  %v87 = vunpack.c.l.b16 %v23
  %v88 = vunpack.c.h.b16 %v23
  %v89 = vunpack.c.l.b16 %v24
  %v90 = vunpack.c.h.b16 %v24
  %v91 = vpack.c.b16 %v87, %v83
  %v92 = vpack.c.b16 %v88, %v84
  %v93 = vpack.c.b16 %v89, %v85
  %v94 = vpack.c.b16 %v90, %v86
  %v152 = vunpack.c.l.b16 %v25
  %v153 = vunpack.c.l.b16 %v26
  %v154 = vunpack.c.l.b16 %v27
  %v155 = vunpack.c.l.b16 %v28
  %v156 = vunpack.c.l.b16 %v29
  %v157 = vunpack.c.l.b16 %v30
  %v158 = vunpack.c.l.b16 %v31
  %v159 = vunpack.c.l.b16 %v32
  %v160 = vunpack.c.l.b16 %v33
  %v161 = vunpack.c.l.b16 %v34
  %v162 = vunpack.c.l.b16 %v35
  %v163 = vunpack.c.l.b16 %v36
  %v164 = vunpack.c.l.b16 %v37
  %v165 = vunpack.c.l.b16 %v38
  %v166 = vunpack.c.l.b16 %v39
  %v167 = vunpack.c.l.b16 %v40
  %v168 = vunpack.c.l.b16 %v41
  %v169 = vunpack.c.l.b16 %v42
  %v170 = vunpack.c.l.b16 %v43
  %v171 = vunpack.c.l.b16 %v44
  %v172 = vunpack.c.l.b16 %v45
  %v173 = vunpack.c.l.b16 %v46
  %v174 = vunpack.c.l.b16 %v47
  %v175 = vunpack.c.l.b16 %v48
  %v176 = vunpack.c.l.b16 %v49
  %v177 = vunpack.c.l.b16 %v50
  %v178 = vunpack.c.l.b16 %v51
  %v179 = vunpack.c.l.b16 %v52
  %v180 = vunpack.c.l.b16 %v53
  %v181 = vunpack.c.l.b16 %v54
  %v182 = vunpack.c.l.b16 %v55
  %v183 = vunpack.c.l.b16 %v56
  %v184 = vunpack.c.l.b16 %v57
  %v185 = vunpack.c.l.b16 %v58
  %v186 = vunpack.c.l.b16 %v59
  %v187 = vunpack.c.l.b16 %v60
  %v188 = vunpack.c.l.b16 %v61
  %v189 = vunpack.c.l.b16 %v62
  %v190 = vunpack.c.l.b16 %v63
  %v191 = vunpack.c.l.b16 %v64
  %v192 = vunpack.c.l.b16 %v65
  %v193 = vunpack.c.l.b16 %v66
  %v194 = vunpack.c.l.b16 %v67
  %v195 = vunpack.c.l.b16 %v68
  %v196 = vunpack.c.l.b16 %v69
  %v197 = vunpack.c.l.b16 %v70
  %v198 = vunpack.c.l.b16 %v71
  %v199 = vunpack.c.l.b16 %v72
  %v200 = vunpack.c.l.b16 %v73
  %v201 = vunpack.c.l.b16 %v74
  %v202 = vunpack.c.l.b16 %v75
  %v203 = vunpack.c.l.b16 %v76
  %v204 = vunpack.c.l.b16 %v77
  %v205 = vunpack.c.l.b16 %v78
  %v206 = vpack.c.b16 %v153, %v152
  %v207 = vpack.c.b16 %v155, %v154
  %v208 = vpack.c.b16 %v157, %v156
  %v209 = vpack.c.b16 %v159, %v158
  %v210 = vpack.c.b16 %v161, %v160
  %v211 = vpack.c.b16 %v163, %v162
  %v212 = vpack.c.b16 %v165, %v164
  %v213 = vpack.c.b16 %v167, %v166
  %v214 = vpack.c.b16 %v169, %v168
  %v215 = vpack.c.b16 %v171, %v170
  %v216 = vpack.c.b16 %v173, %v172
  %v217 = vpack.c.b16 %v175, %v174
  %v218 = vpack.c.b16 %v177, %v176
  %v219 = vpack.c.b16 %v179, %v178
  %v220 = vpack.c.b16 %v181, %v180
  %v221 = vpack.c.b16 %v183, %v182
  %v222 = vpack.c.b16 %v185, %v184
  %v223 = vpack.c.b16 %v187, %v186
  %v224 = vpack.c.b16 %v189, %v188
  %v225 = vpack.c.b16 %v191, %v190
  %v226 = vpack.c.b16 %v193, %v192
  %v227 = vpack.c.b16 %v195, %v194
  %v228 = vpack.c.b16 %v197, %v196
  %v229 = vpack.c.b16 %v199, %v198
  %v230 = vpack.c.b16 %v201, %v200
  %v231 = vpack.c.b16 %v203, %v202
  %v232 = vpack.c.b16 %v205, %v204
  %vm260 = vcmask 392192
  %v262 = vsel %vm260, %v94, 0
  %264 = vmatprep.subr.bf16.mxu0 0
  %265 = vmatpush1.bf16.msra.mxu0 %v213
  %266 = vmatprep.subr.bf16.mxu0 0
  %267 = vmatpush1.bf16.msra.mxu0 %v212
  %268 = vmatprep.subr.bf16.mxu0 0
  %269 = vmatpush1.bf16.msra.mxu0 %v211
  %270 = vmatprep.subr.bf16.mxu0 0
  %271 = vmatpush1.bf16.msra.mxu0 %v210
  %272 = vmatprep.subr.bf16.mxu0 0
  %273 = vmatpush1.bf16.msra.mxu0 %v209
  %274 = vmatprep.subr.bf16.mxu0 0
  %275 = vmatpush1.bf16.msra.mxu0 %v208
  %276 = vmatprep.subr.bf16.mxu0 0
  %277 = vmatpush1.bf16.msra.mxu0 %v207
  %278 = vmatprep.subr.bf16.mxu0 0
  %279 = vmatpush1.bf16.msra.mxu0 %v206
  %280 = vmatprep.subr.bf16.mxu0 0
  %281 = vmatpush2.bf16.msra.mxu0 %v221
  %282 = vmatprep.subr.bf16.mxu0 0
  %283 = vmatpush2.bf16.msra.mxu0 %v220
  %284 = vmatprep.subr.bf16.mxu0 0
  %285 = vmatpush2.bf16.msra.mxu0 %v219
  %286 = vmatprep.subr.bf16.mxu0 0
  %287 = vmatpush2.bf16.msra.mxu0 %v218
  %288 = vmatprep.subr.bf16.mxu0 0
  %289 = vmatpush2.bf16.msra.mxu0 %v217
  %290 = vmatprep.subr.bf16.mxu0 0
  %291 = vmatpush2.bf16.msra.mxu0 %v216
  %292 = vmatprep.subr.bf16.mxu0 0
  %293 = vmatpush2.bf16.msra.mxu0 %v215
  %294 = vmatprep.subr.bf16.mxu0 0
  %295 = vmatpush2.bf16.msra.mxu0 %v214
  %296 = vmatprep.mubr.bf16.mxu0 %v92
  %297 = vmatmul.mubr.bf16.gmra.mxu0 %v91
  %v298 = vpop.f32.mrf.mxu0
  %v299 = vadd.f32 0.0, %v298
  %v300 = vpop.f32.mrf.mxu0
  %v301 = vpop.f32.mrf.mxu0
  %v302 = vadd.f32 0.0, %v301
  %v303 = vpop.f32.mrf.mxu0
  %304 = vdwg.mxu0
  %305 = vmatprep.subr.bf16.mxu0 0
  %306 = vmatpush1.bf16.msra.mxu0 %v229
  %307 = vmatprep.subr.bf16.mxu0 0
  %308 = vmatpush1.bf16.msra.mxu0 %v228
  %309 = vmatprep.subr.bf16.mxu0 0
  %310 = vmatpush1.bf16.msra.mxu0 %v227
  %311 = vmatprep.subr.bf16.mxu0 0
  %312 = vmatpush1.bf16.msra.mxu0 %v226
  %313 = vmatprep.subr.bf16.mxu0 0
  %314 = vmatpush1.bf16.msra.mxu0 %v225
  %315 = vmatprep.subr.bf16.mxu0 0
  %316 = vmatpush1.bf16.msra.mxu0 %v224
  %317 = vmatprep.subr.bf16.mxu0 0
  %318 = vmatpush1.bf16.msra.mxu0 %v223
  %319 = vmatprep.subr.bf16.mxu0 0
  %320 = vmatpush1.bf16.msra.mxu0 %v222
  %321 = vmatprep.subr.bf16.mxu0 0
  %322 = vmatpush2.bf16.msra.mxu0 0
  %323 = vmatprep.subr.bf16.mxu0 0
  %324 = vmatpush2.bf16.msra.mxu0 0
  %325 = vmatprep.subr.bf16.mxu0 0
  %326 = vmatpush2.bf16.msra.mxu0 0
  %327 = vmatprep.subr.bf16.mxu0 0
  %328 = vmatpush2.bf16.msra.mxu0 0
  %329 = vmatprep.subr.bf16.mxu0 0
  %330 = vmatpush2.bf16.msra.mxu0 0
  %331 = vmatprep.subr.bf16.mxu0 0
  %332 = vmatpush2.bf16.msra.mxu0 %v232
  %333 = vmatprep.subr.bf16.mxu0 0
  %334 = vmatpush2.bf16.msra.mxu0 %v231
  %335 = vmatprep.subr.bf16.mxu0 0
  %336 = vmatpush2.bf16.msra.mxu0 %v230
  %337 = vmatprep.mubr.bf16.mxu0 %v262
  %338 = vmatmul.mubr.bf16.gmra.mxu0 %v93
  %v339 = vpop.f32.mrf.mxu0
  %v340 = vadd.f32 %v299, %v339
  %v341 = vpop.f32.mrf.mxu0
  %v342 = vpop.f32.mrf.mxu0
  %v343 = vadd.f32 %v302, %v342
  %v344 = vpop.f32.mrf.mxu0
  %345 = vdwg.mxu0
  %v346 = vld [vmem:[%s2] sm:$0xff]
  %v347 = vld [vmem:[%s2 + $0x8] sm:$0xff]
  %349 = vset.pattern.permute.xlu0 0
  %350 = vperm.xlu0 %349, %v346
  %v351 = vpop.permute.xlu0 %350
  %354 = vset.pattern.permute.xlu0 0
  %355 = vperm.xlu0 %354, %v347
  %v356 = vpop.permute.xlu0 %355
  %v358 = vmul.f32 %v340, %v351
  %v359 = vmul.f32 %v343, %v356
  %v360 = vld [vmem:[%s3] sm:$0xff]
  %v361 = vld [vmem:[%s3 + $0x8] sm:$0xff]
  %363 = vset.pattern.permute.xlu0 0
  %364 = vperm.xlu0 %363, %v360
  %v365 = vpop.permute.xlu0 %364
  %368 = vset.pattern.permute.xlu0 0
  %369 = vperm.xlu0 %368, %v361
  %v370 = vpop.permute.xlu0 %369
  %v372 = vadd.f32 %v358, %v365
  %v373 = vadd.f32 %v359, %v370
  %v374 = vld [vmem:[%s4] sm:$0xff]
  %v375 = vld [vmem:[%s4 + $0x8] sm:$0xff]
  %v376 = vadd.f32 %v372, %v374
  %v377 = vadd.f32 %v373, %v375
  %v378 = vmax.f32 %v376, 0.0
  %v379 = vmax.f32 %v377, 0.0
  %380 = vst [vmem:[%s5] sm:$0xff] %v378
  %381 = vst [vmem:[%s5 + $0x8] sm:$0xff] %v379
  // Predicated region
  $region22: #{_lambda_.31} parent=0 // pred_check
    _
  $region23: #{_lambda_.31} parent=0 // pred_check_branch
    %383 = sbr.rel (0) target = $region25
  $region24: #{_lambda_.31} parent=0 // pred_region
    _
  $region25: #{_lambda_.31} parent=0 // pred_fallthru
    _
  // Predicated region
  $region26: #{_lambda_.31} parent=0 // pred_check
    _
  $region27: #{_lambda_.31} parent=0 // pred_check_branch
    %385 = sbr.rel (0) target = $region29
  $region28: #{_lambda_.31} parent=0 // pred_region
    _
  $region29: #{_lambda_.31} parent=0 // pred_fallthru
    _

// kernel: _lambda_.32
$region0: #{_lambda_.32}
  #allocation0 [shape = 'u32[]', space=smem, size = 0x4, offset = 0x4, fixed_abs, tag = 'smem constant byte address 0x4 - core index']
  #allocation1 [shape = 'u32[144,128]{1,0:T(1,128)}', space=vmem, size = 0x12000, scoped, tag = 'internal scratch']
  %s0 = inlined_call_operand.vmem [shape: bf16[16,432], index: 0, kind: input, shape index: {}]
  %s1 = inlined_call_operand.vmem [shape: bf16[432,128], index: 1, kind: input, shape index: {}]
  %s2 = inlined_call_operand.vmem [shape: f32[16,1], index: 2, kind: input, shape index: {}]
  %s3 = inlined_call_operand.vmem [shape: f32[16,1], index: 3, kind: input, shape index: {}]
  %s4 = inlined_call_operand.vmem [shape: f32[16,128], index: 4, kind: output, shape index: {}]
  %s5 = sld [smem:[#allocation0]]
  $region26: #{_lambda_.32} parent=0
    _
  %s7 = ssub.s32 1, %s5
  %s8 = scalar_select 0, %s7, %s5
  // Predicated region
  $region2: #{_lambda_.32} parent=0 // pred_check
    _
  $region3: #{_lambda_.32} parent=0 // pred_check_branch
    %10 = sbr.rel (0) target = $region5
  $region4: #{_lambda_.32} parent=0 // pred_region
    _
  $region5: #{_lambda_.32} parent=0 // pred_fallthru
    _
  // Predicated region
  $region6: #{_lambda_.32} parent=0 // pred_check
    _
  $region7: #{_lambda_.32} parent=0 // pred_check_branch
    %12 = sbr.rel (0) target = $region9
  $region8: #{_lambda_.32} parent=0 // pred_region
    _
  $region9: #{_lambda_.32} parent=0 // pred_fallthru
    _
  // Predicated region
  $region10: #{_lambda_.32} parent=0 // pred_check
    _
  $region11: #{_lambda_.32} parent=0 // pred_check_branch
    %14 = sbr.rel (0) target = $region13
  $region12: #{_lambda_.32} parent=0 // pred_region
    _
  $region13: #{_lambda_.32} parent=0 // pred_fallthru
    _
  // Predicated region
  $region14: #{_lambda_.32} parent=0 // pred_check
    _
  $region15: #{_lambda_.32} parent=0 // pred_check_branch
    %16 = sbr.rel (0) target = $region17
  $region16: #{_lambda_.32} parent=0 // pred_region
    _
  $region17: #{_lambda_.32} parent=0 // pred_fallthru
    _
  %v18 = vld [vmem:[%s0] sm:$0xff]
  %v19 = vld [vmem:[%s0 + $0x8] sm:$0xff]
  %v20 = vld [vmem:[%s0 + $0x10] sm:$0xff]
  %v21 = vld [vmem:[%s0 + $0x18] sm:$0xff]
  %v22 = vld [vmem:[%s1] sm:$0xf]
  %v23 = vld [vmem:[%s1 + $0x4] sm:$0xf]
  %v24 = vld [vmem:[%s1 + $0x8] sm:$0xf]
  %v25 = vld [vmem:[%s1 + $0xc] sm:$0xf]
  %v26 = vld [vmem:[%s1 + $0x10] sm:$0xf]
  %v27 = vld [vmem:[%s1 + $0x14] sm:$0xf]
  %v28 = vld [vmem:[%s1 + $0x18] sm:$0xf]
  %v29 = vld [vmem:[%s1 + $0x1c] sm:$0xf]
  %v30 = vld [vmem:[%s1 + $0x20] sm:$0xf]
  %v31 = vld [vmem:[%s1 + $0x24] sm:$0xf]
  %v32 = vld [vmem:[%s1 + $0x28] sm:$0xf]
  %v33 = vld [vmem:[%s1 + $0x2c] sm:$0xf]
  %v34 = vld [vmem:[%s1 + $0x30] sm:$0xf]
  %v35 = vld [vmem:[%s1 + $0x34] sm:$0xf]
  %v36 = vld [vmem:[%s1 + $0x38] sm:$0xf]
  %v37 = vld [vmem:[%s1 + $0x3c] sm:$0xf]
  %v38 = vld [vmem:[%s1 + $0x40] sm:$0xf]
  %v39 = vld [vmem:[%s1 + $0x44] sm:$0xf]
  %v40 = vld [vmem:[%s1 + $0x48] sm:$0xf]
  %v41 = vld [vmem:[%s1 + $0x4c] sm:$0xf]
  %v42 = vld [vmem:[%s1 + $0x50] sm:$0xf]
  %v43 = vld [vmem:[%s1 + $0x54] sm:$0xf]
  %v44 = vld [vmem:[%s1 + $0x58] sm:$0xf]
  %v45 = vld [vmem:[%s1 + $0x5c] sm:$0xf]
  %v46 = vld [vmem:[%s1 + $0x60] sm:$0xf]
  %v47 = vld [vmem:[%s1 + $0x64] sm:$0xf]
  %v48 = vld [vmem:[%s1 + $0x68] sm:$0xf]
  %v49 = vld [vmem:[%s1 + $0x6c] sm:$0xf]
  %v50 = vld [vmem:[%s1 + $0x70] sm:$0xf]
  %v51 = vld [vmem:[%s1 + $0x74] sm:$0xf]
  %v52 = vld [vmem:[%s1 + $0x78] sm:$0xf]
  %v53 = vld [vmem:[%s1 + $0x7c] sm:$0xf]
  %v54 = vld [vmem:[%s1 + $0x80] sm:$0xf]
  %v55 = vld [vmem:[%s1 + $0x84] sm:$0xf]
  %v56 = vld [vmem:[%s1 + $0x88] sm:$0xf]
  %v57 = vld [vmem:[%s1 + $0x8c] sm:$0xf]
  %v58 = vld [vmem:[%s1 + $0x90] sm:$0xf]
  %v59 = vld [vmem:[%s1 + $0x94] sm:$0xf]
  %v60 = vld [vmem:[%s1 + $0x98] sm:$0xf]
  %v61 = vld [vmem:[%s1 + $0x9c] sm:$0xf]
  %v62 = vld [vmem:[%s1 + $0xa0] sm:$0xf]
  %v63 = vld [vmem:[%s1 + $0xa4] sm:$0xf]
  %v64 = vld [vmem:[%s1 + $0xa8] sm:$0xf]
  %v65 = vld [vmem:[%s1 + $0xac] sm:$0xf]
  %v66 = vld [vmem:[%s1 + $0xb0] sm:$0xf]
  %v67 = vld [vmem:[%s1 + $0xb4] sm:$0xf]
  %v68 = vld [vmem:[%s1 + $0xb8] sm:$0xf]
  %v69 = vld [vmem:[%s1 + $0xbc] sm:$0xf]
  %v70 = vld [vmem:[%s1 + $0xc0] sm:$0xf]
  %v71 = vld [vmem:[%s1 + $0xc4] sm:$0xf]
  %v72 = vld [vmem:[%s1 + $0xc8] sm:$0xf]
  %v73 = vld [vmem:[%s1 + $0xcc] sm:$0xf]
  %v74 = vld [vmem:[%s1 + $0xd0] sm:$0xf]
  %v75 = vld [vmem:[%s1 + $0xd4] sm:$0xf]
  %v80 = vunpack.c.l.b16 %v18
  %v81 = vunpack.c.h.b16 %v18
  %v82 = vunpack.c.l.b16 %v19
  %v83 = vunpack.c.h.b16 %v19
  %v84 = vunpack.c.l.b16 %v20
  %v85 = vunpack.c.h.b16 %v20
  %v86 = vunpack.c.l.b16 %v21
  %v87 = vunpack.c.h.b16 %v21
  %v88 = vpack.c.b16 %v84, %v80
  %v89 = vpack.c.b16 %v85, %v81
  %v90 = vpack.c.b16 %v86, %v82
  %v91 = vpack.c.b16 %v87, %v83
  %v149 = vunpack.c.l.b16 %v22
  %v150 = vunpack.c.l.b16 %v23
  %v151 = vunpack.c.l.b16 %v24
  %v152 = vunpack.c.l.b16 %v25
  %v153 = vunpack.c.l.b16 %v26
  %v154 = vunpack.c.l.b16 %v27
  %v155 = vunpack.c.l.b16 %v28
  %v156 = vunpack.c.l.b16 %v29
  %v157 = vunpack.c.l.b16 %v30
  %v158 = vunpack.c.l.b16 %v31
  %v159 = vunpack.c.l.b16 %v32
  %v160 = vunpack.c.l.b16 %v33
  %v161 = vunpack.c.l.b16 %v34
  %v162 = vunpack.c.l.b16 %v35
  %v163 = vunpack.c.l.b16 %v36
  %v164 = vunpack.c.l.b16 %v37
  %v165 = vunpack.c.l.b16 %v38
  %v166 = vunpack.c.l.b16 %v39
  %v167 = vunpack.c.l.b16 %v40
  %v168 = vunpack.c.l.b16 %v41
  %v169 = vunpack.c.l.b16 %v42
  %v170 = vunpack.c.l.b16 %v43
  %v171 = vunpack.c.l.b16 %v44
  %v172 = vunpack.c.l.b16 %v45
  %v173 = vunpack.c.l.b16 %v46
  %v174 = vunpack.c.l.b16 %v47
  %v175 = vunpack.c.l.b16 %v48
  %v176 = vunpack.c.l.b16 %v49
  %v177 = vunpack.c.l.b16 %v50
  %v178 = vunpack.c.l.b16 %v51
  %v179 = vunpack.c.l.b16 %v52
  %v180 = vunpack.c.l.b16 %v53
  %v181 = vunpack.c.l.b16 %v54
  %v182 = vunpack.c.l.b16 %v55
  %v183 = vunpack.c.l.b16 %v56
  %v184 = vunpack.c.l.b16 %v57
  %v185 = vunpack.c.l.b16 %v58
  %v186 = vunpack.c.l.b16 %v59
  %v187 = vunpack.c.l.b16 %v60
  %v188 = vunpack.c.l.b16 %v61
  %v189 = vunpack.c.l.b16 %v62
  %v190 = vunpack.c.l.b16 %v63
  %v191 = vunpack.c.l.b16 %v64
  %v192 = vunpack.c.l.b16 %v65
  %v193 = vunpack.c.l.b16 %v66
  %v194 = vunpack.c.l.b16 %v67
  %v195 = vunpack.c.l.b16 %v68
  %v196 = vunpack.c.l.b16 %v69
  %v197 = vunpack.c.l.b16 %v70
  %v198 = vunpack.c.l.b16 %v71
  %v199 = vunpack.c.l.b16 %v72
  %v200 = vunpack.c.l.b16 %v73
  %v201 = vunpack.c.l.b16 %v74
  %v202 = vunpack.c.l.b16 %v75
  %v203 = vpack.c.b16 %v150, %v149
  %v204 = vpack.c.b16 %v152, %v151
  %v205 = vpack.c.b16 %v154, %v153
  %v206 = vpack.c.b16 %v156, %v155
  %v207 = vpack.c.b16 %v158, %v157
  %v208 = vpack.c.b16 %v160, %v159
  %v209 = vpack.c.b16 %v162, %v161
  %v210 = vpack.c.b16 %v164, %v163
  %v211 = vpack.c.b16 %v166, %v165
  %v212 = vpack.c.b16 %v168, %v167
  %v213 = vpack.c.b16 %v170, %v169
  %v214 = vpack.c.b16 %v172, %v171
  %v215 = vpack.c.b16 %v174, %v173
  %v216 = vpack.c.b16 %v176, %v175
  %v217 = vpack.c.b16 %v178, %v177
  %v218 = vpack.c.b16 %v180, %v179
  %v219 = vpack.c.b16 %v182, %v181
  %v220 = vpack.c.b16 %v184, %v183
  %v221 = vpack.c.b16 %v186, %v185
  %v222 = vpack.c.b16 %v188, %v187
  %v223 = vpack.c.b16 %v190, %v189
  %v224 = vpack.c.b16 %v192, %v191
  %v225 = vpack.c.b16 %v194, %v193
  %v226 = vpack.c.b16 %v196, %v195
  %v227 = vpack.c.b16 %v198, %v197
  %v228 = vpack.c.b16 %v200, %v199
  %v229 = vpack.c.b16 %v202, %v201
  %vm257 = vcmask 392192
  %v259 = vsel %vm257, %v91, 0
  %261 = vmatprep.subr.bf16.mxu0 0
  %262 = vmatpush1.bf16.msra.mxu0 %v210
  %263 = vmatprep.subr.bf16.mxu0 0
  %264 = vmatpush1.bf16.msra.mxu0 %v209
  %265 = vmatprep.subr.bf16.mxu0 0
  %266 = vmatpush1.bf16.msra.mxu0 %v208
  %267 = vmatprep.subr.bf16.mxu0 0
  %268 = vmatpush1.bf16.msra.mxu0 %v207
  %269 = vmatprep.subr.bf16.mxu0 0
  %270 = vmatpush1.bf16.msra.mxu0 %v206
  %271 = vmatprep.subr.bf16.mxu0 0
  %272 = vmatpush1.bf16.msra.mxu0 %v205
  %273 = vmatprep.subr.bf16.mxu0 0
  %274 = vmatpush1.bf16.msra.mxu0 %v204
  %275 = vmatprep.subr.bf16.mxu0 0
  %276 = vmatpush1.bf16.msra.mxu0 %v203
  %277 = vmatprep.subr.bf16.mxu0 0
  %278 = vmatpush2.bf16.msra.mxu0 %v218
  %279 = vmatprep.subr.bf16.mxu0 0
  %280 = vmatpush2.bf16.msra.mxu0 %v217
  %281 = vmatprep.subr.bf16.mxu0 0
  %282 = vmatpush2.bf16.msra.mxu0 %v216
  %283 = vmatprep.subr.bf16.mxu0 0
  %284 = vmatpush2.bf16.msra.mxu0 %v215
  %285 = vmatprep.subr.bf16.mxu0 0
  %286 = vmatpush2.bf16.msra.mxu0 %v214
  %287 = vmatprep.subr.bf16.mxu0 0
  %288 = vmatpush2.bf16.msra.mxu0 %v213
  %289 = vmatprep.subr.bf16.mxu0 0
  %290 = vmatpush2.bf16.msra.mxu0 %v212
  %291 = vmatprep.subr.bf16.mxu0 0
  %292 = vmatpush2.bf16.msra.mxu0 %v211
  %293 = vmatprep.mubr.bf16.mxu0 %v89
  %294 = vmatmul.mubr.bf16.gmra.mxu0 %v88
  %v295 = vpop.f32.mrf.mxu0
  %v296 = vadd.f32 0.0, %v295
  %v297 = vpop.f32.mrf.mxu0
  %v298 = vpop.f32.mrf.mxu0
  %v299 = vadd.f32 0.0, %v298
  %v300 = vpop.f32.mrf.mxu0
  %301 = vdwg.mxu0
  %302 = vmatprep.subr.bf16.mxu0 0
  %303 = vmatpush1.bf16.msra.mxu0 %v226
  %304 = vmatprep.subr.bf16.mxu0 0
  %305 = vmatpush1.bf16.msra.mxu0 %v225
  %306 = vmatprep.subr.bf16.mxu0 0
  %307 = vmatpush1.bf16.msra.mxu0 %v224
  %308 = vmatprep.subr.bf16.mxu0 0
  %309 = vmatpush1.bf16.msra.mxu0 %v223
  %310 = vmatprep.subr.bf16.mxu0 0
  %311 = vmatpush1.bf16.msra.mxu0 %v222
  %312 = vmatprep.subr.bf16.mxu0 0
  %313 = vmatpush1.bf16.msra.mxu0 %v221
  %314 = vmatprep.subr.bf16.mxu0 0
  %315 = vmatpush1.bf16.msra.mxu0 %v220
  %316 = vmatprep.subr.bf16.mxu0 0
  %317 = vmatpush1.bf16.msra.mxu0 %v219
  %318 = vmatprep.subr.bf16.mxu0 0
  %319 = vmatpush2.bf16.msra.mxu0 0
  %320 = vmatprep.subr.bf16.mxu0 0
  %321 = vmatpush2.bf16.msra.mxu0 0
  %322 = vmatprep.subr.bf16.mxu0 0
  %323 = vmatpush2.bf16.msra.mxu0 0
  %324 = vmatprep.subr.bf16.mxu0 0
  %325 = vmatpush2.bf16.msra.mxu0 0
  %326 = vmatprep.subr.bf16.mxu0 0
  %327 = vmatpush2.bf16.msra.mxu0 0
  %328 = vmatprep.subr.bf16.mxu0 0
  %329 = vmatpush2.bf16.msra.mxu0 %v229
  %330 = vmatprep.subr.bf16.mxu0 0
  %331 = vmatpush2.bf16.msra.mxu0 %v228
  %332 = vmatprep.subr.bf16.mxu0 0
  %333 = vmatpush2.bf16.msra.mxu0 %v227
  %334 = vmatprep.mubr.bf16.mxu0 %v259
  %335 = vmatmul.mubr.bf16.gmra.mxu0 %v90
  %v336 = vpop.f32.mrf.mxu0
  %v337 = vadd.f32 %v296, %v336
  %v338 = vpop.f32.mrf.mxu0
  %v339 = vpop.f32.mrf.mxu0
  %v340 = vadd.f32 %v299, %v339
  %v341 = vpop.f32.mrf.mxu0
  %342 = vdwg.mxu0
  %v343 = vld [vmem:[%s2] sm:$0xff]
  %v344 = vld [vmem:[%s2 + $0x8] sm:$0xff]
  %346 = vset.pattern.permute.xlu0 0
  %347 = vperm.xlu0 %346, %v343
  %v348 = vpop.permute.xlu0 %347
  %351 = vset.pattern.permute.xlu0 0
  %352 = vperm.xlu0 %351, %v344
  %v353 = vpop.permute.xlu0 %352
  %v355 = vmul.f32 %v337, %v348
  %v356 = vmul.f32 %v340, %v353
  %v357 = vld [vmem:[%s3] sm:$0xff]
  %v358 = vld [vmem:[%s3 + $0x8] sm:$0xff]
  %360 = vset.pattern.permute.xlu0 0
  %361 = vperm.xlu0 %360, %v357
  %v362 = vpop.permute.xlu0 %361
  %365 = vset.pattern.permute.xlu0 0
  %366 = vperm.xlu0 %365, %v358
  %v367 = vpop.permute.xlu0 %366
  %v369 = vadd.f32 %v355, %v362
  %v370 = vadd.f32 %v356, %v367
  %v371 = vmax.f32 %v369, 0.0
  %v372 = vmax.f32 %v370, 0.0
  %373 = vst [vmem:[%s4] sm:$0xff] %v371
  %374 = vst [vmem:[%s4 + $0x8] sm:$0xff] %v372
  // Predicated region
  $region18: #{_lambda_.32} parent=0 // pred_check
    _
  $region19: #{_lambda_.32} parent=0 // pred_check_branch
    %376 = sbr.rel (0) target = $region21
  $region20: #{_lambda_.32} parent=0 // pred_region
    _
  $region21: #{_lambda_.32} parent=0 // pred_fallthru
    _
  // Predicated region
  $region22: #{_lambda_.32} parent=0 // pred_check
    _
  $region23: #{_lambda_.32} parent=0 // pred_check_branch
    %378 = sbr.rel (0) target = $region25
  $region24: #{_lambda_.32} parent=0 // pred_region
    _
  $region25: #{_lambda_.32} parent=0 // pred_fallthru
    _

</llo_original>
